<compile_context>
chip_gen: v6e
topology: v6e:2x2x1
jax: 0.10.0
libtpu: 0.0.40
codegen_flags: <defaults>
</compile_context>

<pallas_src>
import numpy as np
import jax
import jax.numpy as jnp
from jax.experimental import pallas as pl
from jax.experimental.pallas import tpu as pltpu

# ---- model hyperparameters (small, consistent with the module) -------------
LATENT_DIM = 32
IMG_SHAPE = (1, 8, 8)                 # (C, H, W)
IMG_FLAT = int(np.prod(IMG_SHAPE))    # 64
BN_EPS = 0.8
LEAKY_SLOPE = 0.2
DIMS = [LATENT_DIM, 128, 256, 512, 1024, IMG_FLAT]

# Weight storage dtype: bf16 halves HBM->VMEM traffic on the weight-DMA-bound
# path; MXU still accumulates in f32.  Set to jnp.float32 for exact fp32 math.
WEIGHT_DTYPE = jnp.bfloat16

# Packed layout of all per-feature row vectors in one f32 operand.
# All offsets are multiples of 128 -> lane-aligned static slices in VMEM.
_VEC_FIELDS = (
    ("b1", 128), ("g2", 256), ("be2", 256), ("g3", 512), ("be3", 512),
    ("g4", 1024), ("be4", 1024), ("b5", IMG_FLAT),
)
VEC_OFFSETS = {}
_off = 0
for _name, _n in _VEC_FIELDS:
    VEC_OFFSETS[_name] = (_off, _n)
    _off += _n
VEC_TOTAL = _off   # 3776


def _generator_kernel(z_ref, w1_ref, w2_ref, w3_ref, w4_ref, w5_ref,
                      vec_ref, out_ref):
    """Whole MLP fused in one kernel; every operand fits comfortably in VMEM."""

    def leaky(x):
        # LeakyReLU(0.2): for slope in (0,1), max(x, slope*x) == where(x>0,x,slope*x)
        return jnp.maximum(x, LEAKY_SLOPE * x)

    def batchnorm(x, gamma, beta):
        # train-mode BatchNorm1d: biased batch statistics over the batch axis.
        # gamma * rsqrt(var+eps) is computed on the (1,N) row (cheap), so the
        # per-element work is a single multiply-add.
        mean = jnp.mean(x, axis=0, keepdims=True)
        centered = x - mean
        var = jnp.mean(centered * centered, axis=0, keepdims=True)
        scale = gamma * jax.lax.rsqrt(var + BN_EPS)     # (1, N)
        return centered * scale + beta

    def matmul(x, w_ref):
        # bf16 x bf16 -> f32 accumulation on the MXU (no-op cast if fp32 weights)
        return jnp.dot(x.astype(w_ref.dtype), w_ref[...],
                       preferred_element_type=jnp.float32)

    def vslice(name):
        off, n = VEC_OFFSETS[name]
        return vec_ref[:, off:off + n]          # static lane-aligned slice, f32 row

    z = z_ref[...]
    h = leaky(matmul(z, w1_ref) + vslice("b1"))                                 # (B, 128)
    # biases of layers 2-4 are omitted: cancelled by train-mode BN mean subtraction
    h = leaky(batchnorm(matmul(h, w2_ref), vslice("g2"), vslice("be2")))        # (B, 256)
    h = leaky(batchnorm(matmul(h, w3_ref), vslice("g3"), vslice("be3")))        # (B, 512)
    h = leaky(batchnorm(matmul(h, w4_ref), vslice("g4"), vslice("be4")))        # (B, 1024)
    out_ref[...] = jnp.tanh(matmul(h, w5_ref) + vslice("b5"))                   # (B, 64)


def init_params(key):
    """Deterministic PyTorch-style init: U(-1/sqrt(fan_in), +1/sqrt(fan_in))."""
    params = []
    for i in range(5):
        fan_in, fan_out = DIMS[i], DIMS[i + 1]
        key, kw, kb = jax.random.split(key, 3)
        bound = 1.0 / np.sqrt(fan_in)
        w = jax.random.uniform(kw, (fan_in, fan_out), jnp.float32, -bound, bound)
        b = jax.random.uniform(kb, (1, fan_out), jnp.float32, -bound, bound)
        params.append((w, b))
    # BatchNorm affine params for layers 2, 3, 4 (gamma=1, beta=0)
    bn_params = [(jnp.ones((1, DIMS[i + 1]), jnp.float32),
                  jnp.zeros((1, DIMS[i + 1]), jnp.float32)) for i in (1, 2, 3)]
    return params, bn_params


def pack_params(params, bn_params):
    """Cast weights to WEIGHT_DTYPE and pack all (1,N) vectors into one row."""
    weights = tuple(w.astype(WEIGHT_DTYPE) for (w, _b) in params)
    (_, b1), _, _, _, (_, b5) = params          # b2/b3/b4 dropped (no-op before BN)
    (g2, be2), (g3, be3), (g4, be4) = bn_params
    pieces = {"b1": b1, "g2": g2, "be2": be2, "g3": g3, "be3": be3,
              "g4": g4, "be4": be4, "b5": b5}
    packed_vec = jnp.concatenate(
        [pieces[name].astype(jnp.float32) for name, _ in _VEC_FIELDS], axis=1)
    assert packed_vec.shape == (1, VEC_TOTAL)
    return weights, packed_vec


def generator_forward(z, weights, packed_vec):
    B = z.shape[0]
    operands = (z, *weights, packed_vec)

    # Everything fits in VMEM; no grid -> a single fused invocation with
    # full-array blocks for every operand.
    def full_spec(a):
        nd = a.ndim
        return pl.BlockSpec(a.shape, lambda *_: (0,) * nd)

    flops = 2 * B * sum(DIMS[i] * DIMS[i + 1] for i in range(5))
    bytes_accessed = (sum(int(a.size) * a.dtype.itemsize for a in operands)
                      + B * IMG_FLAT * 4)
    transcendentals = B * IMG_FLAT + (256 + 512 + 1024)   # tanh + BN rsqrt rows

    out_flat = pl.pallas_call(
        _generator_kernel,
        out_shape=jax.ShapeDtypeStruct((B, IMG_FLAT), jnp.float32),
        in_specs=[full_spec(a) for a in operands],
        out_specs=pl.BlockSpec((B, IMG_FLAT), lambda *_: (0, 0)),
        compiler_params=pltpu.CompilerParams(vmem_limit_bytes=16 << 20),
        cost_estimate=pl.CostEstimate(flops=flops,
                                      transcendentals=transcendentals,
                                      bytes_accessed=bytes_accessed),
    )(*operands)

    # img = img.view(img.size(0), *img_shape)  -> NCHW
    return out_flat.reshape(B, *IMG_SHAPE)


# ---------------------------------------------------------------------------
# References for verification
# ---------------------------------------------------------------------------
def generator_reference_matched(z, weights, packed_vec):
    """Pure-JAX reference doing exactly the kernel's mixed-precision math."""
    def vslice(name):
        off, n = VEC_OFFSETS[name]
        return packed_vec[:, off:off + n]

    def leaky(x):
        return jnp.maximum(x, LEAKY_SLOPE * x)

    def bn(x, g, b):
        m = jnp.mean(x, axis=0, keepdims=True)
        c = x - m
        v = jnp.mean(c * c, axis=0, keepdims=True)
        return c * (g * jax.lax.rsqrt(v + BN_EPS)) + b

    def mm(x, w):
        return jnp.dot(x.astype(w.dtype), w, preferred_element_type=jnp.float32)

    w1, w2, w3, w4, w5 = weights
    h = leaky(mm(z, w1) + vslice("b1"))
    h = leaky(bn(mm(h, w2), vslice("g2"), vslice("be2")))
    h = leaky(bn(mm(h, w3), vslice("g3"), vslice("be3")))
    h = leaky(bn(mm(h, w4), vslice("g4"), vslice("be4")))
    out = jnp.tanh(mm(h, w5) + vslice("b5"))
    return out.reshape(z.shape[0], *IMG_SHAPE)


def generator_reference_fp32(z, params, bn_params):
    """Full-fp32 reference of the original module (all biases included)."""
    (w1, b1), (w2, b2), (w3, b3), (w4, b4), (w5, b5) = params
    (g2, be2), (g3, be3), (g4, be4) = bn_params

    def leaky(x):
        return jnp.where(x > 0, x, LEAKY_SLOPE * x)

    def bn(x, g, b):
        m = jnp.mean(x, axis=0, keepdims=True)
        v = jnp.mean((x - m) ** 2, axis=0, keepdims=True)
        return (x - m) / jnp.sqrt(v + BN_EPS) * g + b

    h = leaky(z @ w1 + b1)
    h = leaky(bn(h @ w2 + b2, g2, be2))
    h = leaky(bn(h @ w3 + b3, g3, be3))
    h = leaky(bn(h @ w4 + b4, g4, be4))
    out = jnp.tanh(h @ w5 + b5)
    return out.reshape(z.shape[0], *IMG_SHAPE)


if __name__ == "__main__":
    key = jax.random.PRNGKey(0)
    kp, kz = jax.random.split(key)
    params, bn_params = init_params(kp)
    weights, packed_vec = pack_params(params, bn_params)

    B = 8
    z = jax.random.normal(kz, (B, LATENT_DIM), jnp.float32)

    img = generator_forward(z, weights, packed_vec)
    jax.block_until_ready(img)
    assert img.shape == (B, *IMG_SHAPE), img.shape

    # 1) Tight check: kernel == pure-JAX implementation of the same
    #    mixed-precision math (bf16 weights, f32 accumulation).
    ref_matched = generator_reference_matched(z, weights, packed_vec)
    np.testing.assert_allclose(np.asarray(img), np.asarray(ref_matched),
                               rtol=5e-3, atol=5e-3)

    # 2) Semantics check against the strict fp32 PyTorch-equivalent module
    #    (includes the layer-2..4 biases); only bf16 rounding separates them.
    ref_fp32 = generator_reference_fp32(z, params, bn_params)
    np.testing.assert_allclose(np.asarray(img), np.asarray(ref_fp32),
                               rtol=0.1, atol=0.1)

    print("KERNEL_OK")
</pallas_src>

<mosaic_0001>
module attributes {stable_mosaic.version = 11 : i64} {
  func.func @_generator_kernel(%arg0: memref<8x32xf32, #tpu.memory_space<vmem>>, %arg1: memref<32x128xbf16, #tpu.memory_space<vmem>>, %arg2: memref<128x256xbf16, #tpu.memory_space<vmem>>, %arg3: memref<256x512xbf16, #tpu.memory_space<vmem>>, %arg4: memref<512x1024xbf16, #tpu.memory_space<vmem>>, %arg5: memref<1024x64xbf16, #tpu.memory_space<vmem>>, %arg6: memref<1x3776xf32, #tpu.memory_space<vmem>>, %arg7: memref<8x64xf32, #tpu.memory_space<vmem>>) attributes {dimension_semantics = [], scalar_prefetch = 0 : i64, scratch_operands = 0 : i64, tpu.core_type = #tpu.core_type<tc>} {
    %c0 = arith.constant 0 : index
    %c0_0 = arith.constant 0 : index
    %0 = vector.load %arg0[%c0, %c0_0] : memref<8x32xf32, #tpu.memory_space<vmem>>, vector<8x32xf32>
    %1 = arith.truncf %0 : vector<8x32xf32> to vector<8x32xbf16>
    %c0_1 = arith.constant 0 : index
    %c0_2 = arith.constant 0 : index
    %2 = vector.load %arg1[%c0_1, %c0_2] : memref<32x128xbf16, #tpu.memory_space<vmem>>, vector<32x128xbf16>
    %cst = arith.constant dense<0.000000e+00> : vector<8x128xf32>
    %3 = tpu.matmul %1, %2, %cst {dimension_numbers = #tpu.dot_dimension_numbers<[1], [0], [0], [1], [0, 0, 1, 1], [], []>} : vector<8x32xbf16>, vector<32x128xbf16>, vector<8x128xf32> -> vector<8x128xf32>
    %c0_3 = arith.constant 0 : index
    %c0_4 = arith.constant 0 : index
    %4 = vector.load %arg6[%c0_3, %c0_4] : memref<1x3776xf32, #tpu.memory_space<vmem>>, vector<1x128xf32>
    %5 = vector.broadcast %4 : vector<1x128xf32> to vector<8x128xf32>
    %6 = arith.addf %3, %5 : vector<8x128xf32>
    %cst_5 = arith.constant 2.000000e-01 : f32
    %7 = vector.broadcast %cst_5 : f32 to vector<8x128xf32>
    %8 = arith.mulf %7, %6 : vector<8x128xf32>
    %9 = arith.maximumf %6, %8 : vector<8x128xf32>
    %10 = arith.truncf %9 : vector<8x128xf32> to vector<8x128xbf16>
    %c0_6 = arith.constant 0 : index
    %c0_7 = arith.constant 0 : index
    %11 = vector.load %arg2[%c0_6, %c0_7] : memref<128x256xbf16, #tpu.memory_space<vmem>>, vector<128x256xbf16>
    %cst_8 = arith.constant dense<0.000000e+00> : vector<8x256xf32>
    %12 = tpu.matmul %10, %11, %cst_8 {dimension_numbers = #tpu.dot_dimension_numbers<[1], [0], [0], [1], [0, 0, 1, 1], [], []>} : vector<8x128xbf16>, vector<128x256xbf16>, vector<8x256xf32> -> vector<8x256xf32>
    %c0_9 = arith.constant 0 : index
    %c128 = arith.constant 128 : index
    %13 = vector.load %arg6[%c0_9, %c128] : memref<1x3776xf32, #tpu.memory_space<vmem>>, vector<1x256xf32>
    %c0_10 = arith.constant 0 : index
    %c384 = arith.constant 384 : index
    %14 = vector.load %arg6[%c0_10, %c384] : memref<1x3776xf32, #tpu.memory_space<vmem>>, vector<1x256xf32>
    %cst_11 = arith.constant dense<0.000000e+00> : vector<256xf32>
    %15 = vector.multi_reduction <add>, %12, %cst_11 [0] : vector<8x256xf32> to vector<256xf32>
    %16 = vector.shape_cast %15 : vector<256xf32> to vector<1x256xf32>
    %cst_12 = arith.constant 8.000000e+00 : f32
    %17 = vector.broadcast %cst_12 : f32 to vector<1x256xf32>
    %18 = arith.divf %16, %17 : vector<1x256xf32>
    %19 = vector.broadcast %18 : vector<1x256xf32> to vector<8x256xf32>
    %20 = arith.subf %12, %19 : vector<8x256xf32>
    %21 = arith.mulf %20, %20 : vector<8x256xf32>
    %cst_13 = arith.constant dense<0.000000e+00> : vector<256xf32>
    %22 = vector.multi_reduction <add>, %21, %cst_13 [0] : vector<8x256xf32> to vector<256xf32>
    %23 = vector.shape_cast %22 : vector<256xf32> to vector<1x256xf32>
    %cst_14 = arith.constant 8.000000e+00 : f32
    %24 = vector.broadcast %cst_14 : f32 to vector<1x256xf32>
    %25 = arith.divf %23, %24 : vector<1x256xf32>
    %cst_15 = arith.constant 8.000000e-01 : f32
    %26 = vector.broadcast %cst_15 : f32 to vector<1x256xf32>
    %27 = arith.addf %25, %26 : vector<1x256xf32>
    %28 = math.rsqrt %27 : vector<1x256xf32>
    %29 = arith.mulf %13, %28 : vector<1x256xf32>
    %30 = vector.broadcast %29 : vector<1x256xf32> to vector<8x256xf32>
    %31 = arith.mulf %20, %30 : vector<8x256xf32>
    %32 = vector.broadcast %14 : vector<1x256xf32> to vector<8x256xf32>
    %33 = arith.addf %31, %32 : vector<8x256xf32>
    %cst_16 = arith.constant 2.000000e-01 : f32
    %34 = vector.broadcast %cst_16 : f32 to vector<8x256xf32>
    %35 = arith.mulf %34, %33 : vector<8x256xf32>
    %36 = arith.maximumf %33, %35 : vector<8x256xf32>
    %37 = arith.truncf %36 : vector<8x256xf32> to vector<8x256xbf16>
    %c0_17 = arith.constant 0 : index
    %c0_18 = arith.constant 0 : index
    %38 = vector.load %arg3[%c0_17, %c0_18] : memref<256x512xbf16, #tpu.memory_space<vmem>>, vector<256x512xbf16>
    %cst_19 = arith.constant dense<0.000000e+00> : vector<8x512xf32>
    %39 = tpu.matmul %37, %38, %cst_19 {dimension_numbers = #tpu.dot_dimension_numbers<[1], [0], [0], [1], [0, 0, 1, 1], [], []>} : vector<8x256xbf16>, vector<256x512xbf16>, vector<8x512xf32> -> vector<8x512xf32>
    %c0_20 = arith.constant 0 : index
    %c640 = arith.constant 640 : index
    %40 = vector.load %arg6[%c0_20, %c640] : memref<1x3776xf32, #tpu.memory_space<vmem>>, vector<1x512xf32>
    %c0_21 = arith.constant 0 : index
    %c1152 = arith.constant 1152 : index
    %41 = vector.load %arg6[%c0_21, %c1152] : memref<1x3776xf32, #tpu.memory_space<vmem>>, vector<1x512xf32>
    %cst_22 = arith.constant dense<0.000000e+00> : vector<512xf32>
    %42 = vector.multi_reduction <add>, %39, %cst_22 [0] : vector<8x512xf32> to vector<512xf32>
    %43 = vector.shape_cast %42 : vector<512xf32> to vector<1x512xf32>
    %cst_23 = arith.constant 8.000000e+00 : f32
    %44 = vector.broadcast %cst_23 : f32 to vector<1x512xf32>
    %45 = arith.divf %43, %44 : vector<1x512xf32>
    %46 = vector.broadcast %45 : vector<1x512xf32> to vector<8x512xf32>
    %47 = arith.subf %39, %46 : vector<8x512xf32>
    %48 = arith.mulf %47, %47 : vector<8x512xf32>
    %cst_24 = arith.constant dense<0.000000e+00> : vector<512xf32>
    %49 = vector.multi_reduction <add>, %48, %cst_24 [0] : vector<8x512xf32> to vector<512xf32>
    %50 = vector.shape_cast %49 : vector<512xf32> to vector<1x512xf32>
    %cst_25 = arith.constant 8.000000e+00 : f32
    %51 = vector.broadcast %cst_25 : f32 to vector<1x512xf32>
    %52 = arith.divf %50, %51 : vector<1x512xf32>
    %cst_26 = arith.constant 8.000000e-01 : f32
    %53 = vector.broadcast %cst_26 : f32 to vector<1x512xf32>
    %54 = arith.addf %52, %53 : vector<1x512xf32>
    %55 = math.rsqrt %54 : vector<1x512xf32>
    %56 = arith.mulf %40, %55 : vector<1x512xf32>
    %57 = vector.broadcast %56 : vector<1x512xf32> to vector<8x512xf32>
    %58 = arith.mulf %47, %57 : vector<8x512xf32>
    %59 = vector.broadcast %41 : vector<1x512xf32> to vector<8x512xf32>
    %60 = arith.addf %58, %59 : vector<8x512xf32>
    %cst_27 = arith.constant 2.000000e-01 : f32
    %61 = vector.broadcast %cst_27 : f32 to vector<8x512xf32>
    %62 = arith.mulf %61, %60 : vector<8x512xf32>
    %63 = arith.maximumf %60, %62 : vector<8x512xf32>
    %64 = arith.truncf %63 : vector<8x512xf32> to vector<8x512xbf16>
    %c0_28 = arith.constant 0 : index
    %c0_29 = arith.constant 0 : index
    %65 = vector.load %arg4[%c0_28, %c0_29] : memref<512x1024xbf16, #tpu.memory_space<vmem>>, vector<512x1024xbf16>
    %cst_30 = arith.constant dense<0.000000e+00> : vector<8x1024xf32>
    %66 = tpu.matmul %64, %65, %cst_30 {dimension_numbers = #tpu.dot_dimension_numbers<[1], [0], [0], [1], [0, 0, 1, 1], [], []>} : vector<8x512xbf16>, vector<512x1024xbf16>, vector<8x1024xf32> -> vector<8x1024xf32>
    %c0_31 = arith.constant 0 : index
    %c1664 = arith.constant 1664 : index
    %67 = vector.load %arg6[%c0_31, %c1664] : memref<1x3776xf32, #tpu.memory_space<vmem>>, vector<1x1024xf32>
    %c0_32 = arith.constant 0 : index
    %c2688 = arith.constant 2688 : index
    %68 = vector.load %arg6[%c0_32, %c2688] : memref<1x3776xf32, #tpu.memory_space<vmem>>, vector<1x1024xf32>
    %cst_33 = arith.constant dense<0.000000e+00> : vector<1024xf32>
    %69 = vector.multi_reduction <add>, %66, %cst_33 [0] : vector<8x1024xf32> to vector<1024xf32>
    %70 = vector.shape_cast %69 : vector<1024xf32> to vector<1x1024xf32>
    %cst_34 = arith.constant 8.000000e+00 : f32
    %71 = vector.broadcast %cst_34 : f32 to vector<1x1024xf32>
    %72 = arith.divf %70, %71 : vector<1x1024xf32>
    %73 = vector.broadcast %72 : vector<1x1024xf32> to vector<8x1024xf32>
    %74 = arith.subf %66, %73 : vector<8x1024xf32>
    %75 = arith.mulf %74, %74 : vector<8x1024xf32>
    %cst_35 = arith.constant dense<0.000000e+00> : vector<1024xf32>
    %76 = vector.multi_reduction <add>, %75, %cst_35 [0] : vector<8x1024xf32> to vector<1024xf32>
    %77 = vector.shape_cast %76 : vector<1024xf32> to vector<1x1024xf32>
    %cst_36 = arith.constant 8.000000e+00 : f32
    %78 = vector.broadcast %cst_36 : f32 to vector<1x1024xf32>
    %79 = arith.divf %77, %78 : vector<1x1024xf32>
    %cst_37 = arith.constant 8.000000e-01 : f32
    %80 = vector.broadcast %cst_37 : f32 to vector<1x1024xf32>
    %81 = arith.addf %79, %80 : vector<1x1024xf32>
    %82 = math.rsqrt %81 : vector<1x1024xf32>
    %83 = arith.mulf %67, %82 : vector<1x1024xf32>
    %84 = vector.broadcast %83 : vector<1x1024xf32> to vector<8x1024xf32>
    %85 = arith.mulf %74, %84 : vector<8x1024xf32>
    %86 = vector.broadcast %68 : vector<1x1024xf32> to vector<8x1024xf32>
    %87 = arith.addf %85, %86 : vector<8x1024xf32>
    %cst_38 = arith.constant 2.000000e-01 : f32
    %88 = vector.broadcast %cst_38 : f32 to vector<8x1024xf32>
    %89 = arith.mulf %88, %87 : vector<8x1024xf32>
    %90 = arith.maximumf %87, %89 : vector<8x1024xf32>
    %91 = arith.truncf %90 : vector<8x1024xf32> to vector<8x1024xbf16>
    %c0_39 = arith.constant 0 : index
    %c0_40 = arith.constant 0 : index
    %92 = vector.load %arg5[%c0_39, %c0_40] : memref<1024x64xbf16, #tpu.memory_space<vmem>>, vector<1024x64xbf16>
    %cst_41 = arith.constant dense<0.000000e+00> : vector<8x64xf32>
    %93 = tpu.matmul %91, %92, %cst_41 {dimension_numbers = #tpu.dot_dimension_numbers<[1], [0], [0], [1], [0, 0, 1, 1], [], []>} : vector<8x1024xbf16>, vector<1024x64xbf16>, vector<8x64xf32> -> vector<8x64xf32>
    %c0_42 = arith.constant 0 : index
    %c3712 = arith.constant 3712 : index
    %94 = vector.load %arg6[%c0_42, %c3712] : memref<1x3776xf32, #tpu.memory_space<vmem>>, vector<1x64xf32>
    %95 = vector.broadcast %94 : vector<1x64xf32> to vector<8x64xf32>
    %96 = arith.addf %93, %95 : vector<8x64xf32>
    %97 = math.tanh %96 : vector<8x64xf32>
    %c0_43 = arith.constant 0 : index
    %c0_44 = arith.constant 0 : index
    %98 = vector.load %arg7[%c0_43, %c0_44] : memref<8x64xf32, #tpu.memory_space<vmem>>, vector<8x64xf32>
    tpu.vector_store %arg7[%c0_43, %c0_44], %97 {strides = array<i32>} : memref<8x64xf32, #tpu.memory_space<vmem>>, vector<8x64xf32>,
    return
  }
}

</mosaic_0001>

<llo_original>
// kernel: tpu_custom_call.1
$region0: #{tpu_custom_call.1}
  #allocation0 [shape = 'u32[]', space=smem, size = 0x4, offset = 0x4, fixed_abs, tag = 'smem constant byte address 0x4 - core index']
  #allocation1 [shape = 'u32[144,128]{1,0:T(1,128)}', space=vmem, size = 0x12000, scoped, tag = 'internal scratch']
  %s0 = inlined_call_operand.vmem [shape: f32[8,32], index: 0, kind: input, shape index: {}]
  %s1 = inlined_call_operand.vmem [shape: bf16[32,128], index: 1, kind: input, shape index: {}]
  %s2 = inlined_call_operand.vmem [shape: bf16[128,256], index: 2, kind: input, shape index: {}]
  %s3 = inlined_call_operand.vmem [shape: bf16[256,512], index: 3, kind: input, shape index: {}]
  %s4 = inlined_call_operand.hbm [shape: bf16[512,1024], index: 4, kind: input, shape index: {}]
  %s5 = inlined_call_operand.vmem [shape: bf16[1024,64], index: 5, kind: input, shape index: {}]
  %s6 = inlined_call_operand.vmem [shape: f32[1,3776], index: 6, kind: input, shape index: {}]
  %s7 = inlined_call_operand.hbm [shape: f32[8,64], index: 7, kind: output, shape index: {}]
  %s8 = sld [smem:[#allocation0]]
  $region42: #{tpu_custom_call.1} parent=0
    _
  %s10 = ssub.s32 1, %s8
  %s11 = scalar_select 0, %s10, %s8
  $region1: #{tpu_custom_call.1} parent=0
    #allocation2 [shape = 'u8[1048576]{0}', space=vmem, size = 0x100000, scoped, tag = 'input window, operand 4, single buffered']
    #allocation3 [shape = 's32[1]{0}', space=sflag, size = 0x4, scoped, tag = 'scoped memory for tpu_custom_call.1']
    #allocation4 [shape = 's32[1]{0}', space=sflag, size = 0x4, scoped, tag = 'scoped memory for tpu_custom_call.1']
    #allocation5 [shape = 'u8[4096]{0}', space=vmem, size = 0x1000, scoped, tag = 'output window, operand 0, single buffered']
    %12 = vsyncpa [#allocation3], 0
    %13 = vsyncpa [#allocation4], 0
    // Predicated region
    $region2: #{tpu_custom_call.1} parent=1 // pred_check
      _
    $region3: #{tpu_custom_call.1} parent=1 // pred_check_branch
      %15 = sbr.rel (0) target = $region5
    $region4: #{tpu_custom_call.1} parent=1 // pred_region
      _
    $region5: #{tpu_custom_call.1} parent=1 // pred_fallthru
      _
    // Predicated region
    $region6: #{tpu_custom_call.1} parent=1 // pred_check
      _
    $region7: #{tpu_custom_call.1} parent=1 // pred_check_branch
      %17 = sbr.rel (0) target = $region9
    $region8: #{tpu_custom_call.1} parent=1 // pred_region
      _
    $region9: #{tpu_custom_call.1} parent=1 // pred_fallthru
      _
    // Predicated region
    $region10: #{tpu_custom_call.1} parent=1 // pred_check
      _
    $region11: #{tpu_custom_call.1} parent=1 // pred_check_branch
      %19 = sbr.rel (0) target = $region13
    $region12: #{tpu_custom_call.1} parent=1 // pred_region
      _
    $region13: #{tpu_custom_call.1} parent=1 // pred_fallthru
      _
    // Predicated region
    $region14: #{tpu_custom_call.1} parent=1 // pred_check
      _
    $region15: #{tpu_custom_call.1} parent=1 // pred_check_branch
      %21 = sbr.rel (0) target = $region17
    $region16: #{tpu_custom_call.1} parent=1 // pred_region
      _
    $region17: #{tpu_custom_call.1} parent=1 // pred_fallthru
      _
    // Predicated region
    $region18: #{tpu_custom_call.1} parent=1 // pred_check
      _
    $region19: #{tpu_custom_call.1} parent=1 // pred_check_branch
      %23 = sbr.rel (0) target = $region21
    $region20: #{tpu_custom_call.1} parent=1 // pred_region
      %s25 = ssub.s32 32768, 32768
      %26 = vsyncadd [#allocation3], %s25
      %s27 = sshll.u32 [#allocation2], 4
      %s28 = int_to_ptr.vmem [resolvable:$true] %s27
      %33 = dma.hbm_to_vmem [thread:$0]  %s4, 32768, %s28, [#allocation3], 512, 512, 32
    $region21: #{tpu_custom_call.1} parent=1 // pred_fallthru
      _
    // Predicated region
    $region22: #{tpu_custom_call.1} parent=1 // pred_check
      _
    $region23: #{tpu_custom_call.1} parent=1 // pred_check_branch
      %35 = sbr.rel (0) target = $region25
    $region24: #{tpu_custom_call.1} parent=1 // pred_region
      _
    $region25: #{tpu_custom_call.1} parent=1 // pred_fallthru
      _
    // Predicated region
    $region26: #{tpu_custom_call.1} parent=1 // pred_check
      _
    $region27: #{tpu_custom_call.1} parent=1 // pred_check_branch
      %37 = sbr.rel (0) target = $region29
    $region28: #{tpu_custom_call.1} parent=1 // pred_region
      _
    $region29: #{tpu_custom_call.1} parent=1 // pred_fallthru
      _
    // Predicated region
    $region30: #{tpu_custom_call.1} parent=1 // pred_check
      _
    $region31: #{tpu_custom_call.1} parent=1 // pred_check_branch
      %39 = sbr.rel (0) target = $region33
    $region32: #{tpu_custom_call.1} parent=1 // pred_region
      %40 = dma.done [#allocation3], 32768
    $region33: #{tpu_custom_call.1} parent=1 // pred_fallthru
      _
    %v42 = vld [vmem:[%s0] sm:$0xff]
    %v43 = vpack.c.bf16 %v42, %v42
    %v44 = vld [vmem:[%s1] sm:$0xf]
    %v45 = vld [vmem:[%s1 + $0x4] sm:$0xf]
    %v46 = vld [vmem:[%s1 + $0x8] sm:$0xf]
    %v47 = vld [vmem:[%s1 + $0xc] sm:$0xf]
    %v48 = vld [vmem:[%s6] sm:$0x1]
    %v50 = vlaneseq
    %v51 = vshrl.u32 %v50, 7
    %v52 = vsub.s32 0, %v51
    %v53 = vrot.slane %v48, %v52
    %v59 = vunpack.c.l.b16 %v44
    %v60 = vunpack.c.l.b16 %v45
    %v61 = vunpack.c.l.b16 %v46
    %v62 = vunpack.c.l.b16 %v47
    %v63 = vpack.c.b16 %v60, %v59
    %v64 = vpack.c.b16 %v62, %v61
    %vm67 = vcmask 261120
    %v69 = vsel %vm67, %v43, 0
    %71 = vmatprep.subr.bf16.mxu0 0
    %72 = vmatpush1.bf16.msra.mxu0 0
    %73 = vmatprep.subr.bf16.mxu0 0
    %74 = vmatpush1.bf16.msra.mxu0 0
    %75 = vmatprep.subr.bf16.mxu0 0
    %76 = vmatpush1.bf16.msra.mxu0 0
    %77 = vmatprep.subr.bf16.mxu0 0
    %78 = vmatpush1.bf16.msra.mxu0 0
    %79 = vmatprep.subr.bf16.mxu0 0
    %80 = vmatpush1.bf16.msra.mxu0 0
    %81 = vmatprep.subr.bf16.mxu0 0
    %82 = vmatpush1.bf16.msra.mxu0 0
    %83 = vmatprep.subr.bf16.mxu0 0
    %84 = vmatpush1.bf16.msra.mxu0 %v64
    %85 = vmatprep.subr.bf16.mxu0 0
    %86 = vmatpush1.bf16.msra.mxu0 %v63
    %87 = vmatprep.subr.bf16.mxu0 0
    %88 = vmatpush2.bf16.msra.mxu0 0
    %89 = vmatprep.subr.bf16.mxu0 0
    %90 = vmatpush2.bf16.msra.mxu0 0
    %91 = vmatprep.subr.bf16.mxu0 0
    %92 = vmatpush2.bf16.msra.mxu0 0
    %93 = vmatprep.subr.bf16.mxu0 0
    %94 = vmatpush2.bf16.msra.mxu0 0
    %95 = vmatprep.subr.bf16.mxu0 0
    %96 = vmatpush2.bf16.msra.mxu0 0
    %97 = vmatprep.subr.bf16.mxu0 0
    %98 = vmatpush2.bf16.msra.mxu0 0
    %99 = vmatprep.subr.bf16.mxu0 0
    %100 = vmatpush2.bf16.msra.mxu0 0
    %101 = vmatprep.subr.bf16.mxu0 0
    %102 = vmatpush2.bf16.msra.mxu0 0
    %103 = vmatprep.mubr.bf16.mxu0 0
    %104 = vmatmul.mubr.bf16.gmra.mxu0 %v69
    %v105 = vpop.f32.mrf.mxu0
    %v106 = vadd.f32 %v53, %v105
    %v107 = vpop.f32.mrf.mxu0
    %v108 = vpop.f32.mrf.mxu0
    %v109 = vpop.f32.mrf.mxu0
    %110 = vdwg.mxu0
    %v111 = vmul.f32 %v106, 0.2
    %v112 = vmax.f32 %v106, %v111
    %v113 = vpack.c.bf16 %v112, %v112
    %v114 = vld [vmem:[%s2] sm:$0xff]
    %v115 = vld [vmem:[%s2 + $0x8] sm:$0xff]
    %v116 = vld [vmem:[%s2 + $0x10] sm:$0xff]
    %v117 = vld [vmem:[%s2 + $0x18] sm:$0xff]
    %v118 = vld [vmem:[%s2 + $0x20] sm:$0xff]
    %v119 = vld [vmem:[%s2 + $0x28] sm:$0xff]
    %v120 = vld [vmem:[%s2 + $0x30] sm:$0xff]
    %v121 = vld [vmem:[%s2 + $0x38] sm:$0xff]
    %v122 = vld [vmem:[%s2 + $0x40] sm:$0xff]
    %v123 = vld [vmem:[%s2 + $0x48] sm:$0xff]
    %v124 = vld [vmem:[%s2 + $0x50] sm:$0xff]
    %v125 = vld [vmem:[%s2 + $0x58] sm:$0xff]
    %v126 = vld [vmem:[%s2 + $0x60] sm:$0xff]
    %v127 = vld [vmem:[%s2 + $0x68] sm:$0xff]
    %v128 = vld [vmem:[%s2 + $0x70] sm:$0xff]
    %v129 = vld [vmem:[%s2 + $0x78] sm:$0xff]
    %v146 = vunpack.c.l.b16 %v114
    %v147 = vunpack.c.h.b16 %v114
    %v148 = vunpack.c.l.b16 %v115
    %v149 = vunpack.c.h.b16 %v115
    %v150 = vunpack.c.l.b16 %v116
    %v151 = vunpack.c.h.b16 %v116
    %v152 = vunpack.c.l.b16 %v117
    %v153 = vunpack.c.h.b16 %v117
    %v154 = vunpack.c.l.b16 %v118
    %v155 = vunpack.c.h.b16 %v118
    %v156 = vunpack.c.l.b16 %v119
    %v157 = vunpack.c.h.b16 %v119
    %v158 = vunpack.c.l.b16 %v120
    %v159 = vunpack.c.h.b16 %v120
    %v160 = vunpack.c.l.b16 %v121
    %v161 = vunpack.c.h.b16 %v121
    %v162 = vunpack.c.l.b16 %v122
    %v163 = vunpack.c.h.b16 %v122
    %v164 = vunpack.c.l.b16 %v123
    %v165 = vunpack.c.h.b16 %v123
    %v166 = vunpack.c.l.b16 %v124
    %v167 = vunpack.c.h.b16 %v124
    %v168 = vunpack.c.l.b16 %v125
    %v169 = vunpack.c.h.b16 %v125
    %v170 = vunpack.c.l.b16 %v126
    %v171 = vunpack.c.h.b16 %v126
    %v172 = vunpack.c.l.b16 %v127
    %v173 = vunpack.c.h.b16 %v127
    %v174 = vunpack.c.l.b16 %v128
    %v175 = vunpack.c.h.b16 %v128
    %v176 = vunpack.c.l.b16 %v129
    %v177 = vunpack.c.h.b16 %v129
    %v178 = vpack.c.b16 %v148, %v146
    %v179 = vpack.c.b16 %v149, %v147
    %v180 = vpack.c.b16 %v152, %v150
    %v181 = vpack.c.b16 %v153, %v151
    %v182 = vpack.c.b16 %v156, %v154
    %v183 = vpack.c.b16 %v157, %v155
    %v184 = vpack.c.b16 %v160, %v158
    %v185 = vpack.c.b16 %v161, %v159
    %v186 = vpack.c.b16 %v164, %v162
    %v187 = vpack.c.b16 %v165, %v163
    %v188 = vpack.c.b16 %v168, %v166
    %v189 = vpack.c.b16 %v169, %v167
    %v190 = vpack.c.b16 %v172, %v170
    %v191 = vpack.c.b16 %v173, %v171
    %v192 = vpack.c.b16 %v176, %v174
    %v193 = vpack.c.b16 %v177, %v175
    %210 = vmatprep.subr.bf16.mxu0 %v193
    %211 = vmatpush1.bf16.msra.mxu0 %v192
    %212 = vmatprep.subr.bf16.mxu0 %v191
    %213 = vmatpush1.bf16.msra.mxu0 %v190
    %214 = vmatprep.subr.bf16.mxu0 %v189
    %215 = vmatpush1.bf16.msra.mxu0 %v188
    %216 = vmatprep.subr.bf16.mxu0 %v187
    %217 = vmatpush1.bf16.msra.mxu0 %v186
    %218 = vmatprep.subr.bf16.mxu0 %v185
    %219 = vmatpush1.bf16.msra.mxu0 %v184
    %220 = vmatprep.subr.bf16.mxu0 %v183
    %221 = vmatpush1.bf16.msra.mxu0 %v182
    %222 = vmatprep.subr.bf16.mxu0 %v181
    %223 = vmatpush1.bf16.msra.mxu0 %v180
    %224 = vmatprep.subr.bf16.mxu0 %v179
    %225 = vmatpush1.bf16.msra.mxu0 %v178
    %226 = vmatprep.subr.bf16.mxu0 0
    %227 = vmatpush2.bf16.msra.mxu0 0
    %228 = vmatprep.subr.bf16.mxu0 0
    %229 = vmatpush2.bf16.msra.mxu0 0
    %230 = vmatprep.subr.bf16.mxu0 0
    %231 = vmatpush2.bf16.msra.mxu0 0
    %232 = vmatprep.subr.bf16.mxu0 0
    %233 = vmatpush2.bf16.msra.mxu0 0
    %234 = vmatprep.subr.bf16.mxu0 0
    %235 = vmatpush2.bf16.msra.mxu0 0
    %236 = vmatprep.subr.bf16.mxu0 0
    %237 = vmatpush2.bf16.msra.mxu0 0
    %238 = vmatprep.subr.bf16.mxu0 0
    %239 = vmatpush2.bf16.msra.mxu0 0
    %240 = vmatprep.subr.bf16.mxu0 0
    %241 = vmatpush2.bf16.msra.mxu0 0
    %242 = vmatprep.mubr.bf16.mxu0 0
    %243 = vmatmul.mubr.bf16.gmra.mxu0 %v113
    %v244 = vpop.f32.mrf.mxu0
    %v245 = vadd.f32 0.0, %v244
    %v246 = vpop.f32.mrf.mxu0
    %v247 = vadd.f32 0.0, %v246
    %v248 = vpop.f32.mrf.mxu0
    %v249 = vpop.f32.mrf.mxu0
    %250 = vdwg.mxu0
    %v251 = vld [vmem:[%s6 + $0x1] sm:$0x3]
    %v252 = vld [vmem:[%s6 + $0x3] sm:$0x3]
    %v253 = vrot.slane %v245, 4
    %v254 = vadd.f32 %v245, %v253
    %v255 = vrot.slane %v254, 2
    %v256 = vadd.f32 %v254, %v255
    %v257 = vrot.slane %v256, 1
    %v258 = vadd.f32 %v256, %v257
    %v259 = vrot.slane %v247, 4
    %v260 = vadd.f32 %v247, %v259
    %v261 = vrot.slane %v260, 2
    %v262 = vadd.f32 %v260, %v261
    %v263 = vrot.slane %v262, 1
    %v264 = vadd.f32 %v262, %v263
    %v265 = vrcp.pop 8.0
    %v266 = vmul.f32 %v258, %v265
    %v267 = vmul.f32 %v264, %v265
    %v268 = vsub.f32 %v245, %v266
    %v269 = vsub.f32 %v247, %v267
    %v270 = vmul.f32 %v268, %v268
    %v271 = vmul.f32 %v269, %v269
    %v272 = vrot.slane %v270, 4
    %v273 = vadd.f32 %v270, %v272
    %v274 = vrot.slane %v273, 2
    %v275 = vadd.f32 %v273, %v274
    %v276 = vrot.slane %v275, 1
    %v277 = vadd.f32 %v275, %v276
    %v278 = vrot.slane %v271, 4
    %v279 = vadd.f32 %v271, %v278
    %v280 = vrot.slane %v279, 2
    %v281 = vadd.f32 %v279, %v280
    %v282 = vrot.slane %v281, 1
    %v283 = vadd.f32 %v281, %v282
    %v284 = vmul.f32 %v277, %v265
    %v285 = vmul.f32 %v283, %v265
    %v286 = vadd.f32 %v284, 0.8
    %v287 = vadd.f32 %v285, 0.8
    %v288 = vrsqrt.pop %v286
    %v289 = vrsqrt.pop %v287
    %v292 = vcombine.low %v288, %v289
    %v294 = vunpack.c.l.s4 1966171168
    %v295 = vunpack.c.0.s8 %v294
    %v296 = vlaneseq
    %v297 = vshrl.u32 %v296, 7
    %v298 = vsub.s32 %v295, %v297
    %v299 = vrot.slane %v292, %v298
    %v301 = vunpack.c.l.s4 1966171168
    %v302 = vunpack.c.0.s8 %v301
    %v303 = vlaneseq
    %v304 = vshrl.u32 %v303, 7
    %v305 = vsub.s32 %v302, %v304
    %v306 = vrot.slane %v299, %v305
    %v308 = vmul.f32 %v251, %v306
    %v310 = vlaneseq
    %v311 = vshrl.u32 %v310, 7
    %v312 = vsub.s32 0, %v311
    %v313 = vrot.slane %v308, %v312
    %v314 = vlaneseq
    %v315 = vshrl.u32 %v314, 7
    %v316 = vsub.s32 1, %v315
    %v317 = vrot.slane %v308, %v316
    %v320 = vmul.f32 %v268, %v313
    %v321 = vmul.f32 %v269, %v317
    %v323 = vlaneseq
    %v324 = vshrl.u32 %v323, 7
    %v325 = vsub.s32 0, %v324
    %v326 = vrot.slane %v252, %v325
    %v327 = vlaneseq
    %v328 = vshrl.u32 %v327, 7
    %v329 = vsub.s32 1, %v328
    %v330 = vrot.slane %v252, %v329
    %v333 = vadd.f32 %v320, %v326
    %v334 = vadd.f32 %v321, %v330
    %v335 = vmul.f32 %v333, 0.2
    %v336 = vmul.f32 %v334, 0.2
    %v337 = vmax.f32 %v333, %v335
    %v338 = vmax.f32 %v334, %v336
    %v339 = vpack.c.bf16 %v337, %v337
    %v340 = vpack.c.bf16 %v338, %v338
    %v341 = vld [vmem:[%s3] sm:$0xff]
    %v342 = vld [vmem:[%s3 + $0x8] sm:$0xff]
    %v343 = vld [vmem:[%s3 + $0x10] sm:$0xff]
    %v344 = vld [vmem:[%s3 + $0x18] sm:$0xff]
    %v345 = vld [vmem:[%s3 + $0x20] sm:$0xff]
    %v346 = vld [vmem:[%s3 + $0x28] sm:$0xff]
    %v347 = vld [vmem:[%s3 + $0x30] sm:$0xff]
    %v348 = vld [vmem:[%s3 + $0x38] sm:$0xff]
    %v349 = vld [vmem:[%s3 + $0x40] sm:$0xff]
    %v350 = vld [vmem:[%s3 + $0x48] sm:$0xff]
    %v351 = vld [vmem:[%s3 + $0x50] sm:$0xff]
    %v352 = vld [vmem:[%s3 + $0x58] sm:$0xff]
    %v353 = vld [vmem:[%s3 + $0x60] sm:$0xff]
    %v354 = vld [vmem:[%s3 + $0x68] sm:$0xff]
    %v355 = vld [vmem:[%s3 + $0x70] sm:$0xff]
    %v356 = vld [vmem:[%s3 + $0x78] sm:$0xff]
    %v357 = vld [vmem:[%s3 + $0x80] sm:$0xff]
    %v358 = vld [vmem:[%s3 + $0x88] sm:$0xff]
    %v359 = vld [vmem:[%s3 + $0x90] sm:$0xff]
    %v360 = vld [vmem:[%s3 + $0x98] sm:$0xff]
    %v361 = vld [vmem:[%s3 + $0xa0] sm:$0xff]
    %v362 = vld [vmem:[%s3 + $0xa8] sm:$0xff]
    %v363 = vld [vmem:[%s3 + $0xb0] sm:$0xff]
    %v364 = vld [vmem:[%s3 + $0xb8] sm:$0xff]
    %v365 = vld [vmem:[%s3 + $0xc0] sm:$0xff]
    %v366 = vld [vmem:[%s3 + $0xc8] sm:$0xff]
    %v367 = vld [vmem:[%s3 + $0xd0] sm:$0xff]
    %v368 = vld [vmem:[%s3 + $0xd8] sm:$0xff]
    %v369 = vld [vmem:[%s3 + $0xe0] sm:$0xff]
    %v370 = vld [vmem:[%s3 + $0xe8] sm:$0xff]
    %v371 = vld [vmem:[%s3 + $0xf0] sm:$0xff]
    %v372 = vld [vmem:[%s3 + $0xf8] sm:$0xff]
    %v373 = vld [vmem:[%s3 + $0x100] sm:$0xff]
    %v374 = vld [vmem:[%s3 + $0x108] sm:$0xff]
    %v375 = vld [vmem:[%s3 + $0x110] sm:$0xff]
    %v376 = vld [vmem:[%s3 + $0x118] sm:$0xff]
    %v377 = vld [vmem:[%s3 + $0x120] sm:$0xff]
    %v378 = vld [vmem:[%s3 + $0x128] sm:$0xff]
    %v379 = vld [vmem:[%s3 + $0x130] sm:$0xff]
    %v380 = vld [vmem:[%s3 + $0x138] sm:$0xff]
    %v381 = vld [vmem:[%s3 + $0x140] sm:$0xff]
    %v382 = vld [vmem:[%s3 + $0x148] sm:$0xff]
    %v383 = vld [vmem:[%s3 + $0x150] sm:$0xff]
    %v384 = vld [vmem:[%s3 + $0x158] sm:$0xff]
    %v385 = vld [vmem:[%s3 + $0x160] sm:$0xff]
    %v386 = vld [vmem:[%s3 + $0x168] sm:$0xff]
    %v387 = vld [vmem:[%s3 + $0x170] sm:$0xff]
    %v388 = vld [vmem:[%s3 + $0x178] sm:$0xff]
    %v389 = vld [vmem:[%s3 + $0x180] sm:$0xff]
    %v390 = vld [vmem:[%s3 + $0x188] sm:$0xff]
    %v391 = vld [vmem:[%s3 + $0x190] sm:$0xff]
    %v392 = vld [vmem:[%s3 + $0x198] sm:$0xff]
    %v393 = vld [vmem:[%s3 + $0x1a0] sm:$0xff]
    %v394 = vld [vmem:[%s3 + $0x1a8] sm:$0xff]
    %v395 = vld [vmem:[%s3 + $0x1b0] sm:$0xff]
    %v396 = vld [vmem:[%s3 + $0x1b8] sm:$0xff]
    %v397 = vld [vmem:[%s3 + $0x1c0] sm:$0xff]
    %v398 = vld [vmem:[%s3 + $0x1c8] sm:$0xff]
    %v399 = vld [vmem:[%s3 + $0x1d0] sm:$0xff]
    %v400 = vld [vmem:[%s3 + $0x1d8] sm:$0xff]
    %v401 = vld [vmem:[%s3 + $0x1e0] sm:$0xff]
    %v402 = vld [vmem:[%s3 + $0x1e8] sm:$0xff]
    %v403 = vld [vmem:[%s3 + $0x1f0] sm:$0xff]
    %v404 = vld [vmem:[%s3 + $0x1f8] sm:$0xff]
    %v469 = vunpack.c.l.b16 %v341
    %v470 = vunpack.c.h.b16 %v341
    %v471 = vunpack.c.l.b16 %v342
    %v472 = vunpack.c.h.b16 %v342
    %v473 = vunpack.c.l.b16 %v343
    %v474 = vunpack.c.h.b16 %v343
    %v475 = vunpack.c.l.b16 %v344
    %v476 = vunpack.c.h.b16 %v344
    %v477 = vunpack.c.l.b16 %v345
    %v478 = vunpack.c.h.b16 %v345
    %v479 = vunpack.c.l.b16 %v346
    %v480 = vunpack.c.h.b16 %v346
    %v481 = vunpack.c.l.b16 %v347
    %v482 = vunpack.c.h.b16 %v347
    %v483 = vunpack.c.l.b16 %v348
    %v484 = vunpack.c.h.b16 %v348
    %v485 = vunpack.c.l.b16 %v349
    %v486 = vunpack.c.h.b16 %v349
    %v487 = vunpack.c.l.b16 %v350
    %v488 = vunpack.c.h.b16 %v350
    %v489 = vunpack.c.l.b16 %v351
    %v490 = vunpack.c.h.b16 %v351
    %v491 = vunpack.c.l.b16 %v352
    %v492 = vunpack.c.h.b16 %v352
    %v493 = vunpack.c.l.b16 %v353
    %v494 = vunpack.c.h.b16 %v353
    %v495 = vunpack.c.l.b16 %v354
    %v496 = vunpack.c.h.b16 %v354
    %v497 = vunpack.c.l.b16 %v355
    %v498 = vunpack.c.h.b16 %v355
    %v499 = vunpack.c.l.b16 %v356
    %v500 = vunpack.c.h.b16 %v356
    %v501 = vunpack.c.l.b16 %v357
    %v502 = vunpack.c.h.b16 %v357
    %v503 = vunpack.c.l.b16 %v358
    %v504 = vunpack.c.h.b16 %v358
    %v505 = vunpack.c.l.b16 %v359
    %v506 = vunpack.c.h.b16 %v359
    %v507 = vunpack.c.l.b16 %v360
    %v508 = vunpack.c.h.b16 %v360
    %v509 = vunpack.c.l.b16 %v361
    %v510 = vunpack.c.h.b16 %v361
    %v511 = vunpack.c.l.b16 %v362
    %v512 = vunpack.c.h.b16 %v362
    %v513 = vunpack.c.l.b16 %v363
    %v514 = vunpack.c.h.b16 %v363
    %v515 = vunpack.c.l.b16 %v364
    %v516 = vunpack.c.h.b16 %v364
    %v517 = vunpack.c.l.b16 %v365
    %v518 = vunpack.c.h.b16 %v365
    %v519 = vunpack.c.l.b16 %v366
    %v520 = vunpack.c.h.b16 %v366
    %v521 = vunpack.c.l.b16 %v367
    %v522 = vunpack.c.h.b16 %v367
    %v523 = vunpack.c.l.b16 %v368
    %v524 = vunpack.c.h.b16 %v368
    %v525 = vunpack.c.l.b16 %v369
    %v526 = vunpack.c.h.b16 %v369
    %v527 = vunpack.c.l.b16 %v370
    %v528 = vunpack.c.h.b16 %v370
    %v529 = vunpack.c.l.b16 %v371
    %v530 = vunpack.c.h.b16 %v371
    %v531 = vunpack.c.l.b16 %v372
    %v532 = vunpack.c.h.b16 %v372
    %v533 = vunpack.c.l.b16 %v373
    %v534 = vunpack.c.h.b16 %v373
    %v535 = vunpack.c.l.b16 %v374
    %v536 = vunpack.c.h.b16 %v374
    %v537 = vunpack.c.l.b16 %v375
    %v538 = vunpack.c.h.b16 %v375
    %v539 = vunpack.c.l.b16 %v376
    %v540 = vunpack.c.h.b16 %v376
    %v541 = vunpack.c.l.b16 %v377
    %v542 = vunpack.c.h.b16 %v377
    %v543 = vunpack.c.l.b16 %v378
    %v544 = vunpack.c.h.b16 %v378
    %v545 = vunpack.c.l.b16 %v379
    %v546 = vunpack.c.h.b16 %v379
    %v547 = vunpack.c.l.b16 %v380
    %v548 = vunpack.c.h.b16 %v380
    %v549 = vunpack.c.l.b16 %v381
    %v550 = vunpack.c.h.b16 %v381
    %v551 = vunpack.c.l.b16 %v382
    %v552 = vunpack.c.h.b16 %v382
    %v553 = vunpack.c.l.b16 %v383
    %v554 = vunpack.c.h.b16 %v383
    %v555 = vunpack.c.l.b16 %v384
    %v556 = vunpack.c.h.b16 %v384
    %v557 = vunpack.c.l.b16 %v385
    %v558 = vunpack.c.h.b16 %v385
    %v559 = vunpack.c.l.b16 %v386
    %v560 = vunpack.c.h.b16 %v386
    %v561 = vunpack.c.l.b16 %v387
    %v562 = vunpack.c.h.b16 %v387
    %v563 = vunpack.c.l.b16 %v388
    %v564 = vunpack.c.h.b16 %v388
    %v565 = vunpack.c.l.b16 %v389
    %v566 = vunpack.c.h.b16 %v389
    %v567 = vunpack.c.l.b16 %v390
    %v568 = vunpack.c.h.b16 %v390
    %v569 = vunpack.c.l.b16 %v391
    %v570 = vunpack.c.h.b16 %v391
    %v571 = vunpack.c.l.b16 %v392
    %v572 = vunpack.c.h.b16 %v392
    %v573 = vunpack.c.l.b16 %v393
    %v574 = vunpack.c.h.b16 %v393
    %v575 = vunpack.c.l.b16 %v394
    %v576 = vunpack.c.h.b16 %v394
    %v577 = vunpack.c.l.b16 %v395
    %v578 = vunpack.c.h.b16 %v395
    %v579 = vunpack.c.l.b16 %v396
    %v580 = vunpack.c.h.b16 %v396
    %v581 = vunpack.c.l.b16 %v397
    %v582 = vunpack.c.h.b16 %v397
    %v583 = vunpack.c.l.b16 %v398
    %v584 = vunpack.c.h.b16 %v398
    %v585 = vunpack.c.l.b16 %v399
    %v586 = vunpack.c.h.b16 %v399
    %v587 = vunpack.c.l.b16 %v400
    %v588 = vunpack.c.h.b16 %v400
    %v589 = vunpack.c.l.b16 %v401
    %v590 = vunpack.c.h.b16 %v401
    %v591 = vunpack.c.l.b16 %v402
    %v592 = vunpack.c.h.b16 %v402
    %v593 = vunpack.c.l.b16 %v403
    %v594 = vunpack.c.h.b16 %v403
    %v595 = vunpack.c.l.b16 %v404
    %v596 = vunpack.c.h.b16 %v404
    %v597 = vpack.c.b16 %v473, %v469
    %v598 = vpack.c.b16 %v474, %v470
    %v599 = vpack.c.b16 %v475, %v471
    %v600 = vpack.c.b16 %v476, %v472
    %v601 = vpack.c.b16 %v481, %v477
    %v602 = vpack.c.b16 %v482, %v478
    %v603 = vpack.c.b16 %v483, %v479
    %v604 = vpack.c.b16 %v484, %v480
    %v605 = vpack.c.b16 %v489, %v485
    %v606 = vpack.c.b16 %v490, %v486
    %v607 = vpack.c.b16 %v491, %v487
    %v608 = vpack.c.b16 %v492, %v488
    %v609 = vpack.c.b16 %v497, %v493
    %v610 = vpack.c.b16 %v498, %v494
    %v611 = vpack.c.b16 %v499, %v495
    %v612 = vpack.c.b16 %v500, %v496
    %v613 = vpack.c.b16 %v505, %v501
    %v614 = vpack.c.b16 %v506, %v502
    %v615 = vpack.c.b16 %v507, %v503
    %v616 = vpack.c.b16 %v508, %v504
    %v617 = vpack.c.b16 %v513, %v509
    %v618 = vpack.c.b16 %v514, %v510
    %v619 = vpack.c.b16 %v515, %v511
    %v620 = vpack.c.b16 %v516, %v512
    %v621 = vpack.c.b16 %v521, %v517
    %v622 = vpack.c.b16 %v522, %v518
    %v623 = vpack.c.b16 %v523, %v519
    %v624 = vpack.c.b16 %v524, %v520
    %v625 = vpack.c.b16 %v529, %v525
    %v626 = vpack.c.b16 %v530, %v526
    %v627 = vpack.c.b16 %v531, %v527
    %v628 = vpack.c.b16 %v532, %v528
    %v629 = vpack.c.b16 %v537, %v533
    %v630 = vpack.c.b16 %v538, %v534
    %v631 = vpack.c.b16 %v539, %v535
    %v632 = vpack.c.b16 %v540, %v536
    %v633 = vpack.c.b16 %v545, %v541
    %v634 = vpack.c.b16 %v546, %v542
    %v635 = vpack.c.b16 %v547, %v543
    %v636 = vpack.c.b16 %v548, %v544
    %v637 = vpack.c.b16 %v553, %v549
    %v638 = vpack.c.b16 %v554, %v550
    %v639 = vpack.c.b16 %v555, %v551
    %v640 = vpack.c.b16 %v556, %v552
    %v641 = vpack.c.b16 %v561, %v557
    %v642 = vpack.c.b16 %v562, %v558
    %v643 = vpack.c.b16 %v563, %v559
    %v644 = vpack.c.b16 %v564, %v560
    %v645 = vpack.c.b16 %v569, %v565
    %v646 = vpack.c.b16 %v570, %v566
    %v647 = vpack.c.b16 %v571, %v567
    %v648 = vpack.c.b16 %v572, %v568
    %v649 = vpack.c.b16 %v577, %v573
    %v650 = vpack.c.b16 %v578, %v574
    %v651 = vpack.c.b16 %v579, %v575
    %v652 = vpack.c.b16 %v580, %v576
    %v653 = vpack.c.b16 %v585, %v581
    %v654 = vpack.c.b16 %v586, %v582
    %v655 = vpack.c.b16 %v587, %v583
    %v656 = vpack.c.b16 %v588, %v584
    %v657 = vpack.c.b16 %v593, %v589
    %v658 = vpack.c.b16 %v594, %v590
    %v659 = vpack.c.b16 %v595, %v591
    %v660 = vpack.c.b16 %v596, %v592
    %725 = vmatprep.subr.bf16.mxu0 %v626
    %726 = vmatpush1.bf16.msra.mxu0 %v625
    %727 = vmatprep.subr.bf16.mxu0 %v622
    %728 = vmatpush1.bf16.msra.mxu0 %v621
    %729 = vmatprep.subr.bf16.mxu0 %v618
    %730 = vmatpush1.bf16.msra.mxu0 %v617
    %731 = vmatprep.subr.bf16.mxu0 %v614
    %732 = vmatpush1.bf16.msra.mxu0 %v613
    %733 = vmatprep.subr.bf16.mxu0 %v610
    %734 = vmatpush1.bf16.msra.mxu0 %v609
    %735 = vmatprep.subr.bf16.mxu0 %v606
    %736 = vmatpush1.bf16.msra.mxu0 %v605
    %737 = vmatprep.subr.bf16.mxu0 %v602
    %738 = vmatpush1.bf16.msra.mxu0 %v601
    %739 = vmatprep.subr.bf16.mxu0 %v598
    %740 = vmatpush1.bf16.msra.mxu0 %v597
    %741 = vmatprep.subr.bf16.mxu0 %v658
    %742 = vmatpush2.bf16.msra.mxu0 %v657
    %743 = vmatprep.subr.bf16.mxu0 %v654
    %744 = vmatpush2.bf16.msra.mxu0 %v653
    %745 = vmatprep.subr.bf16.mxu0 %v650
    %746 = vmatpush2.bf16.msra.mxu0 %v649
    %747 = vmatprep.subr.bf16.mxu0 %v646
    %748 = vmatpush2.bf16.msra.mxu0 %v645
    %749 = vmatprep.subr.bf16.mxu0 %v642
    %750 = vmatpush2.bf16.msra.mxu0 %v641
    %751 = vmatprep.subr.bf16.mxu0 %v638
    %752 = vmatpush2.bf16.msra.mxu0 %v637
    %753 = vmatprep.subr.bf16.mxu0 %v634
    %754 = vmatpush2.bf16.msra.mxu0 %v633
    %755 = vmatprep.subr.bf16.mxu0 %v630
    %756 = vmatpush2.bf16.msra.mxu0 %v629
    %757 = vmatprep.mubr.bf16.mxu0 %v340
    %758 = vmatmul.mubr.bf16.gmra.mxu0 %v339
    %v759 = vpop.f32.mrf.mxu0
    %v760 = vadd.f32 0.0, %v759
    %v761 = vpop.f32.mrf.mxu0
    %v762 = vadd.f32 0.0, %v761
    %v763 = vpop.f32.mrf.mxu0
    %v764 = vpop.f32.mrf.mxu0
    %765 = vdwg.mxu0
    %766 = vmatprep.subr.bf16.mxu0 %v628
    %767 = vmatpush1.bf16.msra.mxu0 %v627
    %768 = vmatprep.subr.bf16.mxu0 %v624
    %769 = vmatpush1.bf16.msra.mxu0 %v623
    %770 = vmatprep.subr.bf16.mxu0 %v620
    %771 = vmatpush1.bf16.msra.mxu0 %v619
    %772 = vmatprep.subr.bf16.mxu0 %v616
    %773 = vmatpush1.bf16.msra.mxu0 %v615
    %774 = vmatprep.subr.bf16.mxu0 %v612
    %775 = vmatpush1.bf16.msra.mxu0 %v611
    %776 = vmatprep.subr.bf16.mxu0 %v608
    %777 = vmatpush1.bf16.msra.mxu0 %v607
    %778 = vmatprep.subr.bf16.mxu0 %v604
    %779 = vmatpush1.bf16.msra.mxu0 %v603
    %780 = vmatprep.subr.bf16.mxu0 %v600
    %781 = vmatpush1.bf16.msra.mxu0 %v599
    %782 = vmatprep.subr.bf16.mxu0 %v660
    %783 = vmatpush2.bf16.msra.mxu0 %v659
    %784 = vmatprep.subr.bf16.mxu0 %v656
    %785 = vmatpush2.bf16.msra.mxu0 %v655
    %786 = vmatprep.subr.bf16.mxu0 %v652
    %787 = vmatpush2.bf16.msra.mxu0 %v651
    %788 = vmatprep.subr.bf16.mxu0 %v648
    %789 = vmatpush2.bf16.msra.mxu0 %v647
    %790 = vmatprep.subr.bf16.mxu0 %v644
    %791 = vmatpush2.bf16.msra.mxu0 %v643
    %792 = vmatprep.subr.bf16.mxu0 %v640
    %793 = vmatpush2.bf16.msra.mxu0 %v639
    %794 = vmatprep.subr.bf16.mxu0 %v636
    %795 = vmatpush2.bf16.msra.mxu0 %v635
    %796 = vmatprep.subr.bf16.mxu0 %v632
    %797 = vmatpush2.bf16.msra.mxu0 %v631
    %798 = vmatprep.mubr.bf16.mxu0 %v340
    %799 = vmatmul.mubr.bf16.gmra.mxu0 %v339
    %v800 = vpop.f32.mrf.mxu0
    %v801 = vadd.f32 0.0, %v800
    %v802 = vpop.f32.mrf.mxu0
    %v803 = vadd.f32 0.0, %v802
    %v804 = vpop.f32.mrf.mxu0
    %v805 = vpop.f32.mrf.mxu0
    %806 = vdwg.mxu0
    %v807 = vld [vmem:[%s6 + $0x5] sm:$0xf]
    %v808 = vld [vmem:[%s6 + $0x9] sm:$0xf]
    %v809 = vrot.slane %v760, 4
    %v810 = vadd.f32 %v760, %v809
    %v811 = vrot.slane %v810, 2
    %v812 = vadd.f32 %v810, %v811
    %v813 = vrot.slane %v812, 1
    %v814 = vadd.f32 %v812, %v813
    %v815 = vrot.slane %v762, 4
    %v816 = vadd.f32 %v762, %v815
    %v817 = vrot.slane %v816, 2
    %v818 = vadd.f32 %v816, %v817
    %v819 = vrot.slane %v818, 1
    %v820 = vadd.f32 %v818, %v819
    %v821 = vrot.slane %v801, 4
    %v822 = vadd.f32 %v801, %v821
    %v823 = vrot.slane %v822, 2
    %v824 = vadd.f32 %v822, %v823
    %v825 = vrot.slane %v824, 1
    %v826 = vadd.f32 %v824, %v825
    %v827 = vrot.slane %v803, 4
    %v828 = vadd.f32 %v803, %v827
    %v829 = vrot.slane %v828, 2
    %v830 = vadd.f32 %v828, %v829
    %v831 = vrot.slane %v830, 1
    %v832 = vadd.f32 %v830, %v831
    %v833 = vmul.f32 %v814, %v265
    %v834 = vmul.f32 %v820, %v265
    %v835 = vmul.f32 %v826, %v265
    %v836 = vmul.f32 %v832, %v265
    %v837 = vsub.f32 %v760, %v833
    %v838 = vsub.f32 %v762, %v834
    %v839 = vsub.f32 %v801, %v835
    %v840 = vsub.f32 %v803, %v836
    %v841 = vmul.f32 %v837, %v837
    %v842 = vmul.f32 %v838, %v838
    %v843 = vmul.f32 %v839, %v839
    %v844 = vmul.f32 %v840, %v840
    %v845 = vrot.slane %v841, 4
    %v846 = vadd.f32 %v841, %v845
    %v847 = vrot.slane %v846, 2
    %v848 = vadd.f32 %v846, %v847
    %v849 = vrot.slane %v848, 1
    %v850 = vadd.f32 %v848, %v849
    %v851 = vrot.slane %v842, 4
    %v852 = vadd.f32 %v842, %v851
    %v853 = vrot.slane %v852, 2
    %v854 = vadd.f32 %v852, %v853
    %v855 = vrot.slane %v854, 1
    %v856 = vadd.f32 %v854, %v855
    %v857 = vrot.slane %v843, 4
    %v858 = vadd.f32 %v843, %v857
    %v859 = vrot.slane %v858, 2
    %v860 = vadd.f32 %v858, %v859
    %v861 = vrot.slane %v860, 1
    %v862 = vadd.f32 %v860, %v861
    %v863 = vrot.slane %v844, 4
    %v864 = vadd.f32 %v844, %v863
    %v865 = vrot.slane %v864, 2
    %v866 = vadd.f32 %v864, %v865
    %v867 = vrot.slane %v866, 1
    %v868 = vadd.f32 %v866, %v867
    %v869 = vmul.f32 %v850, %v265
    %v870 = vmul.f32 %v856, %v265
    %v871 = vmul.f32 %v862, %v265
    %v872 = vmul.f32 %v868, %v265
    %v873 = vadd.f32 %v869, 0.8
    %v874 = vadd.f32 %v870, 0.8
    %v875 = vadd.f32 %v871, 0.8
    %v876 = vadd.f32 %v872, 0.8
    %v877 = vrsqrt.pop %v873
    %v878 = vrsqrt.pop %v874
    %v879 = vrsqrt.pop %v875
    %v880 = vrsqrt.pop %v876
    %v885 = vcombine.low %v877, %v878
    %v886 = vcombine.low %v879, %v880
    %v888 = vunpack.c.l.s4 1966171168
    %v889 = vunpack.c.0.s8 %v888
    %v890 = vlaneseq
    %v891 = vshrl.u32 %v890, 7
    %v892 = vsub.s32 %v889, %v891
    %v893 = vrot.slane %v885, %v892
    %v895 = vunpack.c.l.s4 1966171168
    %v896 = vunpack.c.0.s8 %v895
    %v897 = vlaneseq
    %v898 = vshrl.u32 %v897, 7
    %v899 = vsub.s32 %v896, %v898
    %v900 = vrot.slane %v886, %v899
    %v901 = vcombine.low %v893, %v900
    %v903 = vunpack.c.l.s4 1966171168
    %v904 = vunpack.c.0.s8 %v903
    %v905 = vlaneseq
    %v906 = vshrl.u32 %v905, 7
    %v907 = vsub.s32 %v904, %v906
    %v908 = vrot.slane %v901, %v907
    %v910 = vmul.f32 %v807, %v908
    %v912 = vlaneseq
    %v913 = vshrl.u32 %v912, 7
    %v914 = vsub.s32 0, %v913
    %v915 = vrot.slane %v910, %v914
    %v916 = vlaneseq
    %v917 = vshrl.u32 %v916, 7
    %v918 = vsub.s32 1, %v917
    %v919 = vrot.slane %v910, %v918
    %v920 = vlaneseq
    %v921 = vshrl.u32 %v920, 7
    %v922 = vsub.s32 2, %v921
    %v923 = vrot.slane %v910, %v922
    %v924 = vlaneseq
    %v925 = vshrl.u32 %v924, 7
    %v926 = vsub.s32 3, %v925
    %v927 = vrot.slane %v910, %v926
    %v932 = vmul.f32 %v837, %v915
    %v933 = vmul.f32 %v838, %v919
    %v934 = vmul.f32 %v839, %v923
    %v935 = vmul.f32 %v840, %v927
    %v937 = vlaneseq
    %v938 = vshrl.u32 %v937, 7
    %v939 = vsub.s32 0, %v938
    %v940 = vrot.slane %v808, %v939
    %v941 = vlaneseq
    %v942 = vshrl.u32 %v941, 7
    %v943 = vsub.s32 1, %v942
    %v944 = vrot.slane %v808, %v943
    %v945 = vlaneseq
    %v946 = vshrl.u32 %v945, 7
    %v947 = vsub.s32 2, %v946
    %v948 = vrot.slane %v808, %v947
    %v949 = vlaneseq
    %v950 = vshrl.u32 %v949, 7
    %v951 = vsub.s32 3, %v950
    %v952 = vrot.slane %v808, %v951
    %v957 = vadd.f32 %v932, %v940
    %v958 = vadd.f32 %v933, %v944
    %v959 = vadd.f32 %v934, %v948
    %v960 = vadd.f32 %v935, %v952
    %v961 = vmul.f32 %v957, 0.2
    %v962 = vmul.f32 %v958, 0.2
    %v963 = vmul.f32 %v959, 0.2
    %v964 = vmul.f32 %v960, 0.2
    %v965 = vmax.f32 %v957, %v961
    %v966 = vmax.f32 %v958, %v962
    %v967 = vmax.f32 %v959, %v963
    %v968 = vmax.f32 %v960, %v964
    %v969 = vpack.c.bf16 %v965, %v965
    %v970 = vpack.c.bf16 %v966, %v966
    %v971 = vpack.c.bf16 %v967, %v967
    %v972 = vpack.c.bf16 %v968, %v968
    %v973 = vld [vmem:[#allocation2] sm:$0xff]
    %v974 = vld [vmem:[#allocation2 + $0x8] sm:$0xff]
    %v975 = vld [vmem:[#allocation2 + $0x10] sm:$0xff]
    %v976 = vld [vmem:[#allocation2 + $0x18] sm:$0xff]
    %v977 = vld [vmem:[#allocation2 + $0x20] sm:$0xff]
    %v978 = vld [vmem:[#allocation2 + $0x28] sm:$0xff]
    %v979 = vld [vmem:[#allocation2 + $0x30] sm:$0xff]
    %v980 = vld [vmem:[#allocation2 + $0x38] sm:$0xff]
    %v981 = vld [vmem:[#allocation2 + $0x40] sm:$0xff]
    %v982 = vld [vmem:[#allocation2 + $0x48] sm:$0xff]
    %v983 = vld [vmem:[#allocation2 + $0x50] sm:$0xff]
    %v984 = vld [vmem:[#allocation2 + $0x58] sm:$0xff]
    %v985 = vld [vmem:[#allocation2 + $0x60] sm:$0xff]
    %v986 = vld [vmem:[#allocation2 + $0x68] sm:$0xff]
    %v987 = vld [vmem:[#allocation2 + $0x70] sm:$0xff]
    %v988 = vld [vmem:[#allocation2 + $0x78] sm:$0xff]
    %v989 = vld [vmem:[#allocation2 + $0x80] sm:$0xff]
    %v990 = vld [vmem:[#allocation2 + $0x88] sm:$0xff]
    %v991 = vld [vmem:[#allocation2 + $0x90] sm:$0xff]
    %v992 = vld [vmem:[#allocation2 + $0x98] sm:$0xff]
    %v993 = vld [vmem:[#allocation2 + $0xa0] sm:$0xff]
    %v994 = vld [vmem:[#allocation2 + $0xa8] sm:$0xff]
    %v995 = vld [vmem:[#allocation2 + $0xb0] sm:$0xff]
    %v996 = vld [vmem:[#allocation2 + $0xb8] sm:$0xff]
    %v997 = vld [vmem:[#allocation2 + $0xc0] sm:$0xff]
    %v998 = vld [vmem:[#allocation2 + $0xc8] sm:$0xff]
    %v999 = vld [vmem:[#allocation2 + $0xd0] sm:$0xff]
    %v1000 = vld [vmem:[#allocation2 + $0xd8] sm:$0xff]
    %v1001 = vld [vmem:[#allocation2 + $0xe0] sm:$0xff]
    %v1002 = vld [vmem:[#allocation2 + $0xe8] sm:$0xff]
    %v1003 = vld [vmem:[#allocation2 + $0xf0] sm:$0xff]
    %v1004 = vld [vmem:[#allocation2 + $0xf8] sm:$0xff]
    %v1005 = vld [vmem:[#allocation2 + $0x100] sm:$0xff]
    %v1006 = vld [vmem:[#allocation2 + $0x108] sm:$0xff]
    %v1007 = vld [vmem:[#allocation2 + $0x110] sm:$0xff]
    %v1008 = vld [vmem:[#allocation2 + $0x118] sm:$0xff]
    %v1009 = vld [vmem:[#allocation2 + $0x120] sm:$0xff]
    %v1010 = vld [vmem:[#allocation2 + $0x128] sm:$0xff]
    %v1011 = vld [vmem:[#allocation2 + $0x130] sm:$0xff]
    %v1012 = vld [vmem:[#allocation2 + $0x138] sm:$0xff]
    %v1013 = vld [vmem:[#allocation2 + $0x140] sm:$0xff]
    %v1014 = vld [vmem:[#allocation2 + $0x148] sm:$0xff]
    %v1015 = vld [vmem:[#allocation2 + $0x150] sm:$0xff]
    %v1016 = vld [vmem:[#allocation2 + $0x158] sm:$0xff]
    %v1017 = vld [vmem:[#allocation2 + $0x160] sm:$0xff]
    %v1018 = vld [vmem:[#allocation2 + $0x168] sm:$0xff]
    %v1019 = vld [vmem:[#allocation2 + $0x170] sm:$0xff]
    %v1020 = vld [vmem:[#allocation2 + $0x178] sm:$0xff]
    %v1021 = vld [vmem:[#allocation2 + $0x180] sm:$0xff]
    %v1022 = vld [vmem:[#allocation2 + $0x188] sm:$0xff]
    %v1023 = vld [vmem:[#allocation2 + $0x190] sm:$0xff]
    %v1024 = vld [vmem:[#allocation2 + $0x198] sm:$0xff]
    %v1025 = vld [vmem:[#allocation2 + $0x1a0] sm:$0xff]
    %v1026 = vld [vmem:[#allocation2 + $0x1a8] sm:$0xff]
    %v1027 = vld [vmem:[#allocation2 + $0x1b0] sm:$0xff]
    %v1028 = vld [vmem:[#allocation2 + $0x1b8] sm:$0xff]
    %v1029 = vld [vmem:[#allocation2 + $0x1c0] sm:$0xff]
    %v1030 = vld [vmem:[#allocation2 + $0x1c8] sm:$0xff]
    %v1031 = vld [vmem:[#allocation2 + $0x1d0] sm:$0xff]
    %v1032 = vld [vmem:[#allocation2 + $0x1d8] sm:$0xff]
    %v1033 = vld [vmem:[#allocation2 + $0x1e0] sm:$0xff]
    %v1034 = vld [vmem:[#allocation2 + $0x1e8] sm:$0xff]
    %v1035 = vld [vmem:[#allocation2 + $0x1f0] sm:$0xff]
    %v1036 = vld [vmem:[#allocation2 + $0x1f8] sm:$0xff]
    %v1037 = vld [vmem:[#allocation2 + $0x200] sm:$0xff]
    %v1038 = vld [vmem:[#allocation2 + $0x208] sm:$0xff]
    %v1039 = vld [vmem:[#allocation2 + $0x210] sm:$0xff]
    %v1040 = vld [vmem:[#allocation2 + $0x218] sm:$0xff]
    %v1041 = vld [vmem:[#allocation2 + $0x220] sm:$0xff]
    %v1042 = vld [vmem:[#allocation2 + $0x228] sm:$0xff]
    %v1043 = vld [vmem:[#allocation2 + $0x230] sm:$0xff]
    %v1044 = vld [vmem:[#allocation2 + $0x238] sm:$0xff]
    %v1045 = vld [vmem:[#allocation2 + $0x240] sm:$0xff]
    %v1046 = vld [vmem:[#allocation2 + $0x248] sm:$0xff]
    %v1047 = vld [vmem:[#allocation2 + $0x250] sm:$0xff]
    %v1048 = vld [vmem:[#allocation2 + $0x258] sm:$0xff]
    %v1049 = vld [vmem:[#allocation2 + $0x260] sm:$0xff]
    %v1050 = vld [vmem:[#allocation2 + $0x268] sm:$0xff]
    %v1051 = vld [vmem:[#allocation2 + $0x270] sm:$0xff]
    %v1052 = vld [vmem:[#allocation2 + $0x278] sm:$0xff]
    %v1053 = vld [vmem:[#allocation2 + $0x280] sm:$0xff]
    %v1054 = vld [vmem:[#allocation2 + $0x288] sm:$0xff]
    %v1055 = vld [vmem:[#allocation2 + $0x290] sm:$0xff]
    %v1056 = vld [vmem:[#allocation2 + $0x298] sm:$0xff]
    %v1057 = vld [vmem:[#allocation2 + $0x2a0] sm:$0xff]
    %v1058 = vld [vmem:[#allocation2 + $0x2a8] sm:$0xff]
    %v1059 = vld [vmem:[#allocation2 + $0x2b0] sm:$0xff]
    %v1060 = vld [vmem:[#allocation2 + $0x2b8] sm:$0xff]
    %v1061 = vld [vmem:[#allocation2 + $0x2c0] sm:$0xff]
    %v1062 = vld [vmem:[#allocation2 + $0x2c8] sm:$0xff]
    %v1063 = vld [vmem:[#allocation2 + $0x2d0] sm:$0xff]
    %v1064 = vld [vmem:[#allocation2 + $0x2d8] sm:$0xff]
    %v1065 = vld [vmem:[#allocation2 + $0x2e0] sm:$0xff]
    %v1066 = vld [vmem:[#allocation2 + $0x2e8] sm:$0xff]
    %v1067 = vld [vmem:[#allocation2 + $0x2f0] sm:$0xff]
    %v1068 = vld [vmem:[#allocation2 + $0x2f8] sm:$0xff]
    %v1069 = vld [vmem:[#allocation2 + $0x300] sm:$0xff]
    %v1070 = vld [vmem:[#allocation2 + $0x308] sm:$0xff]
    %v1071 = vld [vmem:[#allocation2 + $0x310] sm:$0xff]
    %v1072 = vld [vmem:[#allocation2 + $0x318] sm:$0xff]
    %v1073 = vld [vmem:[#allocation2 + $0x320] sm:$0xff]
    %v1074 = vld [vmem:[#allocation2 + $0x328] sm:$0xff]
    %v1075 = vld [vmem:[#allocation2 + $0x330] sm:$0xff]
    %v1076 = vld [vmem:[#allocation2 + $0x338] sm:$0xff]
    %v1077 = vld [vmem:[#allocation2 + $0x340] sm:$0xff]
    %v1078 = vld [vmem:[#allocation2 + $0x348] sm:$0xff]
    %v1079 = vld [vmem:[#allocation2 + $0x350] sm:$0xff]
    %v1080 = vld [vmem:[#allocation2 + $0x358] sm:$0xff]
    %v1081 = vld [vmem:[#allocation2 + $0x360] sm:$0xff]
    %v1082 = vld [vmem:[#allocation2 + $0x368] sm:$0xff]
    %v1083 = vld [vmem:[#allocation2 + $0x370] sm:$0xff]
    %v1084 = vld [vmem:[#allocation2 + $0x378] sm:$0xff]
    %v1085 = vld [vmem:[#allocation2 + $0x380] sm:$0xff]
    %v1086 = vld [vmem:[#allocation2 + $0x388] sm:$0xff]
    %v1087 = vld [vmem:[#allocation2 + $0x390] sm:$0xff]
    %v1088 = vld [vmem:[#allocation2 + $0x398] sm:$0xff]
    %v1089 = vld [vmem:[#allocation2 + $0x3a0] sm:$0xff]
    %v1090 = vld [vmem:[#allocation2 + $0x3a8] sm:$0xff]
    %v1091 = vld [vmem:[#allocation2 + $0x3b0] sm:$0xff]
    %v1092 = vld [vmem:[#allocation2 + $0x3b8] sm:$0xff]
    %v1093 = vld [vmem:[#allocation2 + $0x3c0] sm:$0xff]
    %v1094 = vld [vmem:[#allocation2 + $0x3c8] sm:$0xff]
    %v1095 = vld [vmem:[#allocation2 + $0x3d0] sm:$0xff]
    %v1096 = vld [vmem:[#allocation2 + $0x3d8] sm:$0xff]
    %v1097 = vld [vmem:[#allocation2 + $0x3e0] sm:$0xff]
    %v1098 = vld [vmem:[#allocation2 + $0x3e8] sm:$0xff]
    %v1099 = vld [vmem:[#allocation2 + $0x3f0] sm:$0xff]
    %v1100 = vld [vmem:[#allocation2 + $0x3f8] sm:$0xff]
    %v1101 = vld [vmem:[#allocation2 + $0x400] sm:$0xff]
    %v1102 = vld [vmem:[#allocation2 + $0x408] sm:$0xff]
    %v1103 = vld [vmem:[#allocation2 + $0x410] sm:$0xff]
    %v1104 = vld [vmem:[#allocation2 + $0x418] sm:$0xff]
    %v1105 = vld [vmem:[#allocation2 + $0x420] sm:$0xff]
    %v1106 = vld [vmem:[#allocation2 + $0x428] sm:$0xff]
    %v1107 = vld [vmem:[#allocation2 + $0x430] sm:$0xff]
    %v1108 = vld [vmem:[#allocation2 + $0x438] sm:$0xff]
    %v1109 = vld [vmem:[#allocation2 + $0x440] sm:$0xff]
    %v1110 = vld [vmem:[#allocation2 + $0x448] sm:$0xff]
    %v1111 = vld [vmem:[#allocation2 + $0x450] sm:$0xff]
    %v1112 = vld [vmem:[#allocation2 + $0x458] sm:$0xff]
    %v1113 = vld [vmem:[#allocation2 + $0x460] sm:$0xff]
    %v1114 = vld [vmem:[#allocation2 + $0x468] sm:$0xff]
    %v1115 = vld [vmem:[#allocation2 + $0x470] sm:$0xff]
    %v1116 = vld [vmem:[#allocation2 + $0x478] sm:$0xff]
    %v1117 = vld [vmem:[#allocation2 + $0x480] sm:$0xff]
    %v1118 = vld [vmem:[#allocation2 + $0x488] sm:$0xff]
    %v1119 = vld [vmem:[#allocation2 + $0x490] sm:$0xff]
    %v1120 = vld [vmem:[#allocation2 + $0x498] sm:$0xff]
    %v1121 = vld [vmem:[#allocation2 + $0x4a0] sm:$0xff]
    %v1122 = vld [vmem:[#allocation2 + $0x4a8] sm:$0xff]
    %v1123 = vld [vmem:[#allocation2 + $0x4b0] sm:$0xff]
    %v1124 = vld [vmem:[#allocation2 + $0x4b8] sm:$0xff]
    %v1125 = vld [vmem:[#allocation2 + $0x4c0] sm:$0xff]
    %v1126 = vld [vmem:[#allocation2 + $0x4c8] sm:$0xff]
    %v1127 = vld [vmem:[#allocation2 + $0x4d0] sm:$0xff]
    %v1128 = vld [vmem:[#allocation2 + $0x4d8] sm:$0xff]
    %v1129 = vld [vmem:[#allocation2 + $0x4e0] sm:$0xff]
    %v1130 = vld [vmem:[#allocation2 + $0x4e8] sm:$0xff]
    %v1131 = vld [vmem:[#allocation2 + $0x4f0] sm:$0xff]
    %v1132 = vld [vmem:[#allocation2 + $0x4f8] sm:$0xff]
    %v1133 = vld [vmem:[#allocation2 + $0x500] sm:$0xff]
    %v1134 = vld [vmem:[#allocation2 + $0x508] sm:$0xff]
    %v1135 = vld [vmem:[#allocation2 + $0x510] sm:$0xff]
    %v1136 = vld [vmem:[#allocation2 + $0x518] sm:$0xff]
    %v1137 = vld [vmem:[#allocation2 + $0x520] sm:$0xff]
    %v1138 = vld [vmem:[#allocation2 + $0x528] sm:$0xff]
    %v1139 = vld [vmem:[#allocation2 + $0x530] sm:$0xff]
    %v1140 = vld [vmem:[#allocation2 + $0x538] sm:$0xff]
    %v1141 = vld [vmem:[#allocation2 + $0x540] sm:$0xff]
    %v1142 = vld [vmem:[#allocation2 + $0x548] sm:$0xff]
    %v1143 = vld [vmem:[#allocation2 + $0x550] sm:$0xff]
    %v1144 = vld [vmem:[#allocation2 + $0x558] sm:$0xff]
    %v1145 = vld [vmem:[#allocation2 + $0x560] sm:$0xff]
    %v1146 = vld [vmem:[#allocation2 + $0x568] sm:$0xff]
    %v1147 = vld [vmem:[#allocation2 + $0x570] sm:$0xff]
    %v1148 = vld [vmem:[#allocation2 + $0x578] sm:$0xff]
    %v1149 = vld [vmem:[#allocation2 + $0x580] sm:$0xff]
    %v1150 = vld [vmem:[#allocation2 + $0x588] sm:$0xff]
    %v1151 = vld [vmem:[#allocation2 + $0x590] sm:$0xff]
    %v1152 = vld [vmem:[#allocation2 + $0x598] sm:$0xff]
    %v1153 = vld [vmem:[#allocation2 + $0x5a0] sm:$0xff]
    %v1154 = vld [vmem:[#allocation2 + $0x5a8] sm:$0xff]
    %v1155 = vld [vmem:[#allocation2 + $0x5b0] sm:$0xff]
    %v1156 = vld [vmem:[#allocation2 + $0x5b8] sm:$0xff]
    %v1157 = vld [vmem:[#allocation2 + $0x5c0] sm:$0xff]
    %v1158 = vld [vmem:[#allocation2 + $0x5c8] sm:$0xff]
    %v1159 = vld [vmem:[#allocation2 + $0x5d0] sm:$0xff]
    %v1160 = vld [vmem:[#allocation2 + $0x5d8] sm:$0xff]
    %v1161 = vld [vmem:[#allocation2 + $0x5e0] sm:$0xff]
    %v1162 = vld [vmem:[#allocation2 + $0x5e8] sm:$0xff]
    %v1163 = vld [vmem:[#allocation2 + $0x5f0] sm:$0xff]
    %v1164 = vld [vmem:[#allocation2 + $0x5f8] sm:$0xff]
    %v1165 = vld [vmem:[#allocation2 + $0x600] sm:$0xff]
    %v1166 = vld [vmem:[#allocation2 + $0x608] sm:$0xff]
    %v1167 = vld [vmem:[#allocation2 + $0x610] sm:$0xff]
    %v1168 = vld [vmem:[#allocation2 + $0x618] sm:$0xff]
    %v1169 = vld [vmem:[#allocation2 + $0x620] sm:$0xff]
    %v1170 = vld [vmem:[#allocation2 + $0x628] sm:$0xff]
    %v1171 = vld [vmem:[#allocation2 + $0x630] sm:$0xff]
    %v1172 = vld [vmem:[#allocation2 + $0x638] sm:$0xff]
    %v1173 = vld [vmem:[#allocation2 + $0x640] sm:$0xff]
    %v1174 = vld [vmem:[#allocation2 + $0x648] sm:$0xff]
    %v1175 = vld [vmem:[#allocation2 + $0x650] sm:$0xff]
    %v1176 = vld [vmem:[#allocation2 + $0x658] sm:$0xff]
    %v1177 = vld [vmem:[#allocation2 + $0x660] sm:$0xff]
    %v1178 = vld [vmem:[#allocation2 + $0x668] sm:$0xff]
    %v1179 = vld [vmem:[#allocation2 + $0x670] sm:$0xff]
    %v1180 = vld [vmem:[#allocation2 + $0x678] sm:$0xff]
    %v1181 = vld [vmem:[#allocation2 + $0x680] sm:$0xff]
    %v1182 = vld [vmem:[#allocation2 + $0x688] sm:$0xff]
    %v1183 = vld [vmem:[#allocation2 + $0x690] sm:$0xff]
    %v1184 = vld [vmem:[#allocation2 + $0x698] sm:$0xff]
    %v1185 = vld [vmem:[#allocation2 + $0x6a0] sm:$0xff]
    %v1186 = vld [vmem:[#allocation2 + $0x6a8] sm:$0xff]
    %v1187 = vld [vmem:[#allocation2 + $0x6b0] sm:$0xff]
    %v1188 = vld [vmem:[#allocation2 + $0x6b8] sm:$0xff]
    %v1189 = vld [vmem:[#allocation2 + $0x6c0] sm:$0xff]
    %v1190 = vld [vmem:[#allocation2 + $0x6c8] sm:$0xff]
    %v1191 = vld [vmem:[#allocation2 + $0x6d0] sm:$0xff]
    %v1192 = vld [vmem:[#allocation2 + $0x6d8] sm:$0xff]
    %v1193 = vld [vmem:[#allocation2 + $0x6e0] sm:$0xff]
    %v1194 = vld [vmem:[#allocation2 + $0x6e8] sm:$0xff]
    %v1195 = vld [vmem:[#allocation2 + $0x6f0] sm:$0xff]
    %v1196 = vld [vmem:[#allocation2 + $0x6f8] sm:$0xff]
    %v1197 = vld [vmem:[#allocation2 + $0x700] sm:$0xff]
    %v1198 = vld [vmem:[#allocation2 + $0x708] sm:$0xff]
    %v1199 = vld [vmem:[#allocation2 + $0x710] sm:$0xff]
    %v1200 = vld [vmem:[#allocation2 + $0x718] sm:$0xff]
    %v1201 = vld [vmem:[#allocation2 + $0x720] sm:$0xff]
    %v1202 = vld [vmem:[#allocation2 + $0x728] sm:$0xff]
    %v1203 = vld [vmem:[#allocation2 + $0x730] sm:$0xff]
    %v1204 = vld [vmem:[#allocation2 + $0x738] sm:$0xff]
    %v1205 = vld [vmem:[#allocation2 + $0x740] sm:$0xff]
    %v1206 = vld [vmem:[#allocation2 + $0x748] sm:$0xff]
    %v1207 = vld [vmem:[#allocation2 + $0x750] sm:$0xff]
    %v1208 = vld [vmem:[#allocation2 + $0x758] sm:$0xff]
    %v1209 = vld [vmem:[#allocation2 + $0x760] sm:$0xff]
    %v1210 = vld [vmem:[#allocation2 + $0x768] sm:$0xff]
    %v1211 = vld [vmem:[#allocation2 + $0x770] sm:$0xff]
    %v1212 = vld [vmem:[#allocation2 + $0x778] sm:$0xff]
    %v1213 = vld [vmem:[#allocation2 + $0x780] sm:$0xff]
    %v1214 = vld [vmem:[#allocation2 + $0x788] sm:$0xff]
    %v1215 = vld [vmem:[#allocation2 + $0x790] sm:$0xff]
    %v1216 = vld [vmem:[#allocation2 + $0x798] sm:$0xff]
    %v1217 = vld [vmem:[#allocation2 + $0x7a0] sm:$0xff]
    %v1218 = vld [vmem:[#allocation2 + $0x7a8] sm:$0xff]
    %v1219 = vld [vmem:[#allocation2 + $0x7b0] sm:$0xff]
    %v1220 = vld [vmem:[#allocation2 + $0x7b8] sm:$0xff]
    %v1221 = vld [vmem:[#allocation2 + $0x7c0] sm:$0xff]
    %v1222 = vld [vmem:[#allocation2 + $0x7c8] sm:$0xff]
    %v1223 = vld [vmem:[#allocation2 + $0x7d0] sm:$0xff]
    %v1224 = vld [vmem:[#allocation2 + $0x7d8] sm:$0xff]
    %v1225 = vld [vmem:[#allocation2 + $0x7e0] sm:$0xff]
    %v1226 = vld [vmem:[#allocation2 + $0x7e8] sm:$0xff]
    %v1227 = vld [vmem:[#allocation2 + $0x7f0] sm:$0xff]
    %v1228 = vld [vmem:[#allocation2 + $0x7f8] sm:$0xff]
    %v1485 = vunpack.c.l.b16 %v973
    %v1486 = vunpack.c.h.b16 %v973
    %v1487 = vunpack.c.l.b16 %v974
    %v1488 = vunpack.c.h.b16 %v974
    %v1489 = vunpack.c.l.b16 %v975
    %v1490 = vunpack.c.h.b16 %v975
    %v1491 = vunpack.c.l.b16 %v976
    %v1492 = vunpack.c.h.b16 %v976
    %v1493 = vunpack.c.l.b16 %v977
    %v1494 = vunpack.c.h.b16 %v977
    %v1495 = vunpack.c.l.b16 %v978
    %v1496 = vunpack.c.h.b16 %v978
    %v1497 = vunpack.c.l.b16 %v979
    %v1498 = vunpack.c.h.b16 %v979
    %v1499 = vunpack.c.l.b16 %v980
    %v1500 = vunpack.c.h.b16 %v980
    %v1501 = vunpack.c.l.b16 %v981
    %v1502 = vunpack.c.h.b16 %v981
    %v1503 = vunpack.c.l.b16 %v982
    %v1504 = vunpack.c.h.b16 %v982
    %v1505 = vunpack.c.l.b16 %v983
    %v1506 = vunpack.c.h.b16 %v983
    %v1507 = vunpack.c.l.b16 %v984
    %v1508 = vunpack.c.h.b16 %v984
    %v1509 = vunpack.c.l.b16 %v985
    %v1510 = vunpack.c.h.b16 %v985
    %v1511 = vunpack.c.l.b16 %v986
    %v1512 = vunpack.c.h.b16 %v986
    %v1513 = vunpack.c.l.b16 %v987
    %v1514 = vunpack.c.h.b16 %v987
    %v1515 = vunpack.c.l.b16 %v988
    %v1516 = vunpack.c.h.b16 %v988
    %v1517 = vunpack.c.l.b16 %v989
    %v1518 = vunpack.c.h.b16 %v989
    %v1519 = vunpack.c.l.b16 %v990
    %v1520 = vunpack.c.h.b16 %v990
    %v1521 = vunpack.c.l.b16 %v991
    %v1522 = vunpack.c.h.b16 %v991
    %v1523 = vunpack.c.l.b16 %v992
    %v1524 = vunpack.c.h.b16 %v992
    %v1525 = vunpack.c.l.b16 %v993
    %v1526 = vunpack.c.h.b16 %v993
    %v1527 = vunpack.c.l.b16 %v994
    %v1528 = vunpack.c.h.b16 %v994
    %v1529 = vunpack.c.l.b16 %v995
    %v1530 = vunpack.c.h.b16 %v995
    %v1531 = vunpack.c.l.b16 %v996
    %v1532 = vunpack.c.h.b16 %v996
    %v1533 = vunpack.c.l.b16 %v997
    %v1534 = vunpack.c.h.b16 %v997
    %v1535 = vunpack.c.l.b16 %v998
    %v1536 = vunpack.c.h.b16 %v998
    %v1537 = vunpack.c.l.b16 %v999
    %v1538 = vunpack.c.h.b16 %v999
    %v1539 = vunpack.c.l.b16 %v1000
    %v1540 = vunpack.c.h.b16 %v1000
    %v1541 = vunpack.c.l.b16 %v1001
    %v1542 = vunpack.c.h.b16 %v1001
    %v1543 = vunpack.c.l.b16 %v1002
    %v1544 = vunpack.c.h.b16 %v1002
    %v1545 = vunpack.c.l.b16 %v1003
    %v1546 = vunpack.c.h.b16 %v1003
    %v1547 = vunpack.c.l.b16 %v1004
    %v1548 = vunpack.c.h.b16 %v1004
    %v1549 = vunpack.c.l.b16 %v1005
    %v1550 = vunpack.c.h.b16 %v1005
    %v1551 = vunpack.c.l.b16 %v1006
    %v1552 = vunpack.c.h.b16 %v1006
    %v1553 = vunpack.c.l.b16 %v1007
    %v1554 = vunpack.c.h.b16 %v1007
    %v1555 = vunpack.c.l.b16 %v1008
    %v1556 = vunpack.c.h.b16 %v1008
    %v1557 = vunpack.c.l.b16 %v1009
    %v1558 = vunpack.c.h.b16 %v1009
    %v1559 = vunpack.c.l.b16 %v1010
    %v1560 = vunpack.c.h.b16 %v1010
    %v1561 = vunpack.c.l.b16 %v1011
    %v1562 = vunpack.c.h.b16 %v1011
    %v1563 = vunpack.c.l.b16 %v1012
    %v1564 = vunpack.c.h.b16 %v1012
    %v1565 = vunpack.c.l.b16 %v1013
    %v1566 = vunpack.c.h.b16 %v1013
    %v1567 = vunpack.c.l.b16 %v1014
    %v1568 = vunpack.c.h.b16 %v1014
    %v1569 = vunpack.c.l.b16 %v1015
    %v1570 = vunpack.c.h.b16 %v1015
    %v1571 = vunpack.c.l.b16 %v1016
    %v1572 = vunpack.c.h.b16 %v1016
    %v1573 = vunpack.c.l.b16 %v1017
    %v1574 = vunpack.c.h.b16 %v1017
    %v1575 = vunpack.c.l.b16 %v1018
    %v1576 = vunpack.c.h.b16 %v1018
    %v1577 = vunpack.c.l.b16 %v1019
    %v1578 = vunpack.c.h.b16 %v1019
    %v1579 = vunpack.c.l.b16 %v1020
    %v1580 = vunpack.c.h.b16 %v1020
    %v1581 = vunpack.c.l.b16 %v1021
    %v1582 = vunpack.c.h.b16 %v1021
    %v1583 = vunpack.c.l.b16 %v1022
    %v1584 = vunpack.c.h.b16 %v1022
    %v1585 = vunpack.c.l.b16 %v1023
    %v1586 = vunpack.c.h.b16 %v1023
    %v1587 = vunpack.c.l.b16 %v1024
    %v1588 = vunpack.c.h.b16 %v1024
    %v1589 = vunpack.c.l.b16 %v1025
    %v1590 = vunpack.c.h.b16 %v1025
    %v1591 = vunpack.c.l.b16 %v1026
    %v1592 = vunpack.c.h.b16 %v1026
    %v1593 = vunpack.c.l.b16 %v1027
    %v1594 = vunpack.c.h.b16 %v1027
    %v1595 = vunpack.c.l.b16 %v1028
    %v1596 = vunpack.c.h.b16 %v1028
    %v1597 = vunpack.c.l.b16 %v1029
    %v1598 = vunpack.c.h.b16 %v1029
    %v1599 = vunpack.c.l.b16 %v1030
    %v1600 = vunpack.c.h.b16 %v1030
    %v1601 = vunpack.c.l.b16 %v1031
    %v1602 = vunpack.c.h.b16 %v1031
    %v1603 = vunpack.c.l.b16 %v1032
    %v1604 = vunpack.c.h.b16 %v1032
    %v1605 = vunpack.c.l.b16 %v1033
    %v1606 = vunpack.c.h.b16 %v1033
    %v1607 = vunpack.c.l.b16 %v1034
    %v1608 = vunpack.c.h.b16 %v1034
    %v1609 = vunpack.c.l.b16 %v1035
    %v1610 = vunpack.c.h.b16 %v1035
    %v1611 = vunpack.c.l.b16 %v1036
    %v1612 = vunpack.c.h.b16 %v1036
    %v1613 = vunpack.c.l.b16 %v1037
    %v1614 = vunpack.c.h.b16 %v1037
    %v1615 = vunpack.c.l.b16 %v1038
    %v1616 = vunpack.c.h.b16 %v1038
    %v1617 = vunpack.c.l.b16 %v1039
    %v1618 = vunpack.c.h.b16 %v1039
    %v1619 = vunpack.c.l.b16 %v1040
    %v1620 = vunpack.c.h.b16 %v1040
    %v1621 = vunpack.c.l.b16 %v1041
    %v1622 = vunpack.c.h.b16 %v1041
    %v1623 = vunpack.c.l.b16 %v1042
    %v1624 = vunpack.c.h.b16 %v1042
    %v1625 = vunpack.c.l.b16 %v1043
    %v1626 = vunpack.c.h.b16 %v1043
    %v1627 = vunpack.c.l.b16 %v1044
    %v1628 = vunpack.c.h.b16 %v1044
    %v1629 = vunpack.c.l.b16 %v1045
    %v1630 = vunpack.c.h.b16 %v1045
    %v1631 = vunpack.c.l.b16 %v1046
    %v1632 = vunpack.c.h.b16 %v1046
    %v1633 = vunpack.c.l.b16 %v1047
    %v1634 = vunpack.c.h.b16 %v1047
    %v1635 = vunpack.c.l.b16 %v1048
    %v1636 = vunpack.c.h.b16 %v1048
    %v1637 = vunpack.c.l.b16 %v1049
    %v1638 = vunpack.c.h.b16 %v1049
    %v1639 = vunpack.c.l.b16 %v1050
    %v1640 = vunpack.c.h.b16 %v1050
    %v1641 = vunpack.c.l.b16 %v1051
    %v1642 = vunpack.c.h.b16 %v1051
    %v1643 = vunpack.c.l.b16 %v1052
    %v1644 = vunpack.c.h.b16 %v1052
    %v1645 = vunpack.c.l.b16 %v1053
    %v1646 = vunpack.c.h.b16 %v1053
    %v1647 = vunpack.c.l.b16 %v1054
    %v1648 = vunpack.c.h.b16 %v1054
    %v1649 = vunpack.c.l.b16 %v1055
    %v1650 = vunpack.c.h.b16 %v1055
    %v1651 = vunpack.c.l.b16 %v1056
    %v1652 = vunpack.c.h.b16 %v1056
    %v1653 = vunpack.c.l.b16 %v1057
    %v1654 = vunpack.c.h.b16 %v1057
    %v1655 = vunpack.c.l.b16 %v1058
    %v1656 = vunpack.c.h.b16 %v1058
    %v1657 = vunpack.c.l.b16 %v1059
    %v1658 = vunpack.c.h.b16 %v1059
    %v1659 = vunpack.c.l.b16 %v1060
    %v1660 = vunpack.c.h.b16 %v1060
    %v1661 = vunpack.c.l.b16 %v1061
    %v1662 = vunpack.c.h.b16 %v1061
    %v1663 = vunpack.c.l.b16 %v1062
    %v1664 = vunpack.c.h.b16 %v1062
    %v1665 = vunpack.c.l.b16 %v1063
    %v1666 = vunpack.c.h.b16 %v1063
    %v1667 = vunpack.c.l.b16 %v1064
    %v1668 = vunpack.c.h.b16 %v1064
    %v1669 = vunpack.c.l.b16 %v1065
    %v1670 = vunpack.c.h.b16 %v1065
    %v1671 = vunpack.c.l.b16 %v1066
    %v1672 = vunpack.c.h.b16 %v1066
    %v1673 = vunpack.c.l.b16 %v1067
    %v1674 = vunpack.c.h.b16 %v1067
    %v1675 = vunpack.c.l.b16 %v1068
    %v1676 = vunpack.c.h.b16 %v1068
    %v1677 = vunpack.c.l.b16 %v1069
    %v1678 = vunpack.c.h.b16 %v1069
    %v1679 = vunpack.c.l.b16 %v1070
    %v1680 = vunpack.c.h.b16 %v1070
    %v1681 = vunpack.c.l.b16 %v1071
    %v1682 = vunpack.c.h.b16 %v1071
    %v1683 = vunpack.c.l.b16 %v1072
    %v1684 = vunpack.c.h.b16 %v1072
    %v1685 = vunpack.c.l.b16 %v1073
    %v1686 = vunpack.c.h.b16 %v1073
    %v1687 = vunpack.c.l.b16 %v1074
    %v1688 = vunpack.c.h.b16 %v1074
    %v1689 = vunpack.c.l.b16 %v1075
    %v1690 = vunpack.c.h.b16 %v1075
    %v1691 = vunpack.c.l.b16 %v1076
    %v1692 = vunpack.c.h.b16 %v1076
    %v1693 = vunpack.c.l.b16 %v1077
    %v1694 = vunpack.c.h.b16 %v1077
    %v1695 = vunpack.c.l.b16 %v1078
    %v1696 = vunpack.c.h.b16 %v1078
    %v1697 = vunpack.c.l.b16 %v1079
    %v1698 = vunpack.c.h.b16 %v1079
    %v1699 = vunpack.c.l.b16 %v1080
    %v1700 = vunpack.c.h.b16 %v1080
    %v1701 = vunpack.c.l.b16 %v1081
    %v1702 = vunpack.c.h.b16 %v1081
    %v1703 = vunpack.c.l.b16 %v1082
    %v1704 = vunpack.c.h.b16 %v1082
    %v1705 = vunpack.c.l.b16 %v1083
    %v1706 = vunpack.c.h.b16 %v1083
    %v1707 = vunpack.c.l.b16 %v1084
    %v1708 = vunpack.c.h.b16 %v1084
    %v1709 = vunpack.c.l.b16 %v1085
    %v1710 = vunpack.c.h.b16 %v1085
    %v1711 = vunpack.c.l.b16 %v1086
    %v1712 = vunpack.c.h.b16 %v1086
    %v1713 = vunpack.c.l.b16 %v1087
    %v1714 = vunpack.c.h.b16 %v1087
    %v1715 = vunpack.c.l.b16 %v1088
    %v1716 = vunpack.c.h.b16 %v1088
    %v1717 = vunpack.c.l.b16 %v1089
    %v1718 = vunpack.c.h.b16 %v1089
    %v1719 = vunpack.c.l.b16 %v1090
    %v1720 = vunpack.c.h.b16 %v1090
    %v1721 = vunpack.c.l.b16 %v1091
    %v1722 = vunpack.c.h.b16 %v1091
    %v1723 = vunpack.c.l.b16 %v1092
    %v1724 = vunpack.c.h.b16 %v1092
    %v1725 = vunpack.c.l.b16 %v1093
    %v1726 = vunpack.c.h.b16 %v1093
    %v1727 = vunpack.c.l.b16 %v1094
    %v1728 = vunpack.c.h.b16 %v1094
    %v1729 = vunpack.c.l.b16 %v1095
    %v1730 = vunpack.c.h.b16 %v1095
    %v1731 = vunpack.c.l.b16 %v1096
    %v1732 = vunpack.c.h.b16 %v1096
    %v1733 = vunpack.c.l.b16 %v1097
    %v1734 = vunpack.c.h.b16 %v1097
    %v1735 = vunpack.c.l.b16 %v1098
    %v1736 = vunpack.c.h.b16 %v1098
    %v1737 = vunpack.c.l.b16 %v1099
    %v1738 = vunpack.c.h.b16 %v1099
    %v1739 = vunpack.c.l.b16 %v1100
    %v1740 = vunpack.c.h.b16 %v1100
    %v1741 = vunpack.c.l.b16 %v1101
    %v1742 = vunpack.c.h.b16 %v1101
    %v1743 = vunpack.c.l.b16 %v1102
    %v1744 = vunpack.c.h.b16 %v1102
    %v1745 = vunpack.c.l.b16 %v1103
    %v1746 = vunpack.c.h.b16 %v1103
    %v1747 = vunpack.c.l.b16 %v1104
    %v1748 = vunpack.c.h.b16 %v1104
    %v1749 = vunpack.c.l.b16 %v1105
    %v1750 = vunpack.c.h.b16 %v1105
    %v1751 = vunpack.c.l.b16 %v1106
    %v1752 = vunpack.c.h.b16 %v1106
    %v1753 = vunpack.c.l.b16 %v1107
    %v1754 = vunpack.c.h.b16 %v1107
    %v1755 = vunpack.c.l.b16 %v1108
    %v1756 = vunpack.c.h.b16 %v1108
    %v1757 = vunpack.c.l.b16 %v1109
    %v1758 = vunpack.c.h.b16 %v1109
    %v1759 = vunpack.c.l.b16 %v1110
    %v1760 = vunpack.c.h.b16 %v1110
    %v1761 = vunpack.c.l.b16 %v1111
    %v1762 = vunpack.c.h.b16 %v1111
    %v1763 = vunpack.c.l.b16 %v1112
    %v1764 = vunpack.c.h.b16 %v1112
    %v1765 = vunpack.c.l.b16 %v1113
    %v1766 = vunpack.c.h.b16 %v1113
    %v1767 = vunpack.c.l.b16 %v1114
    %v1768 = vunpack.c.h.b16 %v1114
    %v1769 = vunpack.c.l.b16 %v1115
    %v1770 = vunpack.c.h.b16 %v1115
    %v1771 = vunpack.c.l.b16 %v1116
    %v1772 = vunpack.c.h.b16 %v1116
    %v1773 = vunpack.c.l.b16 %v1117
    %v1774 = vunpack.c.h.b16 %v1117
    %v1775 = vunpack.c.l.b16 %v1118
    %v1776 = vunpack.c.h.b16 %v1118
    %v1777 = vunpack.c.l.b16 %v1119
    %v1778 = vunpack.c.h.b16 %v1119
    %v1779 = vunpack.c.l.b16 %v1120
    %v1780 = vunpack.c.h.b16 %v1120
    %v1781 = vunpack.c.l.b16 %v1121
    %v1782 = vunpack.c.h.b16 %v1121
    %v1783 = vunpack.c.l.b16 %v1122
    %v1784 = vunpack.c.h.b16 %v1122
    %v1785 = vunpack.c.l.b16 %v1123
    %v1786 = vunpack.c.h.b16 %v1123
    %v1787 = vunpack.c.l.b16 %v1124
    %v1788 = vunpack.c.h.b16 %v1124
    %v1789 = vunpack.c.l.b16 %v1125
    %v1790 = vunpack.c.h.b16 %v1125
    %v1791 = vunpack.c.l.b16 %v1126
    %v1792 = vunpack.c.h.b16 %v1126
    %v1793 = vunpack.c.l.b16 %v1127
    %v1794 = vunpack.c.h.b16 %v1127
    %v1795 = vunpack.c.l.b16 %v1128
    %v1796 = vunpack.c.h.b16 %v1128
    %v1797 = vunpack.c.l.b16 %v1129
    %v1798 = vunpack.c.h.b16 %v1129
    %v1799 = vunpack.c.l.b16 %v1130
    %v1800 = vunpack.c.h.b16 %v1130
    %v1801 = vunpack.c.l.b16 %v1131
    %v1802 = vunpack.c.h.b16 %v1131
    %v1803 = vunpack.c.l.b16 %v1132
    %v1804 = vunpack.c.h.b16 %v1132
    %v1805 = vunpack.c.l.b16 %v1133
    %v1806 = vunpack.c.h.b16 %v1133
    %v1807 = vunpack.c.l.b16 %v1134
    %v1808 = vunpack.c.h.b16 %v1134
    %v1809 = vunpack.c.l.b16 %v1135
    %v1810 = vunpack.c.h.b16 %v1135
    %v1811 = vunpack.c.l.b16 %v1136
    %v1812 = vunpack.c.h.b16 %v1136
    %v1813 = vunpack.c.l.b16 %v1137
    %v1814 = vunpack.c.h.b16 %v1137
    %v1815 = vunpack.c.l.b16 %v1138
    %v1816 = vunpack.c.h.b16 %v1138
    %v1817 = vunpack.c.l.b16 %v1139
    %v1818 = vunpack.c.h.b16 %v1139
    %v1819 = vunpack.c.l.b16 %v1140
    %v1820 = vunpack.c.h.b16 %v1140
    %v1821 = vunpack.c.l.b16 %v1141
    %v1822 = vunpack.c.h.b16 %v1141
    %v1823 = vunpack.c.l.b16 %v1142
    %v1824 = vunpack.c.h.b16 %v1142
    %v1825 = vunpack.c.l.b16 %v1143
    %v1826 = vunpack.c.h.b16 %v1143
    %v1827 = vunpack.c.l.b16 %v1144
    %v1828 = vunpack.c.h.b16 %v1144
    %v1829 = vunpack.c.l.b16 %v1145
    %v1830 = vunpack.c.h.b16 %v1145
    %v1831 = vunpack.c.l.b16 %v1146
    %v1832 = vunpack.c.h.b16 %v1146
    %v1833 = vunpack.c.l.b16 %v1147
    %v1834 = vunpack.c.h.b16 %v1147
    %v1835 = vunpack.c.l.b16 %v1148
    %v1836 = vunpack.c.h.b16 %v1148
    %v1837 = vunpack.c.l.b16 %v1149
    %v1838 = vunpack.c.h.b16 %v1149
    %v1839 = vunpack.c.l.b16 %v1150
    %v1840 = vunpack.c.h.b16 %v1150
    %v1841 = vunpack.c.l.b16 %v1151
    %v1842 = vunpack.c.h.b16 %v1151
    %v1843 = vunpack.c.l.b16 %v1152
    %v1844 = vunpack.c.h.b16 %v1152
    %v1845 = vunpack.c.l.b16 %v1153
    %v1846 = vunpack.c.h.b16 %v1153
    %v1847 = vunpack.c.l.b16 %v1154
    %v1848 = vunpack.c.h.b16 %v1154
    %v1849 = vunpack.c.l.b16 %v1155
    %v1850 = vunpack.c.h.b16 %v1155
    %v1851 = vunpack.c.l.b16 %v1156
    %v1852 = vunpack.c.h.b16 %v1156
    %v1853 = vunpack.c.l.b16 %v1157
    %v1854 = vunpack.c.h.b16 %v1157
    %v1855 = vunpack.c.l.b16 %v1158
    %v1856 = vunpack.c.h.b16 %v1158
    %v1857 = vunpack.c.l.b16 %v1159
    %v1858 = vunpack.c.h.b16 %v1159
    %v1859 = vunpack.c.l.b16 %v1160
    %v1860 = vunpack.c.h.b16 %v1160
    %v1861 = vunpack.c.l.b16 %v1161
    %v1862 = vunpack.c.h.b16 %v1161
    %v1863 = vunpack.c.l.b16 %v1162
    %v1864 = vunpack.c.h.b16 %v1162
    %v1865 = vunpack.c.l.b16 %v1163
    %v1866 = vunpack.c.h.b16 %v1163
    %v1867 = vunpack.c.l.b16 %v1164
    %v1868 = vunpack.c.h.b16 %v1164
    %v1869 = vunpack.c.l.b16 %v1165
    %v1870 = vunpack.c.h.b16 %v1165
    %v1871 = vunpack.c.l.b16 %v1166
    %v1872 = vunpack.c.h.b16 %v1166
    %v1873 = vunpack.c.l.b16 %v1167
    %v1874 = vunpack.c.h.b16 %v1167
    %v1875 = vunpack.c.l.b16 %v1168
    %v1876 = vunpack.c.h.b16 %v1168
    %v1877 = vunpack.c.l.b16 %v1169
    %v1878 = vunpack.c.h.b16 %v1169
    %v1879 = vunpack.c.l.b16 %v1170
    %v1880 = vunpack.c.h.b16 %v1170
    %v1881 = vunpack.c.l.b16 %v1171
    %v1882 = vunpack.c.h.b16 %v1171
    %v1883 = vunpack.c.l.b16 %v1172
    %v1884 = vunpack.c.h.b16 %v1172
    %v1885 = vunpack.c.l.b16 %v1173
    %v1886 = vunpack.c.h.b16 %v1173
    %v1887 = vunpack.c.l.b16 %v1174
    %v1888 = vunpack.c.h.b16 %v1174
    %v1889 = vunpack.c.l.b16 %v1175
    %v1890 = vunpack.c.h.b16 %v1175
    %v1891 = vunpack.c.l.b16 %v1176
    %v1892 = vunpack.c.h.b16 %v1176
    %v1893 = vunpack.c.l.b16 %v1177
    %v1894 = vunpack.c.h.b16 %v1177
    %v1895 = vunpack.c.l.b16 %v1178
    %v1896 = vunpack.c.h.b16 %v1178
    %v1897 = vunpack.c.l.b16 %v1179
    %v1898 = vunpack.c.h.b16 %v1179
    %v1899 = vunpack.c.l.b16 %v1180
    %v1900 = vunpack.c.h.b16 %v1180
    %v1901 = vunpack.c.l.b16 %v1181
    %v1902 = vunpack.c.h.b16 %v1181
    %v1903 = vunpack.c.l.b16 %v1182
    %v1904 = vunpack.c.h.b16 %v1182
    %v1905 = vunpack.c.l.b16 %v1183
    %v1906 = vunpack.c.h.b16 %v1183
    %v1907 = vunpack.c.l.b16 %v1184
    %v1908 = vunpack.c.h.b16 %v1184
    %v1909 = vunpack.c.l.b16 %v1185
    %v1910 = vunpack.c.h.b16 %v1185
    %v1911 = vunpack.c.l.b16 %v1186
    %v1912 = vunpack.c.h.b16 %v1186
    %v1913 = vunpack.c.l.b16 %v1187
    %v1914 = vunpack.c.h.b16 %v1187
    %v1915 = vunpack.c.l.b16 %v1188
    %v1916 = vunpack.c.h.b16 %v1188
    %v1917 = vunpack.c.l.b16 %v1189
    %v1918 = vunpack.c.h.b16 %v1189
    %v1919 = vunpack.c.l.b16 %v1190
    %v1920 = vunpack.c.h.b16 %v1190
    %v1921 = vunpack.c.l.b16 %v1191
    %v1922 = vunpack.c.h.b16 %v1191
    %v1923 = vunpack.c.l.b16 %v1192
    %v1924 = vunpack.c.h.b16 %v1192
    %v1925 = vunpack.c.l.b16 %v1193
    %v1926 = vunpack.c.h.b16 %v1193
    %v1927 = vunpack.c.l.b16 %v1194
    %v1928 = vunpack.c.h.b16 %v1194
    %v1929 = vunpack.c.l.b16 %v1195
    %v1930 = vunpack.c.h.b16 %v1195
    %v1931 = vunpack.c.l.b16 %v1196
    %v1932 = vunpack.c.h.b16 %v1196
    %v1933 = vunpack.c.l.b16 %v1197
    %v1934 = vunpack.c.h.b16 %v1197
    %v1935 = vunpack.c.l.b16 %v1198
    %v1936 = vunpack.c.h.b16 %v1198
    %v1937 = vunpack.c.l.b16 %v1199
    %v1938 = vunpack.c.h.b16 %v1199
    %v1939 = vunpack.c.l.b16 %v1200
    %v1940 = vunpack.c.h.b16 %v1200
    %v1941 = vunpack.c.l.b16 %v1201
    %v1942 = vunpack.c.h.b16 %v1201
    %v1943 = vunpack.c.l.b16 %v1202
    %v1944 = vunpack.c.h.b16 %v1202
    %v1945 = vunpack.c.l.b16 %v1203
    %v1946 = vunpack.c.h.b16 %v1203
    %v1947 = vunpack.c.l.b16 %v1204
    %v1948 = vunpack.c.h.b16 %v1204
    %v1949 = vunpack.c.l.b16 %v1205
    %v1950 = vunpack.c.h.b16 %v1205
    %v1951 = vunpack.c.l.b16 %v1206
    %v1952 = vunpack.c.h.b16 %v1206
    %v1953 = vunpack.c.l.b16 %v1207
    %v1954 = vunpack.c.h.b16 %v1207
    %v1955 = vunpack.c.l.b16 %v1208
    %v1956 = vunpack.c.h.b16 %v1208
    %v1957 = vunpack.c.l.b16 %v1209
    %v1958 = vunpack.c.h.b16 %v1209
    %v1959 = vunpack.c.l.b16 %v1210
    %v1960 = vunpack.c.h.b16 %v1210
    %v1961 = vunpack.c.l.b16 %v1211
    %v1962 = vunpack.c.h.b16 %v1211
    %v1963 = vunpack.c.l.b16 %v1212
    %v1964 = vunpack.c.h.b16 %v1212
    %v1965 = vunpack.c.l.b16 %v1213
    %v1966 = vunpack.c.h.b16 %v1213
    %v1967 = vunpack.c.l.b16 %v1214
    %v1968 = vunpack.c.h.b16 %v1214
    %v1969 = vunpack.c.l.b16 %v1215
    %v1970 = vunpack.c.h.b16 %v1215
    %v1971 = vunpack.c.l.b16 %v1216
    %v1972 = vunpack.c.h.b16 %v1216
    %v1973 = vunpack.c.l.b16 %v1217
    %v1974 = vunpack.c.h.b16 %v1217
    %v1975 = vunpack.c.l.b16 %v1218
    %v1976 = vunpack.c.h.b16 %v1218
    %v1977 = vunpack.c.l.b16 %v1219
    %v1978 = vunpack.c.h.b16 %v1219
    %v1979 = vunpack.c.l.b16 %v1220
    %v1980 = vunpack.c.h.b16 %v1220
    %v1981 = vunpack.c.l.b16 %v1221
    %v1982 = vunpack.c.h.b16 %v1221
    %v1983 = vunpack.c.l.b16 %v1222
    %v1984 = vunpack.c.h.b16 %v1222
    %v1985 = vunpack.c.l.b16 %v1223
    %v1986 = vunpack.c.h.b16 %v1223
    %v1987 = vunpack.c.l.b16 %v1224
    %v1988 = vunpack.c.h.b16 %v1224
    %v1989 = vunpack.c.l.b16 %v1225
    %v1990 = vunpack.c.h.b16 %v1225
    %v1991 = vunpack.c.l.b16 %v1226
    %v1992 = vunpack.c.h.b16 %v1226
    %v1993 = vunpack.c.l.b16 %v1227
    %v1994 = vunpack.c.h.b16 %v1227
    %v1995 = vunpack.c.l.b16 %v1228
    %v1996 = vunpack.c.h.b16 %v1228
    %v1997 = vpack.c.b16 %v1493, %v1485
    %v1998 = vpack.c.b16 %v1494, %v1486
    %v1999 = vpack.c.b16 %v1495, %v1487
    %v2000 = vpack.c.b16 %v1496, %v1488
    %v2001 = vpack.c.b16 %v1497, %v1489
    %v2002 = vpack.c.b16 %v1498, %v1490
    %v2003 = vpack.c.b16 %v1499, %v1491
    %v2004 = vpack.c.b16 %v1500, %v1492
    %v2005 = vpack.c.b16 %v1509, %v1501
    %v2006 = vpack.c.b16 %v1510, %v1502
    %v2007 = vpack.c.b16 %v1511, %v1503
    %v2008 = vpack.c.b16 %v1512, %v1504
    %v2009 = vpack.c.b16 %v1513, %v1505
    %v2010 = vpack.c.b16 %v1514, %v1506
    %v2011 = vpack.c.b16 %v1515, %v1507
    %v2012 = vpack.c.b16 %v1516, %v1508
    %v2013 = vpack.c.b16 %v1525, %v1517
    %v2014 = vpack.c.b16 %v1526, %v1518
    %v2015 = vpack.c.b16 %v1527, %v1519
    %v2016 = vpack.c.b16 %v1528, %v1520
    %v2017 = vpack.c.b16 %v1529, %v1521
    %v2018 = vpack.c.b16 %v1530, %v1522
    %v2019 = vpack.c.b16 %v1531, %v1523
    %v2020 = vpack.c.b16 %v1532, %v1524
    %v2021 = vpack.c.b16 %v1541, %v1533
    %v2022 = vpack.c.b16 %v1542, %v1534
    %v2023 = vpack.c.b16 %v1543, %v1535
    %v2024 = vpack.c.b16 %v1544, %v1536
    %v2025 = vpack.c.b16 %v1545, %v1537
    %v2026 = vpack.c.b16 %v1546, %v1538
    %v2027 = vpack.c.b16 %v1547, %v1539
    %v2028 = vpack.c.b16 %v1548, %v1540
    %v2029 = vpack.c.b16 %v1557, %v1549
    %v2030 = vpack.c.b16 %v1558, %v1550
    %v2031 = vpack.c.b16 %v1559, %v1551
    %v2032 = vpack.c.b16 %v1560, %v1552
    %v2033 = vpack.c.b16 %v1561, %v1553
    %v2034 = vpack.c.b16 %v1562, %v1554
    %v2035 = vpack.c.b16 %v1563, %v1555
    %v2036 = vpack.c.b16 %v1564, %v1556
    %v2037 = vpack.c.b16 %v1573, %v1565
    %v2038 = vpack.c.b16 %v1574, %v1566
    %v2039 = vpack.c.b16 %v1575, %v1567
    %v2040 = vpack.c.b16 %v1576, %v1568
    %v2041 = vpack.c.b16 %v1577, %v1569
    %v2042 = vpack.c.b16 %v1578, %v1570
    %v2043 = vpack.c.b16 %v1579, %v1571
    %v2044 = vpack.c.b16 %v1580, %v1572
    %v2045 = vpack.c.b16 %v1589, %v1581
    %v2046 = vpack.c.b16 %v1590, %v1582
    %v2047 = vpack.c.b16 %v1591, %v1583
    %v2048 = vpack.c.b16 %v1592, %v1584
    %v2049 = vpack.c.b16 %v1593, %v1585
    %v2050 = vpack.c.b16 %v1594, %v1586
    %v2051 = vpack.c.b16 %v1595, %v1587
    %v2052 = vpack.c.b16 %v1596, %v1588
    %v2053 = vpack.c.b16 %v1605, %v1597
    %v2054 = vpack.c.b16 %v1606, %v1598
    %v2055 = vpack.c.b16 %v1607, %v1599
    %v2056 = vpack.c.b16 %v1608, %v1600
    %v2057 = vpack.c.b16 %v1609, %v1601
    %v2058 = vpack.c.b16 %v1610, %v1602
    %v2059 = vpack.c.b16 %v1611, %v1603
    %v2060 = vpack.c.b16 %v1612, %v1604
    %v2061 = vpack.c.b16 %v1621, %v1613
    %v2062 = vpack.c.b16 %v1622, %v1614
    %v2063 = vpack.c.b16 %v1623, %v1615
    %v2064 = vpack.c.b16 %v1624, %v1616
    %v2065 = vpack.c.b16 %v1625, %v1617
    %v2066 = vpack.c.b16 %v1626, %v1618
    %v2067 = vpack.c.b16 %v1627, %v1619
    %v2068 = vpack.c.b16 %v1628, %v1620
    %v2069 = vpack.c.b16 %v1637, %v1629
    %v2070 = vpack.c.b16 %v1638, %v1630
    %v2071 = vpack.c.b16 %v1639, %v1631
    %v2072 = vpack.c.b16 %v1640, %v1632
    %v2073 = vpack.c.b16 %v1641, %v1633
    %v2074 = vpack.c.b16 %v1642, %v1634
    %v2075 = vpack.c.b16 %v1643, %v1635
    %v2076 = vpack.c.b16 %v1644, %v1636
    %v2077 = vpack.c.b16 %v1653, %v1645
    %v2078 = vpack.c.b16 %v1654, %v1646
    %v2079 = vpack.c.b16 %v1655, %v1647
    %v2080 = vpack.c.b16 %v1656, %v1648
    %v2081 = vpack.c.b16 %v1657, %v1649
    %v2082 = vpack.c.b16 %v1658, %v1650
    %v2083 = vpack.c.b16 %v1659, %v1651
    %v2084 = vpack.c.b16 %v1660, %v1652
    %v2085 = vpack.c.b16 %v1669, %v1661
    %v2086 = vpack.c.b16 %v1670, %v1662
    %v2087 = vpack.c.b16 %v1671, %v1663
    %v2088 = vpack.c.b16 %v1672, %v1664
    %v2089 = vpack.c.b16 %v1673, %v1665
    %v2090 = vpack.c.b16 %v1674, %v1666
    %v2091 = vpack.c.b16 %v1675, %v1667
    %v2092 = vpack.c.b16 %v1676, %v1668
    %v2093 = vpack.c.b16 %v1685, %v1677
    %v2094 = vpack.c.b16 %v1686, %v1678
    %v2095 = vpack.c.b16 %v1687, %v1679
    %v2096 = vpack.c.b16 %v1688, %v1680
    %v2097 = vpack.c.b16 %v1689, %v1681
    %v2098 = vpack.c.b16 %v1690, %v1682
    %v2099 = vpack.c.b16 %v1691, %v1683
    %v2100 = vpack.c.b16 %v1692, %v1684
    %v2101 = vpack.c.b16 %v1701, %v1693
    %v2102 = vpack.c.b16 %v1702, %v1694
    %v2103 = vpack.c.b16 %v1703, %v1695
    %v2104 = vpack.c.b16 %v1704, %v1696
    %v2105 = vpack.c.b16 %v1705, %v1697
    %v2106 = vpack.c.b16 %v1706, %v1698
    %v2107 = vpack.c.b16 %v1707, %v1699
    %v2108 = vpack.c.b16 %v1708, %v1700
    %v2109 = vpack.c.b16 %v1717, %v1709
    %v2110 = vpack.c.b16 %v1718, %v1710
    %v2111 = vpack.c.b16 %v1719, %v1711
    %v2112 = vpack.c.b16 %v1720, %v1712
    %v2113 = vpack.c.b16 %v1721, %v1713
    %v2114 = vpack.c.b16 %v1722, %v1714
    %v2115 = vpack.c.b16 %v1723, %v1715
    %v2116 = vpack.c.b16 %v1724, %v1716
    %v2117 = vpack.c.b16 %v1733, %v1725
    %v2118 = vpack.c.b16 %v1734, %v1726
    %v2119 = vpack.c.b16 %v1735, %v1727
    %v2120 = vpack.c.b16 %v1736, %v1728
    %v2121 = vpack.c.b16 %v1737, %v1729
    %v2122 = vpack.c.b16 %v1738, %v1730
    %v2123 = vpack.c.b16 %v1739, %v1731
    %v2124 = vpack.c.b16 %v1740, %v1732
    %v2125 = vpack.c.b16 %v1749, %v1741
    %v2126 = vpack.c.b16 %v1750, %v1742
    %v2127 = vpack.c.b16 %v1751, %v1743
    %v2128 = vpack.c.b16 %v1752, %v1744
    %v2129 = vpack.c.b16 %v1753, %v1745
    %v2130 = vpack.c.b16 %v1754, %v1746
    %v2131 = vpack.c.b16 %v1755, %v1747
    %v2132 = vpack.c.b16 %v1756, %v1748
    %v2133 = vpack.c.b16 %v1765, %v1757
    %v2134 = vpack.c.b16 %v1766, %v1758
    %v2135 = vpack.c.b16 %v1767, %v1759
    %v2136 = vpack.c.b16 %v1768, %v1760
    %v2137 = vpack.c.b16 %v1769, %v1761
    %v2138 = vpack.c.b16 %v1770, %v1762
    %v2139 = vpack.c.b16 %v1771, %v1763
    %v2140 = vpack.c.b16 %v1772, %v1764
    %v2141 = vpack.c.b16 %v1781, %v1773
    %v2142 = vpack.c.b16 %v1782, %v1774
    %v2143 = vpack.c.b16 %v1783, %v1775
    %v2144 = vpack.c.b16 %v1784, %v1776
    %v2145 = vpack.c.b16 %v1785, %v1777
    %v2146 = vpack.c.b16 %v1786, %v1778
    %v2147 = vpack.c.b16 %v1787, %v1779
    %v2148 = vpack.c.b16 %v1788, %v1780
    %v2149 = vpack.c.b16 %v1797, %v1789
    %v2150 = vpack.c.b16 %v1798, %v1790
    %v2151 = vpack.c.b16 %v1799, %v1791
    %v2152 = vpack.c.b16 %v1800, %v1792
    %v2153 = vpack.c.b16 %v1801, %v1793
    %v2154 = vpack.c.b16 %v1802, %v1794
    %v2155 = vpack.c.b16 %v1803, %v1795
    %v2156 = vpack.c.b16 %v1804, %v1796
    %v2157 = vpack.c.b16 %v1813, %v1805
    %v2158 = vpack.c.b16 %v1814, %v1806
    %v2159 = vpack.c.b16 %v1815, %v1807
    %v2160 = vpack.c.b16 %v1816, %v1808
    %v2161 = vpack.c.b16 %v1817, %v1809
    %v2162 = vpack.c.b16 %v1818, %v1810
    %v2163 = vpack.c.b16 %v1819, %v1811
    %v2164 = vpack.c.b16 %v1820, %v1812
    %v2165 = vpack.c.b16 %v1829, %v1821
    %v2166 = vpack.c.b16 %v1830, %v1822
    %v2167 = vpack.c.b16 %v1831, %v1823
    %v2168 = vpack.c.b16 %v1832, %v1824
    %v2169 = vpack.c.b16 %v1833, %v1825
    %v2170 = vpack.c.b16 %v1834, %v1826
    %v2171 = vpack.c.b16 %v1835, %v1827
    %v2172 = vpack.c.b16 %v1836, %v1828
    %v2173 = vpack.c.b16 %v1845, %v1837
    %v2174 = vpack.c.b16 %v1846, %v1838
    %v2175 = vpack.c.b16 %v1847, %v1839
    %v2176 = vpack.c.b16 %v1848, %v1840
    %v2177 = vpack.c.b16 %v1849, %v1841
    %v2178 = vpack.c.b16 %v1850, %v1842
    %v2179 = vpack.c.b16 %v1851, %v1843
    %v2180 = vpack.c.b16 %v1852, %v1844
    %v2181 = vpack.c.b16 %v1861, %v1853
    %v2182 = vpack.c.b16 %v1862, %v1854
    %v2183 = vpack.c.b16 %v1863, %v1855
    %v2184 = vpack.c.b16 %v1864, %v1856
    %v2185 = vpack.c.b16 %v1865, %v1857
    %v2186 = vpack.c.b16 %v1866, %v1858
    %v2187 = vpack.c.b16 %v1867, %v1859
    %v2188 = vpack.c.b16 %v1868, %v1860
    %v2189 = vpack.c.b16 %v1877, %v1869
    %v2190 = vpack.c.b16 %v1878, %v1870
    %v2191 = vpack.c.b16 %v1879, %v1871
    %v2192 = vpack.c.b16 %v1880, %v1872
    %v2193 = vpack.c.b16 %v1881, %v1873
    %v2194 = vpack.c.b16 %v1882, %v1874
    %v2195 = vpack.c.b16 %v1883, %v1875
    %v2196 = vpack.c.b16 %v1884, %v1876
    %v2197 = vpack.c.b16 %v1893, %v1885
    %v2198 = vpack.c.b16 %v1894, %v1886
    %v2199 = vpack.c.b16 %v1895, %v1887
    %v2200 = vpack.c.b16 %v1896, %v1888
    %v2201 = vpack.c.b16 %v1897, %v1889
    %v2202 = vpack.c.b16 %v1898, %v1890
    %v2203 = vpack.c.b16 %v1899, %v1891
    %v2204 = vpack.c.b16 %v1900, %v1892
    %v2205 = vpack.c.b16 %v1909, %v1901
    %v2206 = vpack.c.b16 %v1910, %v1902
    %v2207 = vpack.c.b16 %v1911, %v1903
    %v2208 = vpack.c.b16 %v1912, %v1904
    %v2209 = vpack.c.b16 %v1913, %v1905
    %v2210 = vpack.c.b16 %v1914, %v1906
    %v2211 = vpack.c.b16 %v1915, %v1907
    %v2212 = vpack.c.b16 %v1916, %v1908
    %v2213 = vpack.c.b16 %v1925, %v1917
    %v2214 = vpack.c.b16 %v1926, %v1918
    %v2215 = vpack.c.b16 %v1927, %v1919
    %v2216 = vpack.c.b16 %v1928, %v1920
    %v2217 = vpack.c.b16 %v1929, %v1921
    %v2218 = vpack.c.b16 %v1930, %v1922
    %v2219 = vpack.c.b16 %v1931, %v1923
    %v2220 = vpack.c.b16 %v1932, %v1924
    %v2221 = vpack.c.b16 %v1941, %v1933
    %v2222 = vpack.c.b16 %v1942, %v1934
    %v2223 = vpack.c.b16 %v1943, %v1935
    %v2224 = vpack.c.b16 %v1944, %v1936
    %v2225 = vpack.c.b16 %v1945, %v1937
    %v2226 = vpack.c.b16 %v1946, %v1938
    %v2227 = vpack.c.b16 %v1947, %v1939
    %v2228 = vpack.c.b16 %v1948, %v1940
    %v2229 = vpack.c.b16 %v1957, %v1949
    %v2230 = vpack.c.b16 %v1958, %v1950
    %v2231 = vpack.c.b16 %v1959, %v1951
    %v2232 = vpack.c.b16 %v1960, %v1952
    %v2233 = vpack.c.b16 %v1961, %v1953
    %v2234 = vpack.c.b16 %v1962, %v1954
    %v2235 = vpack.c.b16 %v1963, %v1955
    %v2236 = vpack.c.b16 %v1964, %v1956
    %v2237 = vpack.c.b16 %v1973, %v1965
    %v2238 = vpack.c.b16 %v1974, %v1966
    %v2239 = vpack.c.b16 %v1975, %v1967
    %v2240 = vpack.c.b16 %v1976, %v1968
    %v2241 = vpack.c.b16 %v1977, %v1969
    %v2242 = vpack.c.b16 %v1978, %v1970
    %v2243 = vpack.c.b16 %v1979, %v1971
    %v2244 = vpack.c.b16 %v1980, %v1972
    %v2245 = vpack.c.b16 %v1989, %v1981
    %v2246 = vpack.c.b16 %v1990, %v1982
    %v2247 = vpack.c.b16 %v1991, %v1983
    %v2248 = vpack.c.b16 %v1992, %v1984
    %v2249 = vpack.c.b16 %v1993, %v1985
    %v2250 = vpack.c.b16 %v1994, %v1986
    %v2251 = vpack.c.b16 %v1995, %v1987
    %v2252 = vpack.c.b16 %v1996, %v1988
    %2509 = vmatprep.subr.bf16.mxu0 %v2054
    %2510 = vmatpush1.bf16.msra.mxu0 %v2053
    %2511 = vmatprep.subr.bf16.mxu0 %v2046
    %2512 = vmatpush1.bf16.msra.mxu0 %v2045
    %2513 = vmatprep.subr.bf16.mxu0 %v2038
    %2514 = vmatpush1.bf16.msra.mxu0 %v2037
    %2515 = vmatprep.subr.bf16.mxu0 %v2030
    %2516 = vmatpush1.bf16.msra.mxu0 %v2029
    %2517 = vmatprep.subr.bf16.mxu0 %v2022
    %2518 = vmatpush1.bf16.msra.mxu0 %v2021
    %2519 = vmatprep.subr.bf16.mxu0 %v2014
    %2520 = vmatpush1.bf16.msra.mxu0 %v2013
    %2521 = vmatprep.subr.bf16.mxu0 %v2006
    %2522 = vmatpush1.bf16.msra.mxu0 %v2005
    %2523 = vmatprep.subr.bf16.mxu0 %v1998
    %2524 = vmatpush1.bf16.msra.mxu0 %v1997
    %2525 = vmatprep.subr.bf16.mxu0 %v2118
    %2526 = vmatpush2.bf16.msra.mxu0 %v2117
    %2527 = vmatprep.subr.bf16.mxu0 %v2110
    %2528 = vmatpush2.bf16.msra.mxu0 %v2109
    %2529 = vmatprep.subr.bf16.mxu0 %v2102
    %2530 = vmatpush2.bf16.msra.mxu0 %v2101
    %2531 = vmatprep.subr.bf16.mxu0 %v2094
    %2532 = vmatpush2.bf16.msra.mxu0 %v2093
    %2533 = vmatprep.subr.bf16.mxu0 %v2086
    %2534 = vmatpush2.bf16.msra.mxu0 %v2085
    %2535 = vmatprep.subr.bf16.mxu0 %v2078
    %2536 = vmatpush2.bf16.msra.mxu0 %v2077
    %2537 = vmatprep.subr.bf16.mxu0 %v2070
    %2538 = vmatpush2.bf16.msra.mxu0 %v2069
    %2539 = vmatprep.subr.bf16.mxu0 %v2062
    %2540 = vmatpush2.bf16.msra.mxu0 %v2061
    %2541 = vmatprep.mubr.bf16.mxu0 %v970
    %2542 = vmatmul.mubr.bf16.gmra.mxu0 %v969
    %v2543 = vpop.f32.mrf.mxu0
    %v2544 = vadd.f32 0.0, %v2543
    %v2545 = vpop.f32.mrf.mxu0
    %v2546 = vadd.f32 0.0, %v2545
    %v2547 = vpop.f32.mrf.mxu0
    %v2548 = vpop.f32.mrf.mxu0
    %2549 = vdwg.mxu0
    %2550 = vmatprep.subr.bf16.mxu0 %v2182
    %2551 = vmatpush1.bf16.msra.mxu0 %v2181
    %2552 = vmatprep.subr.bf16.mxu0 %v2174
    %2553 = vmatpush1.bf16.msra.mxu0 %v2173
    %2554 = vmatprep.subr.bf16.mxu0 %v2166
    %2555 = vmatpush1.bf16.msra.mxu0 %v2165
    %2556 = vmatprep.subr.bf16.mxu0 %v2158
    %2557 = vmatpush1.bf16.msra.mxu0 %v2157
    %2558 = vmatprep.subr.bf16.mxu0 %v2150
    %2559 = vmatpush1.bf16.msra.mxu0 %v2149
    %2560 = vmatprep.subr.bf16.mxu0 %v2142
    %2561 = vmatpush1.bf16.msra.mxu0 %v2141
    %2562 = vmatprep.subr.bf16.mxu0 %v2134
    %2563 = vmatpush1.bf16.msra.mxu0 %v2133
    %2564 = vmatprep.subr.bf16.mxu0 %v2126
    %2565 = vmatpush1.bf16.msra.mxu0 %v2125
    %2566 = vmatprep.subr.bf16.mxu0 %v2246
    %2567 = vmatpush2.bf16.msra.mxu0 %v2245
    %2568 = vmatprep.subr.bf16.mxu0 %v2238
    %2569 = vmatpush2.bf16.msra.mxu0 %v2237
    %2570 = vmatprep.subr.bf16.mxu0 %v2230
    %2571 = vmatpush2.bf16.msra.mxu0 %v2229
    %2572 = vmatprep.subr.bf16.mxu0 %v2222
    %2573 = vmatpush2.bf16.msra.mxu0 %v2221
    %2574 = vmatprep.subr.bf16.mxu0 %v2214
    %2575 = vmatpush2.bf16.msra.mxu0 %v2213
    %2576 = vmatprep.subr.bf16.mxu0 %v2206
    %2577 = vmatpush2.bf16.msra.mxu0 %v2205
    %2578 = vmatprep.subr.bf16.mxu0 %v2198
    %2579 = vmatpush2.bf16.msra.mxu0 %v2197
    %2580 = vmatprep.subr.bf16.mxu0 %v2190
    %2581 = vmatpush2.bf16.msra.mxu0 %v2189
    %2582 = vmatprep.mubr.bf16.mxu0 %v972
    %2583 = vmatmul.mubr.bf16.gmra.mxu0 %v971
    %v2584 = vpop.f32.mrf.mxu0
    %v2585 = vadd.f32 %v2544, %v2584
    %v2586 = vpop.f32.mrf.mxu0
    %v2587 = vadd.f32 %v2546, %v2586
    %v2588 = vpop.f32.mrf.mxu0
    %v2589 = vpop.f32.mrf.mxu0
    %2590 = vdwg.mxu0
    %2591 = vmatprep.subr.bf16.mxu0 %v2056
    %2592 = vmatpush1.bf16.msra.mxu0 %v2055
    %2593 = vmatprep.subr.bf16.mxu0 %v2048
    %2594 = vmatpush1.bf16.msra.mxu0 %v2047
    %2595 = vmatprep.subr.bf16.mxu0 %v2040
    %2596 = vmatpush1.bf16.msra.mxu0 %v2039
    %2597 = vmatprep.subr.bf16.mxu0 %v2032
    %2598 = vmatpush1.bf16.msra.mxu0 %v2031
    %2599 = vmatprep.subr.bf16.mxu0 %v2024
    %2600 = vmatpush1.bf16.msra.mxu0 %v2023
    %2601 = vmatprep.subr.bf16.mxu0 %v2016
    %2602 = vmatpush1.bf16.msra.mxu0 %v2015
    %2603 = vmatprep.subr.bf16.mxu0 %v2008
    %2604 = vmatpush1.bf16.msra.mxu0 %v2007
    %2605 = vmatprep.subr.bf16.mxu0 %v2000
    %2606 = vmatpush1.bf16.msra.mxu0 %v1999
    %2607 = vmatprep.subr.bf16.mxu0 %v2120
    %2608 = vmatpush2.bf16.msra.mxu0 %v2119
    %2609 = vmatprep.subr.bf16.mxu0 %v2112
    %2610 = vmatpush2.bf16.msra.mxu0 %v2111
    %2611 = vmatprep.subr.bf16.mxu0 %v2104
    %2612 = vmatpush2.bf16.msra.mxu0 %v2103
    %2613 = vmatprep.subr.bf16.mxu0 %v2096
    %2614 = vmatpush2.bf16.msra.mxu0 %v2095
    %2615 = vmatprep.subr.bf16.mxu0 %v2088
    %2616 = vmatpush2.bf16.msra.mxu0 %v2087
    %2617 = vmatprep.subr.bf16.mxu0 %v2080
    %2618 = vmatpush2.bf16.msra.mxu0 %v2079
    %2619 = vmatprep.subr.bf16.mxu0 %v2072
    %2620 = vmatpush2.bf16.msra.mxu0 %v2071
    %2621 = vmatprep.subr.bf16.mxu0 %v2064
    %2622 = vmatpush2.bf16.msra.mxu0 %v2063
    %2623 = vmatprep.mubr.bf16.mxu0 %v970
    %2624 = vmatmul.mubr.bf16.gmra.mxu0 %v969
    %v2625 = vpop.f32.mrf.mxu0
    %v2626 = vadd.f32 0.0, %v2625
    %v2627 = vpop.f32.mrf.mxu0
    %v2628 = vadd.f32 0.0, %v2627
    %v2629 = vpop.f32.mrf.mxu0
    %v2630 = vpop.f32.mrf.mxu0
    %2631 = vdwg.mxu0
    %2632 = vmatprep.subr.bf16.mxu0 %v2184
    %2633 = vmatpush1.bf16.msra.mxu0 %v2183
    %2634 = vmatprep.subr.bf16.mxu0 %v2176
    %2635 = vmatpush1.bf16.msra.mxu0 %v2175
    %2636 = vmatprep.subr.bf16.mxu0 %v2168
    %2637 = vmatpush1.bf16.msra.mxu0 %v2167
    %2638 = vmatprep.subr.bf16.mxu0 %v2160
    %2639 = vmatpush1.bf16.msra.mxu0 %v2159
    %2640 = vmatprep.subr.bf16.mxu0 %v2152
    %2641 = vmatpush1.bf16.msra.mxu0 %v2151
    %2642 = vmatprep.subr.bf16.mxu0 %v2144
    %2643 = vmatpush1.bf16.msra.mxu0 %v2143
    %2644 = vmatprep.subr.bf16.mxu0 %v2136
    %2645 = vmatpush1.bf16.msra.mxu0 %v2135
    %2646 = vmatprep.subr.bf16.mxu0 %v2128
    %2647 = vmatpush1.bf16.msra.mxu0 %v2127
    %2648 = vmatprep.subr.bf16.mxu0 %v2248
    %2649 = vmatpush2.bf16.msra.mxu0 %v2247
    %2650 = vmatprep.subr.bf16.mxu0 %v2240
    %2651 = vmatpush2.bf16.msra.mxu0 %v2239
    %2652 = vmatprep.subr.bf16.mxu0 %v2232
    %2653 = vmatpush2.bf16.msra.mxu0 %v2231
    %2654 = vmatprep.subr.bf16.mxu0 %v2224
    %2655 = vmatpush2.bf16.msra.mxu0 %v2223
    %2656 = vmatprep.subr.bf16.mxu0 %v2216
    %2657 = vmatpush2.bf16.msra.mxu0 %v2215
    %2658 = vmatprep.subr.bf16.mxu0 %v2208
    %2659 = vmatpush2.bf16.msra.mxu0 %v2207
    %2660 = vmatprep.subr.bf16.mxu0 %v2200
    %2661 = vmatpush2.bf16.msra.mxu0 %v2199
    %2662 = vmatprep.subr.bf16.mxu0 %v2192
    %2663 = vmatpush2.bf16.msra.mxu0 %v2191
    %2664 = vmatprep.mubr.bf16.mxu0 %v972
    %2665 = vmatmul.mubr.bf16.gmra.mxu0 %v971
    %v2666 = vpop.f32.mrf.mxu0
    %v2667 = vadd.f32 %v2626, %v2666
    %v2668 = vpop.f32.mrf.mxu0
    %v2669 = vadd.f32 %v2628, %v2668
    %v2670 = vpop.f32.mrf.mxu0
    %v2671 = vpop.f32.mrf.mxu0
    %2672 = vdwg.mxu0
    %2673 = vmatprep.subr.bf16.mxu0 %v2058
    %2674 = vmatpush1.bf16.msra.mxu0 %v2057
    %2675 = vmatprep.subr.bf16.mxu0 %v2050
    %2676 = vmatpush1.bf16.msra.mxu0 %v2049
    %2677 = vmatprep.subr.bf16.mxu0 %v2042
    %2678 = vmatpush1.bf16.msra.mxu0 %v2041
    %2679 = vmatprep.subr.bf16.mxu0 %v2034
    %2680 = vmatpush1.bf16.msra.mxu0 %v2033
    %2681 = vmatprep.subr.bf16.mxu0 %v2026
    %2682 = vmatpush1.bf16.msra.mxu0 %v2025
    %2683 = vmatprep.subr.bf16.mxu0 %v2018
    %2684 = vmatpush1.bf16.msra.mxu0 %v2017
    %2685 = vmatprep.subr.bf16.mxu0 %v2010
    %2686 = vmatpush1.bf16.msra.mxu0 %v2009
    %2687 = vmatprep.subr.bf16.mxu0 %v2002
    %2688 = vmatpush1.bf16.msra.mxu0 %v2001
    %2689 = vmatprep.subr.bf16.mxu0 %v2122
    %2690 = vmatpush2.bf16.msra.mxu0 %v2121
    %2691 = vmatprep.subr.bf16.mxu0 %v2114
    %2692 = vmatpush2.bf16.msra.mxu0 %v2113
    %2693 = vmatprep.subr.bf16.mxu0 %v2106
    %2694 = vmatpush2.bf16.msra.mxu0 %v2105
    %2695 = vmatprep.subr.bf16.mxu0 %v2098
    %2696 = vmatpush2.bf16.msra.mxu0 %v2097
    %2697 = vmatprep.subr.bf16.mxu0 %v2090
    %2698 = vmatpush2.bf16.msra.mxu0 %v2089
    %2699 = vmatprep.subr.bf16.mxu0 %v2082
    %2700 = vmatpush2.bf16.msra.mxu0 %v2081
    %2701 = vmatprep.subr.bf16.mxu0 %v2074
    %2702 = vmatpush2.bf16.msra.mxu0 %v2073
    %2703 = vmatprep.subr.bf16.mxu0 %v2066
    %2704 = vmatpush2.bf16.msra.mxu0 %v2065
    %2705 = vmatprep.mubr.bf16.mxu0 %v970
    %2706 = vmatmul.mubr.bf16.gmra.mxu0 %v969
    %v2707 = vpop.f32.mrf.mxu0
    %v2708 = vadd.f32 0.0, %v2707
    %v2709 = vpop.f32.mrf.mxu0
    %v2710 = vadd.f32 0.0, %v2709
    %v2711 = vpop.f32.mrf.mxu0
    %v2712 = vpop.f32.mrf.mxu0
    %2713 = vdwg.mxu0
    %2714 = vmatprep.subr.bf16.mxu0 %v2186
    %2715 = vmatpush1.bf16.msra.mxu0 %v2185
    %2716 = vmatprep.subr.bf16.mxu0 %v2178
    %2717 = vmatpush1.bf16.msra.mxu0 %v2177
    %2718 = vmatprep.subr.bf16.mxu0 %v2170
    %2719 = vmatpush1.bf16.msra.mxu0 %v2169
    %2720 = vmatprep.subr.bf16.mxu0 %v2162
    %2721 = vmatpush1.bf16.msra.mxu0 %v2161
    %2722 = vmatprep.subr.bf16.mxu0 %v2154
    %2723 = vmatpush1.bf16.msra.mxu0 %v2153
    %2724 = vmatprep.subr.bf16.mxu0 %v2146
    %2725 = vmatpush1.bf16.msra.mxu0 %v2145
    %2726 = vmatprep.subr.bf16.mxu0 %v2138
    %2727 = vmatpush1.bf16.msra.mxu0 %v2137
    %2728 = vmatprep.subr.bf16.mxu0 %v2130
    %2729 = vmatpush1.bf16.msra.mxu0 %v2129
    %2730 = vmatprep.subr.bf16.mxu0 %v2250
    %2731 = vmatpush2.bf16.msra.mxu0 %v2249
    %2732 = vmatprep.subr.bf16.mxu0 %v2242
    %2733 = vmatpush2.bf16.msra.mxu0 %v2241
    %2734 = vmatprep.subr.bf16.mxu0 %v2234
    %2735 = vmatpush2.bf16.msra.mxu0 %v2233
    %2736 = vmatprep.subr.bf16.mxu0 %v2226
    %2737 = vmatpush2.bf16.msra.mxu0 %v2225
    %2738 = vmatprep.subr.bf16.mxu0 %v2218
    %2739 = vmatpush2.bf16.msra.mxu0 %v2217
    %2740 = vmatprep.subr.bf16.mxu0 %v2210
    %2741 = vmatpush2.bf16.msra.mxu0 %v2209
    %2742 = vmatprep.subr.bf16.mxu0 %v2202
    %2743 = vmatpush2.bf16.msra.mxu0 %v2201
    %2744 = vmatprep.subr.bf16.mxu0 %v2194
    %2745 = vmatpush2.bf16.msra.mxu0 %v2193
    %2746 = vmatprep.mubr.bf16.mxu0 %v972
    %2747 = vmatmul.mubr.bf16.gmra.mxu0 %v971
    %v2748 = vpop.f32.mrf.mxu0
    %v2749 = vadd.f32 %v2708, %v2748
    %v2750 = vpop.f32.mrf.mxu0
    %v2751 = vadd.f32 %v2710, %v2750
    %v2752 = vpop.f32.mrf.mxu0
    %v2753 = vpop.f32.mrf.mxu0
    %2754 = vdwg.mxu0
    %2755 = vmatprep.subr.bf16.mxu0 %v2060
    %2756 = vmatpush1.bf16.msra.mxu0 %v2059
    %2757 = vmatprep.subr.bf16.mxu0 %v2052
    %2758 = vmatpush1.bf16.msra.mxu0 %v2051
    %2759 = vmatprep.subr.bf16.mxu0 %v2044
    %2760 = vmatpush1.bf16.msra.mxu0 %v2043
    %2761 = vmatprep.subr.bf16.mxu0 %v2036
    %2762 = vmatpush1.bf16.msra.mxu0 %v2035
    %2763 = vmatprep.subr.bf16.mxu0 %v2028
    %2764 = vmatpush1.bf16.msra.mxu0 %v2027
    %2765 = vmatprep.subr.bf16.mxu0 %v2020
    %2766 = vmatpush1.bf16.msra.mxu0 %v2019
    %2767 = vmatprep.subr.bf16.mxu0 %v2012
    %2768 = vmatpush1.bf16.msra.mxu0 %v2011
    %2769 = vmatprep.subr.bf16.mxu0 %v2004
    %2770 = vmatpush1.bf16.msra.mxu0 %v2003
    %2771 = vmatprep.subr.bf16.mxu0 %v2124
    %2772 = vmatpush2.bf16.msra.mxu0 %v2123
    %2773 = vmatprep.subr.bf16.mxu0 %v2116
    %2774 = vmatpush2.bf16.msra.mxu0 %v2115
    %2775 = vmatprep.subr.bf16.mxu0 %v2108
    %2776 = vmatpush2.bf16.msra.mxu0 %v2107
    %2777 = vmatprep.subr.bf16.mxu0 %v2100
    %2778 = vmatpush2.bf16.msra.mxu0 %v2099
    %2779 = vmatprep.subr.bf16.mxu0 %v2092
    %2780 = vmatpush2.bf16.msra.mxu0 %v2091
    %2781 = vmatprep.subr.bf16.mxu0 %v2084
    %2782 = vmatpush2.bf16.msra.mxu0 %v2083
    %2783 = vmatprep.subr.bf16.mxu0 %v2076
    %2784 = vmatpush2.bf16.msra.mxu0 %v2075
    %2785 = vmatprep.subr.bf16.mxu0 %v2068
    %2786 = vmatpush2.bf16.msra.mxu0 %v2067
    %2787 = vmatprep.mubr.bf16.mxu0 %v970
    %2788 = vmatmul.mubr.bf16.gmra.mxu0 %v969
    %v2789 = vpop.f32.mrf.mxu0
    %v2790 = vadd.f32 0.0, %v2789
    %v2791 = vpop.f32.mrf.mxu0
    %v2792 = vadd.f32 0.0, %v2791
    %v2793 = vpop.f32.mrf.mxu0
    %v2794 = vpop.f32.mrf.mxu0
    %2795 = vdwg.mxu0
    %2796 = vmatprep.subr.bf16.mxu0 %v2188
    %2797 = vmatpush1.bf16.msra.mxu0 %v2187
    %2798 = vmatprep.subr.bf16.mxu0 %v2180
    %2799 = vmatpush1.bf16.msra.mxu0 %v2179
    %2800 = vmatprep.subr.bf16.mxu0 %v2172
    %2801 = vmatpush1.bf16.msra.mxu0 %v2171
    %2802 = vmatprep.subr.bf16.mxu0 %v2164
    %2803 = vmatpush1.bf16.msra.mxu0 %v2163
    %2804 = vmatprep.subr.bf16.mxu0 %v2156
    %2805 = vmatpush1.bf16.msra.mxu0 %v2155
    %2806 = vmatprep.subr.bf16.mxu0 %v2148
    %2807 = vmatpush1.bf16.msra.mxu0 %v2147
    %2808 = vmatprep.subr.bf16.mxu0 %v2140
    %2809 = vmatpush1.bf16.msra.mxu0 %v2139
    %2810 = vmatprep.subr.bf16.mxu0 %v2132
    %2811 = vmatpush1.bf16.msra.mxu0 %v2131
    %2812 = vmatprep.subr.bf16.mxu0 %v2252
    %2813 = vmatpush2.bf16.msra.mxu0 %v2251
    %2814 = vmatprep.subr.bf16.mxu0 %v2244
    %2815 = vmatpush2.bf16.msra.mxu0 %v2243
    %2816 = vmatprep.subr.bf16.mxu0 %v2236
    %2817 = vmatpush2.bf16.msra.mxu0 %v2235
    %2818 = vmatprep.subr.bf16.mxu0 %v2228
    %2819 = vmatpush2.bf16.msra.mxu0 %v2227
    %2820 = vmatprep.subr.bf16.mxu0 %v2220
    %2821 = vmatpush2.bf16.msra.mxu0 %v2219
    %2822 = vmatprep.subr.bf16.mxu0 %v2212
    %2823 = vmatpush2.bf16.msra.mxu0 %v2211
    %2824 = vmatprep.subr.bf16.mxu0 %v2204
    %2825 = vmatpush2.bf16.msra.mxu0 %v2203
    %2826 = vmatprep.subr.bf16.mxu0 %v2196
    %2827 = vmatpush2.bf16.msra.mxu0 %v2195
    %2828 = vmatprep.mubr.bf16.mxu0 %v972
    %2829 = vmatmul.mubr.bf16.gmra.mxu0 %v971
    %v2830 = vpop.f32.mrf.mxu0
    %v2831 = vadd.f32 %v2790, %v2830
    %v2832 = vpop.f32.mrf.mxu0
    %v2833 = vadd.f32 %v2792, %v2832
    %v2834 = vpop.f32.mrf.mxu0
    %v2835 = vpop.f32.mrf.mxu0
    %2836 = vdwg.mxu0
    %v2837 = vld [vmem:[%s6 + $0xd] sm:$0xff]
    %v2838 = vld [vmem:[%s6 + $0x15] sm:$0xff]
    %v2839 = vrot.slane %v2585, 4
    %v2840 = vadd.f32 %v2585, %v2839
    %v2841 = vrot.slane %v2840, 2
    %v2842 = vadd.f32 %v2840, %v2841
    %v2843 = vrot.slane %v2842, 1
    %v2844 = vadd.f32 %v2842, %v2843
    %v2845 = vrot.slane %v2587, 4
    %v2846 = vadd.f32 %v2587, %v2845
    %v2847 = vrot.slane %v2846, 2
    %v2848 = vadd.f32 %v2846, %v2847
    %v2849 = vrot.slane %v2848, 1
    %v2850 = vadd.f32 %v2848, %v2849
    %v2851 = vrot.slane %v2667, 4
    %v2852 = vadd.f32 %v2667, %v2851
    %v2853 = vrot.slane %v2852, 2
    %v2854 = vadd.f32 %v2852, %v2853
    %v2855 = vrot.slane %v2854, 1
    %v2856 = vadd.f32 %v2854, %v2855
    %v2857 = vrot.slane %v2669, 4
    %v2858 = vadd.f32 %v2669, %v2857
    %v2859 = vrot.slane %v2858, 2
    %v2860 = vadd.f32 %v2858, %v2859
    %v2861 = vrot.slane %v2860, 1
    %v2862 = vadd.f32 %v2860, %v2861
    %v2863 = vrot.slane %v2749, 4
    %v2864 = vadd.f32 %v2749, %v2863
    %v2865 = vrot.slane %v2864, 2
    %v2866 = vadd.f32 %v2864, %v2865
    %v2867 = vrot.slane %v2866, 1
    %v2868 = vadd.f32 %v2866, %v2867
    %v2869 = vrot.slane %v2751, 4
    %v2870 = vadd.f32 %v2751, %v2869
    %v2871 = vrot.slane %v2870, 2
    %v2872 = vadd.f32 %v2870, %v2871
    %v2873 = vrot.slane %v2872, 1
    %v2874 = vadd.f32 %v2872, %v2873
    %v2875 = vrot.slane %v2831, 4
    %v2876 = vadd.f32 %v2831, %v2875
    %v2877 = vrot.slane %v2876, 2
    %v2878 = vadd.f32 %v2876, %v2877
    %v2879 = vrot.slane %v2878, 1
    %v2880 = vadd.f32 %v2878, %v2879
    %v2881 = vrot.slane %v2833, 4
    %v2882 = vadd.f32 %v2833, %v2881
    %v2883 = vrot.slane %v2882, 2
    %v2884 = vadd.f32 %v2882, %v2883
    %v2885 = vrot.slane %v2884, 1
    %v2886 = vadd.f32 %v2884, %v2885
    %v2887 = vmul.f32 %v2844, %v265
    %v2888 = vmul.f32 %v2850, %v265
    %v2889 = vmul.f32 %v2856, %v265
    %v2890 = vmul.f32 %v2862, %v265
    %v2891 = vmul.f32 %v2868, %v265
    %v2892 = vmul.f32 %v2874, %v265
    %v2893 = vmul.f32 %v2880, %v265
    %v2894 = vmul.f32 %v2886, %v265
    %v2895 = vsub.f32 %v2585, %v2887
    %v2896 = vsub.f32 %v2587, %v2888
    %v2897 = vsub.f32 %v2667, %v2889
    %v2898 = vsub.f32 %v2669, %v2890
    %v2899 = vsub.f32 %v2749, %v2891
    %v2900 = vsub.f32 %v2751, %v2892
    %v2901 = vsub.f32 %v2831, %v2893
    %v2902 = vsub.f32 %v2833, %v2894
    %v2903 = vmul.f32 %v2895, %v2895
    %v2904 = vmul.f32 %v2896, %v2896
    %v2905 = vmul.f32 %v2897, %v2897
    %v2906 = vmul.f32 %v2898, %v2898
    %v2907 = vmul.f32 %v2899, %v2899
    %v2908 = vmul.f32 %v2900, %v2900
    %v2909 = vmul.f32 %v2901, %v2901
    %v2910 = vmul.f32 %v2902, %v2902
    %v2911 = vrot.slane %v2903, 4
    %v2912 = vadd.f32 %v2903, %v2911
    %v2913 = vrot.slane %v2912, 2
    %v2914 = vadd.f32 %v2912, %v2913
    %v2915 = vrot.slane %v2914, 1
    %v2916 = vadd.f32 %v2914, %v2915
    %v2917 = vrot.slane %v2904, 4
    %v2918 = vadd.f32 %v2904, %v2917
    %v2919 = vrot.slane %v2918, 2
    %v2920 = vadd.f32 %v2918, %v2919
    %v2921 = vrot.slane %v2920, 1
    %v2922 = vadd.f32 %v2920, %v2921
    %v2923 = vrot.slane %v2905, 4
    %v2924 = vadd.f32 %v2905, %v2923
    %v2925 = vrot.slane %v2924, 2
    %v2926 = vadd.f32 %v2924, %v2925
    %v2927 = vrot.slane %v2926, 1
    %v2928 = vadd.f32 %v2926, %v2927
    %v2929 = vrot.slane %v2906, 4
    %v2930 = vadd.f32 %v2906, %v2929
    %v2931 = vrot.slane %v2930, 2
    %v2932 = vadd.f32 %v2930, %v2931
    %v2933 = vrot.slane %v2932, 1
    %v2934 = vadd.f32 %v2932, %v2933
    %v2935 = vrot.slane %v2907, 4
    %v2936 = vadd.f32 %v2907, %v2935
    %v2937 = vrot.slane %v2936, 2
    %v2938 = vadd.f32 %v2936, %v2937
    %v2939 = vrot.slane %v2938, 1
    %v2940 = vadd.f32 %v2938, %v2939
    %v2941 = vrot.slane %v2908, 4
    %v2942 = vadd.f32 %v2908, %v2941
    %v2943 = vrot.slane %v2942, 2
    %v2944 = vadd.f32 %v2942, %v2943
    %v2945 = vrot.slane %v2944, 1
    %v2946 = vadd.f32 %v2944, %v2945
    %v2947 = vrot.slane %v2909, 4
    %v2948 = vadd.f32 %v2909, %v2947
    %v2949 = vrot.slane %v2948, 2
    %v2950 = vadd.f32 %v2948, %v2949
    %v2951 = vrot.slane %v2950, 1
    %v2952 = vadd.f32 %v2950, %v2951
    %v2953 = vrot.slane %v2910, 4
    %v2954 = vadd.f32 %v2910, %v2953
    %v2955 = vrot.slane %v2954, 2
    %v2956 = vadd.f32 %v2954, %v2955
    %v2957 = vrot.slane %v2956, 1
    %v2958 = vadd.f32 %v2956, %v2957
    %v2959 = vmul.f32 %v2916, %v265
    %v2960 = vmul.f32 %v2922, %v265
    %v2961 = vmul.f32 %v2928, %v265
    %v2962 = vmul.f32 %v2934, %v265
    %v2963 = vmul.f32 %v2940, %v265
    %v2964 = vmul.f32 %v2946, %v265
    %v2965 = vmul.f32 %v2952, %v265
    %v2966 = vmul.f32 %v2958, %v265
    %v2967 = vadd.f32 %v2959, 0.8
    %v2968 = vadd.f32 %v2960, 0.8
    %v2969 = vadd.f32 %v2961, 0.8
    %v2970 = vadd.f32 %v2962, 0.8
    %v2971 = vadd.f32 %v2963, 0.8
    %v2972 = vadd.f32 %v2964, 0.8
    %v2973 = vadd.f32 %v2965, 0.8
    %v2974 = vadd.f32 %v2966, 0.8
    %v2975 = vrsqrt.pop %v2967
    %v2976 = vrsqrt.pop %v2968
    %v2977 = vrsqrt.pop %v2969
    %v2978 = vrsqrt.pop %v2970
    %v2979 = vrsqrt.pop %v2971
    %v2980 = vrsqrt.pop %v2972
    %v2981 = vrsqrt.pop %v2973
    %v2982 = vrsqrt.pop %v2974
    %v2991 = vcombine.low %v2975, %v2976
    %v2992 = vcombine.low %v2977, %v2978
    %v2993 = vcombine.low %v2979, %v2980
    %v2994 = vcombine.low %v2981, %v2982
    %v2996 = vunpack.c.l.s4 1966171168
    %v2997 = vunpack.c.0.s8 %v2996
    %v2998 = vlaneseq
    %v2999 = vshrl.u32 %v2998, 7
    %v3000 = vsub.s32 %v2997, %v2999
    %v3001 = vrot.slane %v2991, %v3000
    %v3003 = vunpack.c.l.s4 1966171168
    %v3004 = vunpack.c.0.s8 %v3003
    %v3005 = vlaneseq
    %v3006 = vshrl.u32 %v3005, 7
    %v3007 = vsub.s32 %v3004, %v3006
    %v3008 = vrot.slane %v2992, %v3007
    %v3010 = vunpack.c.l.s4 1966171168
    %v3011 = vunpack.c.0.s8 %v3010
    %v3012 = vlaneseq
    %v3013 = vshrl.u32 %v3012, 7
    %v3014 = vsub.s32 %v3011, %v3013
    %v3015 = vrot.slane %v2993, %v3014
    %v3017 = vunpack.c.l.s4 1966171168
    %v3018 = vunpack.c.0.s8 %v3017
    %v3019 = vlaneseq
    %v3020 = vshrl.u32 %v3019, 7
    %v3021 = vsub.s32 %v3018, %v3020
    %v3022 = vrot.slane %v2994, %v3021
    %v3023 = vcombine.low %v3001, %v3008
    %v3024 = vcombine.low %v3015, %v3022
    %v3026 = vunpack.c.l.s4 1966171168
    %v3027 = vunpack.c.0.s8 %v3026
    %v3028 = vlaneseq
    %v3029 = vshrl.u32 %v3028, 7
    %v3030 = vsub.s32 %v3027, %v3029
    %v3031 = vrot.slane %v3023, %v3030
    %v3033 = vunpack.c.l.s4 1966171168
    %v3034 = vunpack.c.0.s8 %v3033
    %v3035 = vlaneseq
    %v3036 = vshrl.u32 %v3035, 7
    %v3037 = vsub.s32 %v3034, %v3036
    %v3038 = vrot.slane %v3024, %v3037
    %v3039 = vcombine.low %v3031, %v3038
    %v3041 = vmul.f32 %v2837, %v3039
    %v3043 = vlaneseq
    %v3044 = vshrl.u32 %v3043, 7
    %v3045 = vsub.s32 0, %v3044
    %v3046 = vrot.slane %v3041, %v3045
    %v3047 = vlaneseq
    %v3048 = vshrl.u32 %v3047, 7
    %v3049 = vsub.s32 1, %v3048
    %v3050 = vrot.slane %v3041, %v3049
    %v3051 = vlaneseq
    %v3052 = vshrl.u32 %v3051, 7
    %v3053 = vsub.s32 2, %v3052
    %v3054 = vrot.slane %v3041, %v3053
    %v3055 = vlaneseq
    %v3056 = vshrl.u32 %v3055, 7
    %v3057 = vsub.s32 3, %v3056
    %v3058 = vrot.slane %v3041, %v3057
    %v3059 = vlaneseq
    %v3060 = vshrl.u32 %v3059, 7
    %v3061 = vsub.s32 4, %v3060
    %v3062 = vrot.slane %v3041, %v3061
    %v3063 = vlaneseq
    %v3064 = vshrl.u32 %v3063, 7
    %v3065 = vsub.s32 5, %v3064
    %v3066 = vrot.slane %v3041, %v3065
    %v3067 = vlaneseq
    %v3068 = vshrl.u32 %v3067, 7
    %v3069 = vsub.s32 6, %v3068
    %v3070 = vrot.slane %v3041, %v3069
    %v3071 = vlaneseq
    %v3072 = vshrl.u32 %v3071, 7
    %v3073 = vsub.s32 7, %v3072
    %v3074 = vrot.slane %v3041, %v3073
    %v3083 = vmul.f32 %v2895, %v3046
    %v3084 = vmul.f32 %v2896, %v3050
    %v3085 = vmul.f32 %v2897, %v3054
    %v3086 = vmul.f32 %v2898, %v3058
    %v3087 = vmul.f32 %v2899, %v3062
    %v3088 = vmul.f32 %v2900, %v3066
    %v3089 = vmul.f32 %v2901, %v3070
    %v3090 = vmul.f32 %v2902, %v3074
    %v3092 = vlaneseq
    %v3093 = vshrl.u32 %v3092, 7
    %v3094 = vsub.s32 0, %v3093
    %v3095 = vrot.slane %v2838, %v3094
    %v3096 = vlaneseq
    %v3097 = vshrl.u32 %v3096, 7
    %v3098 = vsub.s32 1, %v3097
    %v3099 = vrot.slane %v2838, %v3098
    %v3100 = vlaneseq
    %v3101 = vshrl.u32 %v3100, 7
    %v3102 = vsub.s32 2, %v3101
    %v3103 = vrot.slane %v2838, %v3102
    %v3104 = vlaneseq
    %v3105 = vshrl.u32 %v3104, 7
    %v3106 = vsub.s32 3, %v3105
    %v3107 = vrot.slane %v2838, %v3106
    %v3108 = vlaneseq
    %v3109 = vshrl.u32 %v3108, 7
    %v3110 = vsub.s32 4, %v3109
    %v3111 = vrot.slane %v2838, %v3110
    %v3112 = vlaneseq
    %v3113 = vshrl.u32 %v3112, 7
    %v3114 = vsub.s32 5, %v3113
    %v3115 = vrot.slane %v2838, %v3114
    %v3116 = vlaneseq
    %v3117 = vshrl.u32 %v3116, 7
    %v3118 = vsub.s32 6, %v3117
    %v3119 = vrot.slane %v2838, %v3118
    %v3120 = vlaneseq
    %v3121 = vshrl.u32 %v3120, 7
    %v3122 = vsub.s32 7, %v3121
    %v3123 = vrot.slane %v2838, %v3122
    %v3132 = vadd.f32 %v3083, %v3095
    %v3133 = vadd.f32 %v3084, %v3099
    %v3134 = vadd.f32 %v3085, %v3103
    %v3135 = vadd.f32 %v3086, %v3107
    %v3136 = vadd.f32 %v3087, %v3111
    %v3137 = vadd.f32 %v3088, %v3115
    %v3138 = vadd.f32 %v3089, %v3119
    %v3139 = vadd.f32 %v3090, %v3123
    %v3140 = vmul.f32 %v3132, 0.2
    %v3141 = vmul.f32 %v3133, 0.2
    %v3142 = vmul.f32 %v3134, 0.2
    %v3143 = vmul.f32 %v3135, 0.2
    %v3144 = vmul.f32 %v3136, 0.2
    %v3145 = vmul.f32 %v3137, 0.2
    %v3146 = vmul.f32 %v3138, 0.2
    %v3147 = vmul.f32 %v3139, 0.2
    %v3148 = vmax.f32 %v3132, %v3140
    %v3149 = vmax.f32 %v3133, %v3141
    %v3150 = vmax.f32 %v3134, %v3142
    %v3151 = vmax.f32 %v3135, %v3143
    %v3152 = vmax.f32 %v3136, %v3144
    %v3153 = vmax.f32 %v3137, %v3145
    %v3154 = vmax.f32 %v3138, %v3146
    %v3155 = vmax.f32 %v3139, %v3147
    %v3156 = vpack.c.bf16 %v3148, %v3148
    %v3157 = vpack.c.bf16 %v3149, %v3149
    %v3158 = vpack.c.bf16 %v3150, %v3150
    %v3159 = vpack.c.bf16 %v3151, %v3151
    %v3160 = vpack.c.bf16 %v3152, %v3152
    %v3161 = vpack.c.bf16 %v3153, %v3153
    %v3162 = vpack.c.bf16 %v3154, %v3154
    %v3163 = vpack.c.bf16 %v3155, %v3155
    %v3164 = vld [vmem:[%s5] sm:$0xf]
    %v3165 = vld [vmem:[%s5 + $0x4] sm:$0xf]
    %v3166 = vld [vmem:[%s5 + $0x8] sm:$0xf]
    %v3167 = vld [vmem:[%s5 + $0xc] sm:$0xf]
    %v3168 = vld [vmem:[%s5 + $0x10] sm:$0xf]
    %v3169 = vld [vmem:[%s5 + $0x14] sm:$0xf]
    %v3170 = vld [vmem:[%s5 + $0x18] sm:$0xf]
    %v3171 = vld [vmem:[%s5 + $0x1c] sm:$0xf]
    %v3172 = vld [vmem:[%s5 + $0x20] sm:$0xf]
    %v3173 = vld [vmem:[%s5 + $0x24] sm:$0xf]
    %v3174 = vld [vmem:[%s5 + $0x28] sm:$0xf]
    %v3175 = vld [vmem:[%s5 + $0x2c] sm:$0xf]
    %v3176 = vld [vmem:[%s5 + $0x30] sm:$0xf]
    %v3177 = vld [vmem:[%s5 + $0x34] sm:$0xf]
    %v3178 = vld [vmem:[%s5 + $0x38] sm:$0xf]
    %v3179 = vld [vmem:[%s5 + $0x3c] sm:$0xf]
    %v3180 = vld [vmem:[%s5 + $0x40] sm:$0xf]
    %v3181 = vld [vmem:[%s5 + $0x44] sm:$0xf]
    %v3182 = vld [vmem:[%s5 + $0x48] sm:$0xf]
    %v3183 = vld [vmem:[%s5 + $0x4c] sm:$0xf]
    %v3184 = vld [vmem:[%s5 + $0x50] sm:$0xf]
    %v3185 = vld [vmem:[%s5 + $0x54] sm:$0xf]
    %v3186 = vld [vmem:[%s5 + $0x58] sm:$0xf]
    %v3187 = vld [vmem:[%s5 + $0x5c] sm:$0xf]
    %v3188 = vld [vmem:[%s5 + $0x60] sm:$0xf]
    %v3189 = vld [vmem:[%s5 + $0x64] sm:$0xf]
    %v3190 = vld [vmem:[%s5 + $0x68] sm:$0xf]
    %v3191 = vld [vmem:[%s5 + $0x6c] sm:$0xf]
    %v3192 = vld [vmem:[%s5 + $0x70] sm:$0xf]
    %v3193 = vld [vmem:[%s5 + $0x74] sm:$0xf]
    %v3194 = vld [vmem:[%s5 + $0x78] sm:$0xf]
    %v3195 = vld [vmem:[%s5 + $0x7c] sm:$0xf]
    %v3196 = vld [vmem:[%s5 + $0x80] sm:$0xf]
    %v3197 = vld [vmem:[%s5 + $0x84] sm:$0xf]
    %v3198 = vld [vmem:[%s5 + $0x88] sm:$0xf]
    %v3199 = vld [vmem:[%s5 + $0x8c] sm:$0xf]
    %v3200 = vld [vmem:[%s5 + $0x90] sm:$0xf]
    %v3201 = vld [vmem:[%s5 + $0x94] sm:$0xf]
    %v3202 = vld [vmem:[%s5 + $0x98] sm:$0xf]
    %v3203 = vld [vmem:[%s5 + $0x9c] sm:$0xf]
    %v3204 = vld [vmem:[%s5 + $0xa0] sm:$0xf]
    %v3205 = vld [vmem:[%s5 + $0xa4] sm:$0xf]
    %v3206 = vld [vmem:[%s5 + $0xa8] sm:$0xf]
    %v3207 = vld [vmem:[%s5 + $0xac] sm:$0xf]
    %v3208 = vld [vmem:[%s5 + $0xb0] sm:$0xf]
    %v3209 = vld [vmem:[%s5 + $0xb4] sm:$0xf]
    %v3210 = vld [vmem:[%s5 + $0xb8] sm:$0xf]
    %v3211 = vld [vmem:[%s5 + $0xbc] sm:$0xf]
    %v3212 = vld [vmem:[%s5 + $0xc0] sm:$0xf]
    %v3213 = vld [vmem:[%s5 + $0xc4] sm:$0xf]
    %v3214 = vld [vmem:[%s5 + $0xc8] sm:$0xf]
    %v3215 = vld [vmem:[%s5 + $0xcc] sm:$0xf]
    %v3216 = vld [vmem:[%s5 + $0xd0] sm:$0xf]
    %v3217 = vld [vmem:[%s5 + $0xd4] sm:$0xf]
    %v3218 = vld [vmem:[%s5 + $0xd8] sm:$0xf]
    %v3219 = vld [vmem:[%s5 + $0xdc] sm:$0xf]
    %v3220 = vld [vmem:[%s5 + $0xe0] sm:$0xf]
    %v3221 = vld [vmem:[%s5 + $0xe4] sm:$0xf]
    %v3222 = vld [vmem:[%s5 + $0xe8] sm:$0xf]
    %v3223 = vld [vmem:[%s5 + $0xec] sm:$0xf]
    %v3224 = vld [vmem:[%s5 + $0xf0] sm:$0xf]
    %v3225 = vld [vmem:[%s5 + $0xf4] sm:$0xf]
    %v3226 = vld [vmem:[%s5 + $0xf8] sm:$0xf]
    %v3227 = vld [vmem:[%s5 + $0xfc] sm:$0xf]
    %v3228 = vld [vmem:[%s5 + $0x100] sm:$0xf]
    %v3229 = vld [vmem:[%s5 + $0x104] sm:$0xf]
    %v3230 = vld [vmem:[%s5 + $0x108] sm:$0xf]
    %v3231 = vld [vmem:[%s5 + $0x10c] sm:$0xf]
    %v3232 = vld [vmem:[%s5 + $0x110] sm:$0xf]
    %v3233 = vld [vmem:[%s5 + $0x114] sm:$0xf]
    %v3234 = vld [vmem:[%s5 + $0x118] sm:$0xf]
    %v3235 = vld [vmem:[%s5 + $0x11c] sm:$0xf]
    %v3236 = vld [vmem:[%s5 + $0x120] sm:$0xf]
    %v3237 = vld [vmem:[%s5 + $0x124] sm:$0xf]
    %v3238 = vld [vmem:[%s5 + $0x128] sm:$0xf]
    %v3239 = vld [vmem:[%s5 + $0x12c] sm:$0xf]
    %v3240 = vld [vmem:[%s5 + $0x130] sm:$0xf]
    %v3241 = vld [vmem:[%s5 + $0x134] sm:$0xf]
    %v3242 = vld [vmem:[%s5 + $0x138] sm:$0xf]
    %v3243 = vld [vmem:[%s5 + $0x13c] sm:$0xf]
    %v3244 = vld [vmem:[%s5 + $0x140] sm:$0xf]
    %v3245 = vld [vmem:[%s5 + $0x144] sm:$0xf]
    %v3246 = vld [vmem:[%s5 + $0x148] sm:$0xf]
    %v3247 = vld [vmem:[%s5 + $0x14c] sm:$0xf]
    %v3248 = vld [vmem:[%s5 + $0x150] sm:$0xf]
    %v3249 = vld [vmem:[%s5 + $0x154] sm:$0xf]
    %v3250 = vld [vmem:[%s5 + $0x158] sm:$0xf]
    %v3251 = vld [vmem:[%s5 + $0x15c] sm:$0xf]
    %v3252 = vld [vmem:[%s5 + $0x160] sm:$0xf]
    %v3253 = vld [vmem:[%s5 + $0x164] sm:$0xf]
    %v3254 = vld [vmem:[%s5 + $0x168] sm:$0xf]
    %v3255 = vld [vmem:[%s5 + $0x16c] sm:$0xf]
    %v3256 = vld [vmem:[%s5 + $0x170] sm:$0xf]
    %v3257 = vld [vmem:[%s5 + $0x174] sm:$0xf]
    %v3258 = vld [vmem:[%s5 + $0x178] sm:$0xf]
    %v3259 = vld [vmem:[%s5 + $0x17c] sm:$0xf]
    %v3260 = vld [vmem:[%s5 + $0x180] sm:$0xf]
    %v3261 = vld [vmem:[%s5 + $0x184] sm:$0xf]
    %v3262 = vld [vmem:[%s5 + $0x188] sm:$0xf]
    %v3263 = vld [vmem:[%s5 + $0x18c] sm:$0xf]
    %v3264 = vld [vmem:[%s5 + $0x190] sm:$0xf]
    %v3265 = vld [vmem:[%s5 + $0x194] sm:$0xf]
    %v3266 = vld [vmem:[%s5 + $0x198] sm:$0xf]
    %v3267 = vld [vmem:[%s5 + $0x19c] sm:$0xf]
    %v3268 = vld [vmem:[%s5 + $0x1a0] sm:$0xf]
    %v3269 = vld [vmem:[%s5 + $0x1a4] sm:$0xf]
    %v3270 = vld [vmem:[%s5 + $0x1a8] sm:$0xf]
    %v3271 = vld [vmem:[%s5 + $0x1ac] sm:$0xf]
    %v3272 = vld [vmem:[%s5 + $0x1b0] sm:$0xf]
    %v3273 = vld [vmem:[%s5 + $0x1b4] sm:$0xf]
    %v3274 = vld [vmem:[%s5 + $0x1b8] sm:$0xf]
    %v3275 = vld [vmem:[%s5 + $0x1bc] sm:$0xf]
    %v3276 = vld [vmem:[%s5 + $0x1c0] sm:$0xf]
    %v3277 = vld [vmem:[%s5 + $0x1c4] sm:$0xf]
    %v3278 = vld [vmem:[%s5 + $0x1c8] sm:$0xf]
    %v3279 = vld [vmem:[%s5 + $0x1cc] sm:$0xf]
    %v3280 = vld [vmem:[%s5 + $0x1d0] sm:$0xf]
    %v3281 = vld [vmem:[%s5 + $0x1d4] sm:$0xf]
    %v3282 = vld [vmem:[%s5 + $0x1d8] sm:$0xf]
    %v3283 = vld [vmem:[%s5 + $0x1dc] sm:$0xf]
    %v3284 = vld [vmem:[%s5 + $0x1e0] sm:$0xf]
    %v3285 = vld [vmem:[%s5 + $0x1e4] sm:$0xf]
    %v3286 = vld [vmem:[%s5 + $0x1e8] sm:$0xf]
    %v3287 = vld [vmem:[%s5 + $0x1ec] sm:$0xf]
    %v3288 = vld [vmem:[%s5 + $0x1f0] sm:$0xf]
    %v3289 = vld [vmem:[%s5 + $0x1f4] sm:$0xf]
    %v3290 = vld [vmem:[%s5 + $0x1f8] sm:$0xf]
    %v3291 = vld [vmem:[%s5 + $0x1fc] sm:$0xf]
    %v3292 = vld [vmem:[%s6 + $0x1d] sm:$0x1]
    %v3294 = vlaneseq
    %v3295 = vshrl.u32 %v3294, 7
    %v3296 = vsub.s32 0, %v3295
    %v3297 = vrot.slane %v3292, %v3296
    %v3427 = vunpack.c.l.b16 %v3164
    %v3428 = vunpack.c.l.b16 %v3165
    %v3429 = vunpack.c.l.b16 %v3166
    %v3430 = vunpack.c.l.b16 %v3167
    %v3431 = vunpack.c.l.b16 %v3168
    %v3432 = vunpack.c.l.b16 %v3169
    %v3433 = vunpack.c.l.b16 %v3170
    %v3434 = vunpack.c.l.b16 %v3171
    %v3435 = vunpack.c.l.b16 %v3172
    %v3436 = vunpack.c.l.b16 %v3173
    %v3437 = vunpack.c.l.b16 %v3174
    %v3438 = vunpack.c.l.b16 %v3175
    %v3439 = vunpack.c.l.b16 %v3176
    %v3440 = vunpack.c.l.b16 %v3177
    %v3441 = vunpack.c.l.b16 %v3178
    %v3442 = vunpack.c.l.b16 %v3179
    %v3443 = vunpack.c.l.b16 %v3180
    %v3444 = vunpack.c.l.b16 %v3181
    %v3445 = vunpack.c.l.b16 %v3182
    %v3446 = vunpack.c.l.b16 %v3183
    %v3447 = vunpack.c.l.b16 %v3184
    %v3448 = vunpack.c.l.b16 %v3185
    %v3449 = vunpack.c.l.b16 %v3186
    %v3450 = vunpack.c.l.b16 %v3187
    %v3451 = vunpack.c.l.b16 %v3188
    %v3452 = vunpack.c.l.b16 %v3189
    %v3453 = vunpack.c.l.b16 %v3190
    %v3454 = vunpack.c.l.b16 %v3191
    %v3455 = vunpack.c.l.b16 %v3192
    %v3456 = vunpack.c.l.b16 %v3193
    %v3457 = vunpack.c.l.b16 %v3194
    %v3458 = vunpack.c.l.b16 %v3195
    %v3459 = vunpack.c.l.b16 %v3196
    %v3460 = vunpack.c.l.b16 %v3197
    %v3461 = vunpack.c.l.b16 %v3198
    %v3462 = vunpack.c.l.b16 %v3199
    %v3463 = vunpack.c.l.b16 %v3200
    %v3464 = vunpack.c.l.b16 %v3201
    %v3465 = vunpack.c.l.b16 %v3202
    %v3466 = vunpack.c.l.b16 %v3203
    %v3467 = vunpack.c.l.b16 %v3204
    %v3468 = vunpack.c.l.b16 %v3205
    %v3469 = vunpack.c.l.b16 %v3206
    %v3470 = vunpack.c.l.b16 %v3207
    %v3471 = vunpack.c.l.b16 %v3208
    %v3472 = vunpack.c.l.b16 %v3209
    %v3473 = vunpack.c.l.b16 %v3210
    %v3474 = vunpack.c.l.b16 %v3211
    %v3475 = vunpack.c.l.b16 %v3212
    %v3476 = vunpack.c.l.b16 %v3213
    %v3477 = vunpack.c.l.b16 %v3214
    %v3478 = vunpack.c.l.b16 %v3215
    %v3479 = vunpack.c.l.b16 %v3216
    %v3480 = vunpack.c.l.b16 %v3217
    %v3481 = vunpack.c.l.b16 %v3218
    %v3482 = vunpack.c.l.b16 %v3219
    %v3483 = vunpack.c.l.b16 %v3220
    %v3484 = vunpack.c.l.b16 %v3221
    %v3485 = vunpack.c.l.b16 %v3222
    %v3486 = vunpack.c.l.b16 %v3223
    %v3487 = vunpack.c.l.b16 %v3224
    %v3488 = vunpack.c.l.b16 %v3225
    %v3489 = vunpack.c.l.b16 %v3226
    %v3490 = vunpack.c.l.b16 %v3227
    %v3491 = vunpack.c.l.b16 %v3228
    %v3492 = vunpack.c.l.b16 %v3229
    %v3493 = vunpack.c.l.b16 %v3230
    %v3494 = vunpack.c.l.b16 %v3231
    %v3495 = vunpack.c.l.b16 %v3232
    %v3496 = vunpack.c.l.b16 %v3233
    %v3497 = vunpack.c.l.b16 %v3234
    %v3498 = vunpack.c.l.b16 %v3235
    %v3499 = vunpack.c.l.b16 %v3236
    %v3500 = vunpack.c.l.b16 %v3237
    %v3501 = vunpack.c.l.b16 %v3238
    %v3502 = vunpack.c.l.b16 %v3239
    %v3503 = vunpack.c.l.b16 %v3240
    %v3504 = vunpack.c.l.b16 %v3241
    %v3505 = vunpack.c.l.b16 %v3242
    %v3506 = vunpack.c.l.b16 %v3243
    %v3507 = vunpack.c.l.b16 %v3244
    %v3508 = vunpack.c.l.b16 %v3245
    %v3509 = vunpack.c.l.b16 %v3246
    %v3510 = vunpack.c.l.b16 %v3247
    %v3511 = vunpack.c.l.b16 %v3248
    %v3512 = vunpack.c.l.b16 %v3249
    %v3513 = vunpack.c.l.b16 %v3250
    %v3514 = vunpack.c.l.b16 %v3251
    %v3515 = vunpack.c.l.b16 %v3252
    %v3516 = vunpack.c.l.b16 %v3253
    %v3517 = vunpack.c.l.b16 %v3254
    %v3518 = vunpack.c.l.b16 %v3255
    %v3519 = vunpack.c.l.b16 %v3256
    %v3520 = vunpack.c.l.b16 %v3257
    %v3521 = vunpack.c.l.b16 %v3258
    %v3522 = vunpack.c.l.b16 %v3259
    %v3523 = vunpack.c.l.b16 %v3260
    %v3524 = vunpack.c.l.b16 %v3261
    %v3525 = vunpack.c.l.b16 %v3262
    %v3526 = vunpack.c.l.b16 %v3263
    %v3527 = vunpack.c.l.b16 %v3264
    %v3528 = vunpack.c.l.b16 %v3265
    %v3529 = vunpack.c.l.b16 %v3266
    %v3530 = vunpack.c.l.b16 %v3267
    %v3531 = vunpack.c.l.b16 %v3268
    %v3532 = vunpack.c.l.b16 %v3269
    %v3533 = vunpack.c.l.b16 %v3270
    %v3534 = vunpack.c.l.b16 %v3271
    %v3535 = vunpack.c.l.b16 %v3272
    %v3536 = vunpack.c.l.b16 %v3273
    %v3537 = vunpack.c.l.b16 %v3274
    %v3538 = vunpack.c.l.b16 %v3275
    %v3539 = vunpack.c.l.b16 %v3276
    %v3540 = vunpack.c.l.b16 %v3277
    %v3541 = vunpack.c.l.b16 %v3278
    %v3542 = vunpack.c.l.b16 %v3279
    %v3543 = vunpack.c.l.b16 %v3280
    %v3544 = vunpack.c.l.b16 %v3281
    %v3545 = vunpack.c.l.b16 %v3282
    %v3546 = vunpack.c.l.b16 %v3283
    %v3547 = vunpack.c.l.b16 %v3284
    %v3548 = vunpack.c.l.b16 %v3285
    %v3549 = vunpack.c.l.b16 %v3286
    %v3550 = vunpack.c.l.b16 %v3287
    %v3551 = vunpack.c.l.b16 %v3288
    %v3552 = vunpack.c.l.b16 %v3289
    %v3553 = vunpack.c.l.b16 %v3290
    %v3554 = vunpack.c.l.b16 %v3291
    %v3555 = vpack.c.b16 %v3428, %v3427
    %v3556 = vpack.c.b16 %v3430, %v3429
    %v3557 = vpack.c.b16 %v3432, %v3431
    %v3558 = vpack.c.b16 %v3434, %v3433
    %v3559 = vpack.c.b16 %v3436, %v3435
    %v3560 = vpack.c.b16 %v3438, %v3437
    %v3561 = vpack.c.b16 %v3440, %v3439
    %v3562 = vpack.c.b16 %v3442, %v3441
    %v3563 = vpack.c.b16 %v3444, %v3443
    %v3564 = vpack.c.b16 %v3446, %v3445
    %v3565 = vpack.c.b16 %v3448, %v3447
    %v3566 = vpack.c.b16 %v3450, %v3449
    %v3567 = vpack.c.b16 %v3452, %v3451
    %v3568 = vpack.c.b16 %v3454, %v3453
    %v3569 = vpack.c.b16 %v3456, %v3455
    %v3570 = vpack.c.b16 %v3458, %v3457
    %v3571 = vpack.c.b16 %v3460, %v3459
    %v3572 = vpack.c.b16 %v3462, %v3461
    %v3573 = vpack.c.b16 %v3464, %v3463
    %v3574 = vpack.c.b16 %v3466, %v3465
    %v3575 = vpack.c.b16 %v3468, %v3467
    %v3576 = vpack.c.b16 %v3470, %v3469
    %v3577 = vpack.c.b16 %v3472, %v3471
    %v3578 = vpack.c.b16 %v3474, %v3473
    %v3579 = vpack.c.b16 %v3476, %v3475
    %v3580 = vpack.c.b16 %v3478, %v3477
    %v3581 = vpack.c.b16 %v3480, %v3479
    %v3582 = vpack.c.b16 %v3482, %v3481
    %v3583 = vpack.c.b16 %v3484, %v3483
    %v3584 = vpack.c.b16 %v3486, %v3485
    %v3585 = vpack.c.b16 %v3488, %v3487
    %v3586 = vpack.c.b16 %v3490, %v3489
    %v3587 = vpack.c.b16 %v3492, %v3491
    %v3588 = vpack.c.b16 %v3494, %v3493
    %v3589 = vpack.c.b16 %v3496, %v3495
    %v3590 = vpack.c.b16 %v3498, %v3497
    %v3591 = vpack.c.b16 %v3500, %v3499
    %v3592 = vpack.c.b16 %v3502, %v3501
    %v3593 = vpack.c.b16 %v3504, %v3503
    %v3594 = vpack.c.b16 %v3506, %v3505
    %v3595 = vpack.c.b16 %v3508, %v3507
    %v3596 = vpack.c.b16 %v3510, %v3509
    %v3597 = vpack.c.b16 %v3512, %v3511
    %v3598 = vpack.c.b16 %v3514, %v3513
    %v3599 = vpack.c.b16 %v3516, %v3515
    %v3600 = vpack.c.b16 %v3518, %v3517
    %v3601 = vpack.c.b16 %v3520, %v3519
    %v3602 = vpack.c.b16 %v3522, %v3521
    %v3603 = vpack.c.b16 %v3524, %v3523
    %v3604 = vpack.c.b16 %v3526, %v3525
    %v3605 = vpack.c.b16 %v3528, %v3527
    %v3606 = vpack.c.b16 %v3530, %v3529
    %v3607 = vpack.c.b16 %v3532, %v3531
    %v3608 = vpack.c.b16 %v3534, %v3533
    %v3609 = vpack.c.b16 %v3536, %v3535
    %v3610 = vpack.c.b16 %v3538, %v3537
    %v3611 = vpack.c.b16 %v3540, %v3539
    %v3612 = vpack.c.b16 %v3542, %v3541
    %v3613 = vpack.c.b16 %v3544, %v3543
    %v3614 = vpack.c.b16 %v3546, %v3545
    %v3615 = vpack.c.b16 %v3548, %v3547
    %v3616 = vpack.c.b16 %v3550, %v3549
    %v3617 = vpack.c.b16 %v3552, %v3551
    %v3618 = vpack.c.b16 %v3554, %v3553
    %3683 = vmatprep.subr.bf16.mxu0 0
    %3684 = vmatpush1.bf16.msra.mxu0 %v3562
    %3685 = vmatprep.subr.bf16.mxu0 0
    %3686 = vmatpush1.bf16.msra.mxu0 %v3561
    %3687 = vmatprep.subr.bf16.mxu0 0
    %3688 = vmatpush1.bf16.msra.mxu0 %v3560
    %3689 = vmatprep.subr.bf16.mxu0 0
    %3690 = vmatpush1.bf16.msra.mxu0 %v3559
    %3691 = vmatprep.subr.bf16.mxu0 0
    %3692 = vmatpush1.bf16.msra.mxu0 %v3558
    %3693 = vmatprep.subr.bf16.mxu0 0
    %3694 = vmatpush1.bf16.msra.mxu0 %v3557
    %3695 = vmatprep.subr.bf16.mxu0 0
    %3696 = vmatpush1.bf16.msra.mxu0 %v3556
    %3697 = vmatprep.subr.bf16.mxu0 0
    %3698 = vmatpush1.bf16.msra.mxu0 %v3555
    %3699 = vmatprep.subr.bf16.mxu0 0
    %3700 = vmatpush2.bf16.msra.mxu0 %v3570
    %3701 = vmatprep.subr.bf16.mxu0 0
    %3702 = vmatpush2.bf16.msra.mxu0 %v3569
    %3703 = vmatprep.subr.bf16.mxu0 0
    %3704 = vmatpush2.bf16.msra.mxu0 %v3568
    %3705 = vmatprep.subr.bf16.mxu0 0
    %3706 = vmatpush2.bf16.msra.mxu0 %v3567
    %3707 = vmatprep.subr.bf16.mxu0 0
    %3708 = vmatpush2.bf16.msra.mxu0 %v3566
    %3709 = vmatprep.subr.bf16.mxu0 0
    %3710 = vmatpush2.bf16.msra.mxu0 %v3565
    %3711 = vmatprep.subr.bf16.mxu0 0
    %3712 = vmatpush2.bf16.msra.mxu0 %v3564
    %3713 = vmatprep.subr.bf16.mxu0 0
    %3714 = vmatpush2.bf16.msra.mxu0 %v3563
    %3715 = vmatprep.mubr.bf16.mxu0 %v3157
    %3716 = vmatmul.mubr.bf16.gmra.mxu0 %v3156
    %v3717 = vpop.f32.mrf.mxu0
    %v3718 = vadd.f32 %v3297, %v3717
    %v3719 = vpop.f32.mrf.mxu0
    %v3720 = vpop.f32.mrf.mxu0
    %v3721 = vpop.f32.mrf.mxu0
    %3722 = vdwg.mxu0
    %3723 = vmatprep.subr.bf16.mxu0 0
    %3724 = vmatpush1.bf16.msra.mxu0 %v3578
    %3725 = vmatprep.subr.bf16.mxu0 0
    %3726 = vmatpush1.bf16.msra.mxu0 %v3577
    %3727 = vmatprep.subr.bf16.mxu0 0
    %3728 = vmatpush1.bf16.msra.mxu0 %v3576
    %3729 = vmatprep.subr.bf16.mxu0 0
    %3730 = vmatpush1.bf16.msra.mxu0 %v3575
    %3731 = vmatprep.subr.bf16.mxu0 0
    %3732 = vmatpush1.bf16.msra.mxu0 %v3574
    %3733 = vmatprep.subr.bf16.mxu0 0
    %3734 = vmatpush1.bf16.msra.mxu0 %v3573
    %3735 = vmatprep.subr.bf16.mxu0 0
    %3736 = vmatpush1.bf16.msra.mxu0 %v3572
    %3737 = vmatprep.subr.bf16.mxu0 0
    %3738 = vmatpush1.bf16.msra.mxu0 %v3571
    %3739 = vmatprep.subr.bf16.mxu0 0
    %3740 = vmatpush2.bf16.msra.mxu0 %v3586
    %3741 = vmatprep.subr.bf16.mxu0 0
    %3742 = vmatpush2.bf16.msra.mxu0 %v3585
    %3743 = vmatprep.subr.bf16.mxu0 0
    %3744 = vmatpush2.bf16.msra.mxu0 %v3584
    %3745 = vmatprep.subr.bf16.mxu0 0
    %3746 = vmatpush2.bf16.msra.mxu0 %v3583
    %3747 = vmatprep.subr.bf16.mxu0 0
    %3748 = vmatpush2.bf16.msra.mxu0 %v3582
    %3749 = vmatprep.subr.bf16.mxu0 0
    %3750 = vmatpush2.bf16.msra.mxu0 %v3581
    %3751 = vmatprep.subr.bf16.mxu0 0
    %3752 = vmatpush2.bf16.msra.mxu0 %v3580
    %3753 = vmatprep.subr.bf16.mxu0 0
    %3754 = vmatpush2.bf16.msra.mxu0 %v3579
    %3755 = vmatprep.mubr.bf16.mxu0 %v3159
    %3756 = vmatmul.mubr.bf16.gmra.mxu0 %v3158
    %v3757 = vpop.f32.mrf.mxu0
    %v3758 = vadd.f32 %v3718, %v3757
    %v3759 = vpop.f32.mrf.mxu0
    %v3760 = vpop.f32.mrf.mxu0
    %v3761 = vpop.f32.mrf.mxu0
    %3762 = vdwg.mxu0
    %3763 = vmatprep.subr.bf16.mxu0 0
    %3764 = vmatpush1.bf16.msra.mxu0 %v3594
    %3765 = vmatprep.subr.bf16.mxu0 0
    %3766 = vmatpush1.bf16.msra.mxu0 %v3593
    %3767 = vmatprep.subr.bf16.mxu0 0
    %3768 = vmatpush1.bf16.msra.mxu0 %v3592
    %3769 = vmatprep.subr.bf16.mxu0 0
    %3770 = vmatpush1.bf16.msra.mxu0 %v3591
    %3771 = vmatprep.subr.bf16.mxu0 0
    %3772 = vmatpush1.bf16.msra.mxu0 %v3590
    %3773 = vmatprep.subr.bf16.mxu0 0
    %3774 = vmatpush1.bf16.msra.mxu0 %v3589
    %3775 = vmatprep.subr.bf16.mxu0 0
    %3776 = vmatpush1.bf16.msra.mxu0 %v3588
    %3777 = vmatprep.subr.bf16.mxu0 0
    %3778 = vmatpush1.bf16.msra.mxu0 %v3587
    %3779 = vmatprep.subr.bf16.mxu0 0
    %3780 = vmatpush2.bf16.msra.mxu0 %v3602
    %3781 = vmatprep.subr.bf16.mxu0 0
    %3782 = vmatpush2.bf16.msra.mxu0 %v3601
    %3783 = vmatprep.subr.bf16.mxu0 0
    %3784 = vmatpush2.bf16.msra.mxu0 %v3600
    %3785 = vmatprep.subr.bf16.mxu0 0
    %3786 = vmatpush2.bf16.msra.mxu0 %v3599
    %3787 = vmatprep.subr.bf16.mxu0 0
    %3788 = vmatpush2.bf16.msra.mxu0 %v3598
    %3789 = vmatprep.subr.bf16.mxu0 0
    %3790 = vmatpush2.bf16.msra.mxu0 %v3597
    %3791 = vmatprep.subr.bf16.mxu0 0
    %3792 = vmatpush2.bf16.msra.mxu0 %v3596
    %3793 = vmatprep.subr.bf16.mxu0 0
    %3794 = vmatpush2.bf16.msra.mxu0 %v3595
    %3795 = vmatprep.mubr.bf16.mxu0 %v3161
    %3796 = vmatmul.mubr.bf16.gmra.mxu0 %v3160
    %v3797 = vpop.f32.mrf.mxu0
    %v3798 = vadd.f32 %v3758, %v3797
    %v3799 = vpop.f32.mrf.mxu0
    %v3800 = vpop.f32.mrf.mxu0
    %v3801 = vpop.f32.mrf.mxu0
    %3802 = vdwg.mxu0
    %3803 = vmatprep.subr.bf16.mxu0 0
    %3804 = vmatpush1.bf16.msra.mxu0 %v3610
    %3805 = vmatprep.subr.bf16.mxu0 0
    %3806 = vmatpush1.bf16.msra.mxu0 %v3609
    %3807 = vmatprep.subr.bf16.mxu0 0
    %3808 = vmatpush1.bf16.msra.mxu0 %v3608
    %3809 = vmatprep.subr.bf16.mxu0 0
    %3810 = vmatpush1.bf16.msra.mxu0 %v3607
    %3811 = vmatprep.subr.bf16.mxu0 0
    %3812 = vmatpush1.bf16.msra.mxu0 %v3606
    %3813 = vmatprep.subr.bf16.mxu0 0
    %3814 = vmatpush1.bf16.msra.mxu0 %v3605
    %3815 = vmatprep.subr.bf16.mxu0 0
    %3816 = vmatpush1.bf16.msra.mxu0 %v3604
    %3817 = vmatprep.subr.bf16.mxu0 0
    %3818 = vmatpush1.bf16.msra.mxu0 %v3603
    %3819 = vmatprep.subr.bf16.mxu0 0
    %3820 = vmatpush2.bf16.msra.mxu0 %v3618
    %3821 = vmatprep.subr.bf16.mxu0 0
    %3822 = vmatpush2.bf16.msra.mxu0 %v3617
    %3823 = vmatprep.subr.bf16.mxu0 0
    %3824 = vmatpush2.bf16.msra.mxu0 %v3616
    %3825 = vmatprep.subr.bf16.mxu0 0
    %3826 = vmatpush2.bf16.msra.mxu0 %v3615
    %3827 = vmatprep.subr.bf16.mxu0 0
    %3828 = vmatpush2.bf16.msra.mxu0 %v3614
    %3829 = vmatprep.subr.bf16.mxu0 0
    %3830 = vmatpush2.bf16.msra.mxu0 %v3613
    %3831 = vmatprep.subr.bf16.mxu0 0
    %3832 = vmatpush2.bf16.msra.mxu0 %v3612
    %3833 = vmatprep.subr.bf16.mxu0 0
    %3834 = vmatpush2.bf16.msra.mxu0 %v3611
    %3835 = vmatprep.mubr.bf16.mxu0 %v3163
    %3836 = vmatmul.mubr.bf16.gmra.mxu0 %v3162
    %v3837 = vpop.f32.mrf.mxu0
    %v3838 = vadd.f32 %v3798, %v3837
    %v3839 = vpop.f32.mrf.mxu0
    %v3840 = vpop.f32.mrf.mxu0
    %v3841 = vpop.f32.mrf.mxu0
    %3842 = vdwg.mxu0
    %v3843 = vtanh.pop %v3838
    %vm3844 = vcmask 523264
    %3845 = vst.msk [vmem:[#allocation5] sm:$0xff] %vm3844, %v3843
    // Predicated region
    $region34: #{tpu_custom_call.1} parent=1 // pred_check
      _
    $region35: #{tpu_custom_call.1} parent=1 // pred_check_branch
      %3847 = sbr.rel (0) target = $region37
    $region36: #{tpu_custom_call.1} parent=1 // pred_region
      %s3849 = ssub.s32 128, 128
      %3850 = vsyncadd [#allocation4], %s3849
      %s3852 = sshll.u32 [#allocation5], 4
      %s3853 = int_to_ptr.vmem [resolvable:$true] %s3852
      %3855 = dma.vmem_to_hbm [thread:$0]  %s3853, 128, %s7, [#allocation4]
    $region37: #{tpu_custom_call.1} parent=1 // pred_fallthru
      _
    // Predicated region
    $region38: #{tpu_custom_call.1} parent=1 // pred_check
      _
    $region39: #{tpu_custom_call.1} parent=1 // pred_check_branch
      %3857 = sbr.rel (0) target = $region41
    $region40: #{tpu_custom_call.1} parent=1 // pred_region
      %3858 = dma.done [#allocation4], 128
    $region41: #{tpu_custom_call.1} parent=1 // pred_fallthru
      _
    %3859 = vsyncpa [#allocation3], 1
    %3860 = vsyncpa [#allocation4], 1

</llo_original>
